<compile_context>
chip_gen: v6e
topology: v6e:2x2x1
jax: 0.10.0
libtpu: 0.0.40
codegen_flags: <defaults>
</compile_context>

<pallas_src>
import numpy as np
import jax
import jax.numpy as jnp
from jax import lax
from jax.experimental import pallas as pl
from jax.experimental.pallas import tpu as pltpu  # noqa: F401  (kept for scaling knobs)

# ----------------------------- model config ---------------------------------
D_MODEL = 64
N_HEAD = 4
HEAD_DIM = D_MODEL // N_HEAD
N_LAYER = 2
VOCAB = 256
MLP_DIM = 4 * D_MODEL
LN_EPS = 1e-5
NEG_INF = -1e9

PAD_ID, BOS_ID, SEP_ID, EOS_ID = 0, 1, 2, 3


def _layernorm(x, g, b):
    mu = jnp.mean(x, axis=-1, keepdims=True)
    var = jnp.mean((x - mu) ** 2, axis=-1, keepdims=True)
    return (x - mu) * lax.rsqrt(var + LN_EPS) * g + b


# ----------------------- fused transformer + loss kernel --------------------
def _fused_forward_kernel(x_ref, bias_ref, tgt_ref,
                          ln1g_ref, ln1b_ref, wqkv_ref, bqkv_ref, wo_ref, bo_ref,
                          ln2g_ref, ln2b_ref, wfc_ref, bfc_ref, wproj_ref, bproj_ref,
                          lnfg_ref, lnfb_ref, wte_t_ref,
                          loss_ref):
    BT = x_ref.shape[0]
    V = wte_t_ref.shape[1]
    scale = 1.0 / np.sqrt(HEAD_DIM)

    x = x_ref[...]                    # (BT, D) f32 residual stream, stays on-chip
    bias = bias_ref[...]              # (BT, BT) f32 block-diag causal+pad bias (hoisted)

    dn = (((1,), (1,)), ((), ()))     # contract last dims: q @ k^T without a transpose

    # N_LAYER == 2: static unroll (full scheduler visibility, static weight
    # indexing).  For deep models switch to lax.fori_loop with dynamic ref[l].
    for l in range(N_LAYER):
        # ---------------- attention ----------------
        xn = _layernorm(x, ln1g_ref[l], ln1b_ref[l])
        qkv = jnp.dot(xn.astype(jnp.bfloat16), wqkv_ref[l],
                      preferred_element_type=jnp.float32) + bqkv_ref[l]   # (BT, 3D) f32
        q = (qkv[:, 0:D_MODEL] * scale).astype(jnp.bfloat16)              # scale folded into q
        k = qkv[:, D_MODEL:2 * D_MODEL].astype(jnp.bfloat16)
        v = qkv[:, 2 * D_MODEL:3 * D_MODEL].astype(jnp.bfloat16)
        wo = wo_ref[l]                                                    # (D, D) bf16

        attn = jnp.zeros((BT, D_MODEL), jnp.float32)
        for h in range(N_HEAD):
            c0 = h * HEAD_DIM
            qh = q[:, c0:c0 + HEAD_DIM]
            kh = k[:, c0:c0 + HEAD_DIM]
            vh = v[:, c0:c0 + HEAD_DIM]
            s = lax.dot_general(qh, kh, dn,
                                preferred_element_type=jnp.float32) + bias  # (BT, BT)
            m = jnp.max(s, axis=-1, keepdims=True)
            p = jnp.exp(s - m)
            p = p * pl.reciprocal(jnp.sum(p, axis=-1, keepdims=True), approx=True)
            ctx = jnp.dot(p.astype(jnp.bfloat16), vh,
                          preferred_element_type=jnp.float32)               # (BT, hd)
            # concat(heads) @ Wo == sum_h head_h @ Wo[head-h rows]  (no lane concat)
            attn = attn + jnp.dot(ctx.astype(jnp.bfloat16),
                                  wo[c0:c0 + HEAD_DIM, :],
                                  preferred_element_type=jnp.float32)
        x = x + attn + bo_ref[l]

        # ---------------- MLP ----------------
        xn2 = _layernorm(x, ln2g_ref[l], ln2b_ref[l])
        hmid = jnp.dot(xn2.astype(jnp.bfloat16), wfc_ref[l],
                       preferred_element_type=jnp.float32) + bfc_ref[l]
        hmid = jax.nn.gelu(hmid, approximate=True)                          # gelu_new
        x = x + jnp.dot(hmid.astype(jnp.bfloat16), wproj_ref[l],
                        preferred_element_type=jnp.float32) + bproj_ref[l]

    # ------------- final LN + tied logits + masked shifted CE -------------
    hb = _layernorm(x, lnfg_ref[...], lnfb_ref[...])
    logits = jnp.dot(hb.astype(jnp.bfloat16), wte_t_ref[...],
                     preferred_element_type=jnp.float32)                    # (BT, V)

    tgt = tgt_ref[...]                                                      # (BT, 1) i32
    valid = tgt != -100
    tgt_c = jnp.where(valid, tgt, 0)
    vocab_iota = lax.broadcasted_iota(jnp.int32, (BT, V), 1)
    picked = jnp.sum(jnp.where(vocab_iota == tgt_c, logits, 0.0),
                     axis=-1, keepdims=True)                                # (BT, 1)
    m = jnp.max(logits, axis=-1, keepdims=True)
    lse = m + jnp.log(jnp.sum(jnp.exp(logits - m), axis=-1, keepdims=True))
    validf = valid.astype(jnp.float32)
    nll = (lse - picked) * validf
    total = jnp.sum(nll, axis=(0, 1), keepdims=True)
    count = jnp.sum(validf, axis=(0, 1), keepdims=True)
    loss_ref[...] = total / jnp.maximum(count, 1.0)


# ------------------------------- wrapper -------------------------------------
def _stack(layers, name, dtype=None):
    w = jnp.stack([lp[name] for lp in layers])
    return w.astype(dtype) if dtype is not None else w


def gpt2_loss_forward(params, input_ids, attention_mask, labels):
    B, T = input_ids.shape
    BT = B * T

    # Input prep (embedding gather, bias construction, label shift) stays in
    # the JAX wrapper; everything downstream is one fused Pallas call.
    pos = jnp.arange(T)
    x = (params["wte"][input_ids] + params["wpe"][pos][None, :, :]).astype(jnp.float32)
    x = x.reshape(BT, D_MODEL)

    # Block-diagonal (BT, BT) bias: 0 where same batch & causal & key is real,
    # else -1e9 (masks padding AND cross-batch attention in the flattened view).
    idx = jnp.arange(BT)
    qb, qt = idx // T, idx % T
    same_batch = qb[:, None] == qb[None, :]
    causal = qt[None, :] <= qt[:, None]
    key_real = attention_mask.reshape(BT).astype(bool)[None, :]
    bias = jnp.where(same_batch & causal & key_real, 0.0, NEG_INF).astype(jnp.float32)

    # Next-token targets: shift folded into the label array; -100 = ignored.
    shifted = jnp.concatenate(
        [labels[:, 1:], jnp.full((B, 1), -100, labels.dtype)], axis=1)
    targets = shifted.reshape(BT, 1).astype(jnp.int32)

    layers = params["layers"]
    args = (
        x, bias, targets,
        _stack(layers, "ln1_g"), _stack(layers, "ln1_b"),
        _stack(layers, "wqkv", jnp.bfloat16), _stack(layers, "bqkv"),
        _stack(layers, "wo", jnp.bfloat16), _stack(layers, "bo"),
        _stack(layers, "ln2_g"), _stack(layers, "ln2_b"),
        _stack(layers, "wfc", jnp.bfloat16), _stack(layers, "bfc"),
        _stack(layers, "wproj", jnp.bfloat16), _stack(layers, "bproj"),
        params["lnf_g"], params["lnf_b"],
        params["wte"].T.astype(jnp.bfloat16),          # (D, V) tied logits, pre-transposed
    )

    # Single invocation, whole arrays resident in VMEM (total < 0.5 MiB).
    loss = pl.pallas_call(
        _fused_forward_kernel,
        out_shape=jax.ShapeDtypeStruct((1, 1), jnp.float32),
    )(*args)
    return loss[0, 0]


# --------------------------- pure-JAX reference ------------------------------
def reference_loss(params, input_ids, attention_mask, labels):
    B, T = input_ids.shape
    h = params["wte"][input_ids] + params["wpe"][jnp.arange(T)][None]
    mask = attention_mask.astype(jnp.float32)
    row = jnp.arange(T)[:, None]
    col = jnp.arange(T)[None, :]
    causal = jnp.where(col <= row, 0.0, NEG_INF)
    scale = 1.0 / np.sqrt(HEAD_DIM)
    for lp in params["layers"]:
        outs = []
        for b in range(B):
            x = h[b]
            xn = _layernorm(x, lp["ln1_g"], lp["ln1_b"])
            qkv = xn @ lp["wqkv"] + lp["bqkv"]
            q, k, v = (qkv[:, :D_MODEL], qkv[:, D_MODEL:2 * D_MODEL],
                       qkv[:, 2 * D_MODEL:])
            bias = causal + (mask[b][None, :] - 1.0) * 1e9
            heads = []
            for hh in range(N_HEAD):
                sl = slice(hh * HEAD_DIM, (hh + 1) * HEAD_DIM)
                s = q[:, sl] @ k[:, sl].T * scale + bias
                p = jax.nn.softmax(s, axis=-1)
                heads.append(p @ v[:, sl])
            attn = jnp.concatenate(heads, -1) @ lp["wo"] + lp["bo"]
            x = x + attn
            xn2 = _layernorm(x, lp["ln2_g"], lp["ln2_b"])
            m = jax.nn.gelu(xn2 @ lp["wfc"] + lp["bfc"], approximate=True)
            outs.append(x + m @ lp["wproj"] + lp["bproj"])
        h = jnp.stack(outs)
    total, count = 0.0, 0.0
    for b in range(B):
        hb = _layernorm(h[b], params["lnf_g"], params["lnf_b"])
        logits = hb @ params["wte"].T
        ls = logits[:-1]
        lb = labels[b, 1:]
        valid = lb != -100
        lbl_c = jnp.where(valid, lb, 0)
        logprobs = jax.nn.log_softmax(ls, axis=-1)
        nll = -logprobs[jnp.arange(T - 1), lbl_c]
        total = total + jnp.sum(jnp.where(valid, nll, 0.0))
        count = count + jnp.sum(valid.astype(jnp.float32))
    return total / count


# ------------------------------ parameter init -------------------------------
def init_params(key, max_pos):
    keys = jax.random.split(key, 4 + 8 * N_LAYER)
    ki = iter(range(len(keys)))
    nrm = lambda k, shape, s=0.02: (s * jax.random.normal(k, shape)).astype(jnp.float32)
    params = {
        "wte": nrm(keys[next(ki)], (VOCAB, D_MODEL)),
        "wpe": nrm(keys[next(ki)], (max_pos, D_MODEL), 0.01),
        "lnf_g": jnp.ones((1, D_MODEL), jnp.float32),
        "lnf_b": jnp.zeros((1, D_MODEL), jnp.float32),
        "layers": [],
    }
    for _ in range(N_LAYER):
        lp = {
            "ln1_g": jnp.ones((1, D_MODEL), jnp.float32),
            "ln1_b": jnp.zeros((1, D_MODEL), jnp.float32),
            "wqkv": nrm(keys[next(ki)], (D_MODEL, 3 * D_MODEL)),
            "bqkv": jnp.zeros((1, 3 * D_MODEL), jnp.float32),
            "wo": nrm(keys[next(ki)], (D_MODEL, D_MODEL)),
            "bo": jnp.zeros((1, D_MODEL), jnp.float32),
            "ln2_g": jnp.ones((1, D_MODEL), jnp.float32),
            "ln2_b": jnp.zeros((1, D_MODEL), jnp.float32),
            "wfc": nrm(keys[next(ki)], (D_MODEL, MLP_DIM)),
            "bfc": jnp.zeros((1, MLP_DIM), jnp.float32),
            "wproj": nrm(keys[next(ki)], (MLP_DIM, D_MODEL)),
            "bproj": jnp.zeros((1, D_MODEL), jnp.float32),
        }
        params["layers"].append(lp)
    return params


# --------------------------------- driver ------------------------------------
if __name__ == "__main__":
    # TODO(synk): tokenizer.encode / pad_sequence / generate() are host-side
    # string ops with no Pallas equivalent; emulated with fixed token ids.
    goal0, dialog0 = [10, 11, 12, 13], [20, 21, 22, 23, 24, 25]
    goal1, dialog1 = [30, 31, 32, 33, 34], [40, 41, 42, 43, 44, 45, 46, 47]

    def build(goal, dialog):
        ids = [BOS_ID] + goal + [SEP_ID] + dialog + [EOS_ID]
        lbl = [-100] * (len(goal) + 2) + dialog + [EOS_ID]
        return ids, lbl

    ids0, lbl0 = build(goal0, dialog0)
    ids1, lbl1 = build(goal1, dialog1)
    T_raw = max(len(ids0), len(ids1))              # pad_sequence(batch_first=True)
    T = ((T_raw + 7) // 8) * 8                     # pad to sublane multiple (loss-neutral)

    def pad(seq, val):
        return seq + [val] * (T - len(seq))

    input_ids = jnp.array([pad(ids0, PAD_ID), pad(ids1, PAD_ID)], dtype=jnp.int32)
    labels = jnp.array([pad(lbl0, -100), pad(lbl1, -100)], dtype=jnp.int32)
    attention_mask = (input_ids != PAD_ID).astype(jnp.int32)

    params = init_params(jax.random.PRNGKey(0), max_pos=T)

    loss = jax.jit(gpt2_loss_forward)(params, input_ids, attention_mask, labels)
    loss = jax.block_until_ready(loss)

    ref = reference_loss(params, input_ids, attention_mask, labels)
    ref = jax.block_until_ready(ref)

    assert np.isfinite(np.asarray(loss)), "loss is not finite"
    assert np.allclose(np.asarray(loss), np.asarray(ref), rtol=2e-2, atol=2e-2), \
        f"mismatch: pallas={float(loss)} ref={float(ref)}"
    print("KERNEL_OK")
</pallas_src>

<mosaic_0001>
module attributes {stable_mosaic.version = 11 : i64} {
  func.func @_fused_forward_kernel(%arg0: memref<32x64xf32, #tpu.memory_space<vmem>>, %arg1: memref<32x32xf32, #tpu.memory_space<vmem>>, %arg2: memref<32x1xi32, #tpu.memory_space<vmem>>, %arg3: memref<2x1x64xf32, #tpu.memory_space<vmem>>, %arg4: memref<2x1x64xf32, #tpu.memory_space<vmem>>, %arg5: memref<2x64x192xbf16, #tpu.memory_space<vmem>>, %arg6: memref<2x1x192xf32, #tpu.memory_space<vmem>>, %arg7: memref<2x64x64xbf16, #tpu.memory_space<vmem>>, %arg8: memref<2x1x64xf32, #tpu.memory_space<vmem>>, %arg9: memref<2x1x64xf32, #tpu.memory_space<vmem>>, %arg10: memref<2x1x64xf32, #tpu.memory_space<vmem>>, %arg11: memref<2x64x256xbf16, #tpu.memory_space<vmem>>, %arg12: memref<2x1x256xf32, #tpu.memory_space<vmem>>, %arg13: memref<2x256x64xbf16, #tpu.memory_space<vmem>>, %arg14: memref<2x1x64xf32, #tpu.memory_space<vmem>>, %arg15: memref<1x64xf32, #tpu.memory_space<vmem>>, %arg16: memref<1x64xf32, #tpu.memory_space<vmem>>, %arg17: memref<64x256xbf16, #tpu.memory_space<vmem>>, %arg18: memref<1x1xf32, #tpu.memory_space<vmem>>) attributes {dimension_semantics = [], scalar_prefetch = 0 : i64, scratch_operands = 0 : i64, tpu.core_type = #tpu.core_type<tc>} {
    %c0 = arith.constant 0 : index
    %c0_0 = arith.constant 0 : index
    %0 = vector.load %arg0[%c0, %c0_0] : memref<32x64xf32, #tpu.memory_space<vmem>>, vector<32x64xf32>
    %c0_1 = arith.constant 0 : index
    %c0_2 = arith.constant 0 : index
    %1 = vector.load %arg1[%c0_1, %c0_2] : memref<32x32xf32, #tpu.memory_space<vmem>>, vector<32x32xf32>
    %c0_3 = arith.constant 0 : index
    %c0_4 = arith.constant 0 : index
    %c0_5 = arith.constant 0 : index
    %2 = vector.load %arg3[%c0_3, %c0_4, %c0_5] : memref<2x1x64xf32, #tpu.memory_space<vmem>>, vector<1x1x64xf32>
    %3 = vector.shape_cast %2 : vector<1x1x64xf32> to vector<1x64xf32>
    %c0_6 = arith.constant 0 : index
    %c0_7 = arith.constant 0 : index
    %c0_8 = arith.constant 0 : index
    %4 = vector.load %arg4[%c0_6, %c0_7, %c0_8] : memref<2x1x64xf32, #tpu.memory_space<vmem>>, vector<1x1x64xf32>
    %5 = vector.shape_cast %4 : vector<1x1x64xf32> to vector<1x64xf32>
    %cst = arith.constant dense<0.000000e+00> : vector<32xf32>
    %6 = vector.multi_reduction <add>, %0, %cst [1] : vector<32x64xf32> to vector<32xf32>
    %7 = vector.shape_cast %6 : vector<32xf32> to vector<32x1xf32>
    %cst_9 = arith.constant 6.400000e+01 : f32
    %8 = vector.broadcast %cst_9 : f32 to vector<32x1xf32>
    %9 = arith.divf %7, %8 : vector<32x1xf32>
    %10 = vector.broadcast %9 : vector<32x1xf32> to vector<32x64xf32>
    %11 = arith.subf %0, %10 : vector<32x64xf32>
    %12 = arith.mulf %11, %11 : vector<32x64xf32>
    %cst_10 = arith.constant dense<0.000000e+00> : vector<32xf32>
    %13 = vector.multi_reduction <add>, %12, %cst_10 [1] : vector<32x64xf32> to vector<32xf32>
    %14 = vector.shape_cast %13 : vector<32xf32> to vector<32x1xf32>
    %cst_11 = arith.constant 6.400000e+01 : f32
    %15 = vector.broadcast %cst_11 : f32 to vector<32x1xf32>
    %16 = arith.divf %14, %15 : vector<32x1xf32>
    %17 = vector.broadcast %9 : vector<32x1xf32> to vector<32x64xf32>
    %18 = arith.subf %0, %17 : vector<32x64xf32>
    %cst_12 = arith.constant 9.99999974E-6 : f32
    %19 = vector.broadcast %cst_12 : f32 to vector<32x1xf32>
    %20 = arith.addf %16, %19 : vector<32x1xf32>
    %21 = math.rsqrt %20 : vector<32x1xf32>
    %22 = vector.broadcast %21 : vector<32x1xf32> to vector<32x64xf32>
    %23 = arith.mulf %18, %22 : vector<32x64xf32>
    %24 = vector.broadcast %3 : vector<1x64xf32> to vector<32x64xf32>
    %25 = arith.mulf %23, %24 : vector<32x64xf32>
    %26 = vector.broadcast %5 : vector<1x64xf32> to vector<32x64xf32>
    %27 = arith.addf %25, %26 : vector<32x64xf32>
    %28 = arith.truncf %27 : vector<32x64xf32> to vector<32x64xbf16>
    %c0_13 = arith.constant 0 : index
    %c0_14 = arith.constant 0 : index
    %c0_15 = arith.constant 0 : index
    %29 = vector.load %arg5[%c0_13, %c0_14, %c0_15] : memref<2x64x192xbf16, #tpu.memory_space<vmem>>, vector<1x64x192xbf16>
    %30 = vector.shape_cast %29 : vector<1x64x192xbf16> to vector<64x192xbf16>
    %cst_16 = arith.constant dense<0.000000e+00> : vector<32x192xf32>
    %31 = tpu.matmul %28, %30, %cst_16 {dimension_numbers = #tpu.dot_dimension_numbers<[1], [0], [0], [1], [0, 0, 1, 1], [], []>} : vector<32x64xbf16>, vector<64x192xbf16>, vector<32x192xf32> -> vector<32x192xf32>
    %c0_17 = arith.constant 0 : index
    %c0_18 = arith.constant 0 : index
    %c0_19 = arith.constant 0 : index
    %32 = vector.load %arg6[%c0_17, %c0_18, %c0_19] : memref<2x1x192xf32, #tpu.memory_space<vmem>>, vector<1x1x192xf32>
    %33 = vector.shape_cast %32 : vector<1x1x192xf32> to vector<1x192xf32>
    %34 = vector.broadcast %33 : vector<1x192xf32> to vector<32x192xf32>
    %35 = arith.addf %31, %34 : vector<32x192xf32>
    %36 = vector.extract_strided_slice %35 {offsets = [0, 0], sizes = [32, 64], strides = [1, 1]} : vector<32x192xf32> to vector<32x64xf32>
    %cst_20 = arith.constant 2.500000e-01 : f32
    %37 = vector.broadcast %cst_20 : f32 to vector<32x64xf32>
    %38 = arith.mulf %36, %37 : vector<32x64xf32>
    %39 = arith.truncf %38 : vector<32x64xf32> to vector<32x64xbf16>
    %40 = vector.extract_strided_slice %35 {offsets = [0, 64], sizes = [32, 64], strides = [1, 1]} : vector<32x192xf32> to vector<32x64xf32>
    %41 = arith.truncf %40 : vector<32x64xf32> to vector<32x64xbf16>
    %42 = vector.extract_strided_slice %35 {offsets = [0, 128], sizes = [32, 64], strides = [1, 1]} : vector<32x192xf32> to vector<32x64xf32>
    %43 = arith.truncf %42 : vector<32x64xf32> to vector<32x64xbf16>
    %c0_21 = arith.constant 0 : index
    %c0_22 = arith.constant 0 : index
    %c0_23 = arith.constant 0 : index
    %44 = vector.load %arg7[%c0_21, %c0_22, %c0_23] : memref<2x64x64xbf16, #tpu.memory_space<vmem>>, vector<1x64x64xbf16>
    %45 = vector.shape_cast %44 : vector<1x64x64xbf16> to vector<64x64xbf16>
    %cst_24 = arith.constant 0.000000e+00 : f32
    %46 = vector.broadcast %cst_24 : f32 to vector<32x64xf32>
    %47 = vector.extract_strided_slice %39 {offsets = [0, 0], sizes = [32, 16], strides = [1, 1]} : vector<32x64xbf16> to vector<32x16xbf16>
    %48 = vector.extract_strided_slice %41 {offsets = [0, 0], sizes = [32, 16], strides = [1, 1]} : vector<32x64xbf16> to vector<32x16xbf16>
    %49 = vector.extract_strided_slice %43 {offsets = [0, 0], sizes = [32, 16], strides = [1, 1]} : vector<32x64xbf16> to vector<32x16xbf16>
    %cst_25 = arith.constant dense<0.000000e+00> : vector<32x32xf32>
    %50 = tpu.matmul %47, %48, %cst_25 {dimension_numbers = #tpu.dot_dimension_numbers<[1], [1], [0], [0], [0, 0, 1, 0], [], []>} : vector<32x16xbf16>, vector<32x16xbf16>, vector<32x32xf32> -> vector<32x32xf32>
    %51 = arith.addf %50, %1 : vector<32x32xf32>
    %cst_26 = arith.constant dense<0xFF800000> : vector<32xf32>
    %52 = vector.multi_reduction <maximumf>, %51, %cst_26 [1] : vector<32x32xf32> to vector<32xf32>
    %53 = vector.shape_cast %52 : vector<32xf32> to vector<32x1xf32>
    %54 = vector.broadcast %53 : vector<32x1xf32> to vector<32x32xf32>
    %55 = arith.subf %51, %54 : vector<32x32xf32>
    %56 = math.exp %55 : vector<32x32xf32>
    %cst_27 = arith.constant dense<0.000000e+00> : vector<32xf32>
    %57 = vector.multi_reduction <add>, %56, %cst_27 [1] : vector<32x32xf32> to vector<32xf32>
    %58 = vector.shape_cast %57 : vector<32xf32> to vector<32x1xf32>
    %59 = tpu.reciprocal %58 {approx = true} : vector<32x1xf32> -> vector<32x1xf32>
    %60 = vector.broadcast %59 : vector<32x1xf32> to vector<32x32xf32>
    %61 = arith.mulf %56, %60 : vector<32x32xf32>
    %62 = arith.truncf %61 : vector<32x32xf32> to vector<32x32xbf16>
    %cst_28 = arith.constant dense<0.000000e+00> : vector<32x16xf32>
    %63 = tpu.matmul %62, %49, %cst_28 {dimension_numbers = #tpu.dot_dimension_numbers<[1], [0], [0], [1], [0, 0, 1, 1], [], []>} : vector<32x32xbf16>, vector<32x16xbf16>, vector<32x16xf32> -> vector<32x16xf32>
    %64 = arith.truncf %63 : vector<32x16xf32> to vector<32x16xbf16>
    %65 = vector.extract_strided_slice %45 {offsets = [0, 0], sizes = [16, 64], strides = [1, 1]} : vector<64x64xbf16> to vector<16x64xbf16>
    %cst_29 = arith.constant dense<0.000000e+00> : vector<32x64xf32>
    %66 = tpu.matmul %64, %65, %cst_29 {dimension_numbers = #tpu.dot_dimension_numbers<[1], [0], [0], [1], [0, 0, 1, 1], [], []>} : vector<32x16xbf16>, vector<16x64xbf16>, vector<32x64xf32> -> vector<32x64xf32>
    %67 = arith.addf %46, %66 : vector<32x64xf32>
    %68 = vector.extract_strided_slice %39 {offsets = [0, 16], sizes = [32, 16], strides = [1, 1]} : vector<32x64xbf16> to vector<32x16xbf16>
    %69 = vector.extract_strided_slice %41 {offsets = [0, 16], sizes = [32, 16], strides = [1, 1]} : vector<32x64xbf16> to vector<32x16xbf16>
    %70 = vector.extract_strided_slice %43 {offsets = [0, 16], sizes = [32, 16], strides = [1, 1]} : vector<32x64xbf16> to vector<32x16xbf16>
    %cst_30 = arith.constant dense<0.000000e+00> : vector<32x32xf32>
    %71 = tpu.matmul %68, %69, %cst_30 {dimension_numbers = #tpu.dot_dimension_numbers<[1], [1], [0], [0], [0, 0, 1, 0], [], []>} : vector<32x16xbf16>, vector<32x16xbf16>, vector<32x32xf32> -> vector<32x32xf32>
    %72 = arith.addf %71, %1 : vector<32x32xf32>
    %cst_31 = arith.constant dense<0xFF800000> : vector<32xf32>
    %73 = vector.multi_reduction <maximumf>, %72, %cst_31 [1] : vector<32x32xf32> to vector<32xf32>
    %74 = vector.shape_cast %73 : vector<32xf32> to vector<32x1xf32>
    %75 = vector.broadcast %74 : vector<32x1xf32> to vector<32x32xf32>
    %76 = arith.subf %72, %75 : vector<32x32xf32>
    %77 = math.exp %76 : vector<32x32xf32>
    %cst_32 = arith.constant dense<0.000000e+00> : vector<32xf32>
    %78 = vector.multi_reduction <add>, %77, %cst_32 [1] : vector<32x32xf32> to vector<32xf32>
    %79 = vector.shape_cast %78 : vector<32xf32> to vector<32x1xf32>
    %80 = tpu.reciprocal %79 {approx = true} : vector<32x1xf32> -> vector<32x1xf32>
    %81 = vector.broadcast %80 : vector<32x1xf32> to vector<32x32xf32>
    %82 = arith.mulf %77, %81 : vector<32x32xf32>
    %83 = arith.truncf %82 : vector<32x32xf32> to vector<32x32xbf16>
    %cst_33 = arith.constant dense<0.000000e+00> : vector<32x16xf32>
    %84 = tpu.matmul %83, %70, %cst_33 {dimension_numbers = #tpu.dot_dimension_numbers<[1], [0], [0], [1], [0, 0, 1, 1], [], []>} : vector<32x32xbf16>, vector<32x16xbf16>, vector<32x16xf32> -> vector<32x16xf32>
    %85 = arith.truncf %84 : vector<32x16xf32> to vector<32x16xbf16>
    %86 = vector.extract_strided_slice %45 {offsets = [16, 0], sizes = [16, 64], strides = [1, 1]} : vector<64x64xbf16> to vector<16x64xbf16>
    %cst_34 = arith.constant dense<0.000000e+00> : vector<32x64xf32>
    %87 = tpu.matmul %85, %86, %cst_34 {dimension_numbers = #tpu.dot_dimension_numbers<[1], [0], [0], [1], [0, 0, 1, 1], [], []>} : vector<32x16xbf16>, vector<16x64xbf16>, vector<32x64xf32> -> vector<32x64xf32>
    %88 = arith.addf %67, %87 : vector<32x64xf32>
    %89 = vector.extract_strided_slice %39 {offsets = [0, 32], sizes = [32, 16], strides = [1, 1]} : vector<32x64xbf16> to vector<32x16xbf16>
    %90 = vector.extract_strided_slice %41 {offsets = [0, 32], sizes = [32, 16], strides = [1, 1]} : vector<32x64xbf16> to vector<32x16xbf16>
    %91 = vector.extract_strided_slice %43 {offsets = [0, 32], sizes = [32, 16], strides = [1, 1]} : vector<32x64xbf16> to vector<32x16xbf16>
    %cst_35 = arith.constant dense<0.000000e+00> : vector<32x32xf32>
    %92 = tpu.matmul %89, %90, %cst_35 {dimension_numbers = #tpu.dot_dimension_numbers<[1], [1], [0], [0], [0, 0, 1, 0], [], []>} : vector<32x16xbf16>, vector<32x16xbf16>, vector<32x32xf32> -> vector<32x32xf32>
    %93 = arith.addf %92, %1 : vector<32x32xf32>
    %cst_36 = arith.constant dense<0xFF800000> : vector<32xf32>
    %94 = vector.multi_reduction <maximumf>, %93, %cst_36 [1] : vector<32x32xf32> to vector<32xf32>
    %95 = vector.shape_cast %94 : vector<32xf32> to vector<32x1xf32>
    %96 = vector.broadcast %95 : vector<32x1xf32> to vector<32x32xf32>
    %97 = arith.subf %93, %96 : vector<32x32xf32>
    %98 = math.exp %97 : vector<32x32xf32>
    %cst_37 = arith.constant dense<0.000000e+00> : vector<32xf32>
    %99 = vector.multi_reduction <add>, %98, %cst_37 [1] : vector<32x32xf32> to vector<32xf32>
    %100 = vector.shape_cast %99 : vector<32xf32> to vector<32x1xf32>
    %101 = tpu.reciprocal %100 {approx = true} : vector<32x1xf32> -> vector<32x1xf32>
    %102 = vector.broadcast %101 : vector<32x1xf32> to vector<32x32xf32>
    %103 = arith.mulf %98, %102 : vector<32x32xf32>
    %104 = arith.truncf %103 : vector<32x32xf32> to vector<32x32xbf16>
    %cst_38 = arith.constant dense<0.000000e+00> : vector<32x16xf32>
    %105 = tpu.matmul %104, %91, %cst_38 {dimension_numbers = #tpu.dot_dimension_numbers<[1], [0], [0], [1], [0, 0, 1, 1], [], []>} : vector<32x32xbf16>, vector<32x16xbf16>, vector<32x16xf32> -> vector<32x16xf32>
    %106 = arith.truncf %105 : vector<32x16xf32> to vector<32x16xbf16>
    %107 = vector.extract_strided_slice %45 {offsets = [32, 0], sizes = [16, 64], strides = [1, 1]} : vector<64x64xbf16> to vector<16x64xbf16>
    %cst_39 = arith.constant dense<0.000000e+00> : vector<32x64xf32>
    %108 = tpu.matmul %106, %107, %cst_39 {dimension_numbers = #tpu.dot_dimension_numbers<[1], [0], [0], [1], [0, 0, 1, 1], [], []>} : vector<32x16xbf16>, vector<16x64xbf16>, vector<32x64xf32> -> vector<32x64xf32>
    %109 = arith.addf %88, %108 : vector<32x64xf32>
    %110 = vector.extract_strided_slice %39 {offsets = [0, 48], sizes = [32, 16], strides = [1, 1]} : vector<32x64xbf16> to vector<32x16xbf16>
    %111 = vector.extract_strided_slice %41 {offsets = [0, 48], sizes = [32, 16], strides = [1, 1]} : vector<32x64xbf16> to vector<32x16xbf16>
    %112 = vector.extract_strided_slice %43 {offsets = [0, 48], sizes = [32, 16], strides = [1, 1]} : vector<32x64xbf16> to vector<32x16xbf16>
    %cst_40 = arith.constant dense<0.000000e+00> : vector<32x32xf32>
    %113 = tpu.matmul %110, %111, %cst_40 {dimension_numbers = #tpu.dot_dimension_numbers<[1], [1], [0], [0], [0, 0, 1, 0], [], []>} : vector<32x16xbf16>, vector<32x16xbf16>, vector<32x32xf32> -> vector<32x32xf32>
    %114 = arith.addf %113, %1 : vector<32x32xf32>
    %cst_41 = arith.constant dense<0xFF800000> : vector<32xf32>
    %115 = vector.multi_reduction <maximumf>, %114, %cst_41 [1] : vector<32x32xf32> to vector<32xf32>
    %116 = vector.shape_cast %115 : vector<32xf32> to vector<32x1xf32>
    %117 = vector.broadcast %116 : vector<32x1xf32> to vector<32x32xf32>
    %118 = arith.subf %114, %117 : vector<32x32xf32>
    %119 = math.exp %118 : vector<32x32xf32>
    %cst_42 = arith.constant dense<0.000000e+00> : vector<32xf32>
    %120 = vector.multi_reduction <add>, %119, %cst_42 [1] : vector<32x32xf32> to vector<32xf32>
    %121 = vector.shape_cast %120 : vector<32xf32> to vector<32x1xf32>
    %122 = tpu.reciprocal %121 {approx = true} : vector<32x1xf32> -> vector<32x1xf32>
    %123 = vector.broadcast %122 : vector<32x1xf32> to vector<32x32xf32>
    %124 = arith.mulf %119, %123 : vector<32x32xf32>
    %125 = arith.truncf %124 : vector<32x32xf32> to vector<32x32xbf16>
    %cst_43 = arith.constant dense<0.000000e+00> : vector<32x16xf32>
    %126 = tpu.matmul %125, %112, %cst_43 {dimension_numbers = #tpu.dot_dimension_numbers<[1], [0], [0], [1], [0, 0, 1, 1], [], []>} : vector<32x32xbf16>, vector<32x16xbf16>, vector<32x16xf32> -> vector<32x16xf32>
    %127 = arith.truncf %126 : vector<32x16xf32> to vector<32x16xbf16>
    %128 = vector.extract_strided_slice %45 {offsets = [48, 0], sizes = [16, 64], strides = [1, 1]} : vector<64x64xbf16> to vector<16x64xbf16>
    %cst_44 = arith.constant dense<0.000000e+00> : vector<32x64xf32>
    %129 = tpu.matmul %127, %128, %cst_44 {dimension_numbers = #tpu.dot_dimension_numbers<[1], [0], [0], [1], [0, 0, 1, 1], [], []>} : vector<32x16xbf16>, vector<16x64xbf16>, vector<32x64xf32> -> vector<32x64xf32>
    %130 = arith.addf %109, %129 : vector<32x64xf32>
    %131 = arith.addf %0, %130 : vector<32x64xf32>
    %c0_45 = arith.constant 0 : index
    %c0_46 = arith.constant 0 : index
    %c0_47 = arith.constant 0 : index
    %132 = vector.load %arg8[%c0_45, %c0_46, %c0_47] : memref<2x1x64xf32, #tpu.memory_space<vmem>>, vector<1x1x64xf32>
    %133 = vector.shape_cast %132 : vector<1x1x64xf32> to vector<1x64xf32>
    %134 = vector.broadcast %133 : vector<1x64xf32> to vector<32x64xf32>
    %135 = arith.addf %131, %134 : vector<32x64xf32>
    %c0_48 = arith.constant 0 : index
    %c0_49 = arith.constant 0 : index
    %c0_50 = arith.constant 0 : index
    %136 = vector.load %arg9[%c0_48, %c0_49, %c0_50] : memref<2x1x64xf32, #tpu.memory_space<vmem>>, vector<1x1x64xf32>
    %137 = vector.shape_cast %136 : vector<1x1x64xf32> to vector<1x64xf32>
    %c0_51 = arith.constant 0 : index
    %c0_52 = arith.constant 0 : index
    %c0_53 = arith.constant 0 : index
    %138 = vector.load %arg10[%c0_51, %c0_52, %c0_53] : memref<2x1x64xf32, #tpu.memory_space<vmem>>, vector<1x1x64xf32>
    %139 = vector.shape_cast %138 : vector<1x1x64xf32> to vector<1x64xf32>
    %cst_54 = arith.constant dense<0.000000e+00> : vector<32xf32>
    %140 = vector.multi_reduction <add>, %135, %cst_54 [1] : vector<32x64xf32> to vector<32xf32>
    %141 = vector.shape_cast %140 : vector<32xf32> to vector<32x1xf32>
    %cst_55 = arith.constant 6.400000e+01 : f32
    %142 = vector.broadcast %cst_55 : f32 to vector<32x1xf32>
    %143 = arith.divf %141, %142 : vector<32x1xf32>
    %144 = vector.broadcast %143 : vector<32x1xf32> to vector<32x64xf32>
    %145 = arith.subf %135, %144 : vector<32x64xf32>
    %146 = arith.mulf %145, %145 : vector<32x64xf32>
    %cst_56 = arith.constant dense<0.000000e+00> : vector<32xf32>
    %147 = vector.multi_reduction <add>, %146, %cst_56 [1] : vector<32x64xf32> to vector<32xf32>
    %148 = vector.shape_cast %147 : vector<32xf32> to vector<32x1xf32>
    %cst_57 = arith.constant 6.400000e+01 : f32
    %149 = vector.broadcast %cst_57 : f32 to vector<32x1xf32>
    %150 = arith.divf %148, %149 : vector<32x1xf32>
    %151 = vector.broadcast %143 : vector<32x1xf32> to vector<32x64xf32>
    %152 = arith.subf %135, %151 : vector<32x64xf32>
    %cst_58 = arith.constant 9.99999974E-6 : f32
    %153 = vector.broadcast %cst_58 : f32 to vector<32x1xf32>
    %154 = arith.addf %150, %153 : vector<32x1xf32>
    %155 = math.rsqrt %154 : vector<32x1xf32>
    %156 = vector.broadcast %155 : vector<32x1xf32> to vector<32x64xf32>
    %157 = arith.mulf %152, %156 : vector<32x64xf32>
    %158 = vector.broadcast %137 : vector<1x64xf32> to vector<32x64xf32>
    %159 = arith.mulf %157, %158 : vector<32x64xf32>
    %160 = vector.broadcast %139 : vector<1x64xf32> to vector<32x64xf32>
    %161 = arith.addf %159, %160 : vector<32x64xf32>
    %162 = arith.truncf %161 : vector<32x64xf32> to vector<32x64xbf16>
    %c0_59 = arith.constant 0 : index
    %c0_60 = arith.constant 0 : index
    %c0_61 = arith.constant 0 : index
    %163 = vector.load %arg11[%c0_59, %c0_60, %c0_61] : memref<2x64x256xbf16, #tpu.memory_space<vmem>>, vector<1x64x256xbf16>
    %164 = vector.shape_cast %163 : vector<1x64x256xbf16> to vector<64x256xbf16>
    %cst_62 = arith.constant dense<0.000000e+00> : vector<32x256xf32>
    %165 = tpu.matmul %162, %164, %cst_62 {dimension_numbers = #tpu.dot_dimension_numbers<[1], [0], [0], [1], [0, 0, 1, 1], [], []>} : vector<32x64xbf16>, vector<64x256xbf16>, vector<32x256xf32> -> vector<32x256xf32>
    %c0_63 = arith.constant 0 : index
    %c0_64 = arith.constant 0 : index
    %c0_65 = arith.constant 0 : index
    %166 = vector.load %arg12[%c0_63, %c0_64, %c0_65] : memref<2x1x256xf32, #tpu.memory_space<vmem>>, vector<1x1x256xf32>
    %167 = vector.shape_cast %166 : vector<1x1x256xf32> to vector<1x256xf32>
    %168 = vector.broadcast %167 : vector<1x256xf32> to vector<32x256xf32>
    %169 = arith.addf %165, %168 : vector<32x256xf32>
    %170 = arith.mulf %169, %169 : vector<32x256xf32>
    %171 = arith.mulf %169, %170 : vector<32x256xf32>
    %cst_66 = arith.constant 4.471500e-02 : f32
    %172 = vector.broadcast %cst_66 : f32 to vector<32x256xf32>
    %173 = arith.mulf %172, %171 : vector<32x256xf32>
    %174 = arith.addf %169, %173 : vector<32x256xf32>
    %cst_67 = arith.constant 0.797884583 : f32
    %175 = vector.broadcast %cst_67 : f32 to vector<32x256xf32>
    %176 = arith.mulf %175, %174 : vector<32x256xf32>
    %177 = math.tanh %176 : vector<32x256xf32>
    %cst_68 = arith.constant 1.000000e+00 : f32
    %178 = vector.broadcast %cst_68 : f32 to vector<32x256xf32>
    %179 = arith.addf %178, %177 : vector<32x256xf32>
    %cst_69 = arith.constant 5.000000e-01 : f32
    %180 = vector.broadcast %cst_69 : f32 to vector<32x256xf32>
    %181 = arith.mulf %180, %179 : vector<32x256xf32>
    %182 = arith.mulf %169, %181 : vector<32x256xf32>
    %183 = arith.truncf %182 : vector<32x256xf32> to vector<32x256xbf16>
    %c0_70 = arith.constant 0 : index
    %c0_71 = arith.constant 0 : index
    %c0_72 = arith.constant 0 : index
    %184 = vector.load %arg13[%c0_70, %c0_71, %c0_72] : memref<2x256x64xbf16, #tpu.memory_space<vmem>>, vector<1x256x64xbf16>
    %185 = vector.shape_cast %184 : vector<1x256x64xbf16> to vector<256x64xbf16>
    %cst_73 = arith.constant dense<0.000000e+00> : vector<32x64xf32>
    %186 = tpu.matmul %183, %185, %cst_73 {dimension_numbers = #tpu.dot_dimension_numbers<[1], [0], [0], [1], [0, 0, 1, 1], [], []>} : vector<32x256xbf16>, vector<256x64xbf16>, vector<32x64xf32> -> vector<32x64xf32>
    %187 = arith.addf %135, %186 : vector<32x64xf32>
    %c0_74 = arith.constant 0 : index
    %c0_75 = arith.constant 0 : index
    %c0_76 = arith.constant 0 : index
    %188 = vector.load %arg14[%c0_74, %c0_75, %c0_76] : memref<2x1x64xf32, #tpu.memory_space<vmem>>, vector<1x1x64xf32>
    %189 = vector.shape_cast %188 : vector<1x1x64xf32> to vector<1x64xf32>
    %190 = vector.broadcast %189 : vector<1x64xf32> to vector<32x64xf32>
    %191 = arith.addf %187, %190 : vector<32x64xf32>
    %c1 = arith.constant 1 : index
    %c0_77 = arith.constant 0 : index
    %c0_78 = arith.constant 0 : index
    %192 = vector.load %arg3[%c1, %c0_77, %c0_78] : memref<2x1x64xf32, #tpu.memory_space<vmem>>, vector<1x1x64xf32>
    %193 = vector.shape_cast %192 : vector<1x1x64xf32> to vector<1x64xf32>
    %c1_79 = arith.constant 1 : index
    %c0_80 = arith.constant 0 : index
    %c0_81 = arith.constant 0 : index
    %194 = vector.load %arg4[%c1_79, %c0_80, %c0_81] : memref<2x1x64xf32, #tpu.memory_space<vmem>>, vector<1x1x64xf32>
    %195 = vector.shape_cast %194 : vector<1x1x64xf32> to vector<1x64xf32>
    %cst_82 = arith.constant dense<0.000000e+00> : vector<32xf32>
    %196 = vector.multi_reduction <add>, %191, %cst_82 [1] : vector<32x64xf32> to vector<32xf32>
    %197 = vector.shape_cast %196 : vector<32xf32> to vector<32x1xf32>
    %cst_83 = arith.constant 6.400000e+01 : f32
    %198 = vector.broadcast %cst_83 : f32 to vector<32x1xf32>
    %199 = arith.divf %197, %198 : vector<32x1xf32>
    %200 = vector.broadcast %199 : vector<32x1xf32> to vector<32x64xf32>
    %201 = arith.subf %191, %200 : vector<32x64xf32>
    %202 = arith.mulf %201, %201 : vector<32x64xf32>
    %cst_84 = arith.constant dense<0.000000e+00> : vector<32xf32>
    %203 = vector.multi_reduction <add>, %202, %cst_84 [1] : vector<32x64xf32> to vector<32xf32>
    %204 = vector.shape_cast %203 : vector<32xf32> to vector<32x1xf32>
    %cst_85 = arith.constant 6.400000e+01 : f32
    %205 = vector.broadcast %cst_85 : f32 to vector<32x1xf32>
    %206 = arith.divf %204, %205 : vector<32x1xf32>
    %207 = vector.broadcast %199 : vector<32x1xf32> to vector<32x64xf32>
    %208 = arith.subf %191, %207 : vector<32x64xf32>
    %cst_86 = arith.constant 9.99999974E-6 : f32
    %209 = vector.broadcast %cst_86 : f32 to vector<32x1xf32>
    %210 = arith.addf %206, %209 : vector<32x1xf32>
    %211 = math.rsqrt %210 : vector<32x1xf32>
    %212 = vector.broadcast %211 : vector<32x1xf32> to vector<32x64xf32>
    %213 = arith.mulf %208, %212 : vector<32x64xf32>
    %214 = vector.broadcast %193 : vector<1x64xf32> to vector<32x64xf32>
    %215 = arith.mulf %213, %214 : vector<32x64xf32>
    %216 = vector.broadcast %195 : vector<1x64xf32> to vector<32x64xf32>
    %217 = arith.addf %215, %216 : vector<32x64xf32>
    %218 = arith.truncf %217 : vector<32x64xf32> to vector<32x64xbf16>
    %c1_87 = arith.constant 1 : index
    %c0_88 = arith.constant 0 : index
    %c0_89 = arith.constant 0 : index
    %219 = vector.load %arg5[%c1_87, %c0_88, %c0_89] : memref<2x64x192xbf16, #tpu.memory_space<vmem>>, vector<1x64x192xbf16>
    %220 = vector.shape_cast %219 : vector<1x64x192xbf16> to vector<64x192xbf16>
    %cst_90 = arith.constant dense<0.000000e+00> : vector<32x192xf32>
    %221 = tpu.matmul %218, %220, %cst_90 {dimension_numbers = #tpu.dot_dimension_numbers<[1], [0], [0], [1], [0, 0, 1, 1], [], []>} : vector<32x64xbf16>, vector<64x192xbf16>, vector<32x192xf32> -> vector<32x192xf32>
    %c1_91 = arith.constant 1 : index
    %c0_92 = arith.constant 0 : index
    %c0_93 = arith.constant 0 : index
    %222 = vector.load %arg6[%c1_91, %c0_92, %c0_93] : memref<2x1x192xf32, #tpu.memory_space<vmem>>, vector<1x1x192xf32>
    %223 = vector.shape_cast %222 : vector<1x1x192xf32> to vector<1x192xf32>
    %224 = vector.broadcast %223 : vector<1x192xf32> to vector<32x192xf32>
    %225 = arith.addf %221, %224 : vector<32x192xf32>
    %226 = vector.extract_strided_slice %225 {offsets = [0, 0], sizes = [32, 64], strides = [1, 1]} : vector<32x192xf32> to vector<32x64xf32>
    %cst_94 = arith.constant 2.500000e-01 : f32
    %227 = vector.broadcast %cst_94 : f32 to vector<32x64xf32>
    %228 = arith.mulf %226, %227 : vector<32x64xf32>
    %229 = arith.truncf %228 : vector<32x64xf32> to vector<32x64xbf16>
    %230 = vector.extract_strided_slice %225 {offsets = [0, 64], sizes = [32, 64], strides = [1, 1]} : vector<32x192xf32> to vector<32x64xf32>
    %231 = arith.truncf %230 : vector<32x64xf32> to vector<32x64xbf16>
    %232 = vector.extract_strided_slice %225 {offsets = [0, 128], sizes = [32, 64], strides = [1, 1]} : vector<32x192xf32> to vector<32x64xf32>
    %233 = arith.truncf %232 : vector<32x64xf32> to vector<32x64xbf16>
    %c1_95 = arith.constant 1 : index
    %c0_96 = arith.constant 0 : index
    %c0_97 = arith.constant 0 : index
    %234 = vector.load %arg7[%c1_95, %c0_96, %c0_97] : memref<2x64x64xbf16, #tpu.memory_space<vmem>>, vector<1x64x64xbf16>
    %235 = vector.shape_cast %234 : vector<1x64x64xbf16> to vector<64x64xbf16>
    %cst_98 = arith.constant 0.000000e+00 : f32
    %236 = vector.broadcast %cst_98 : f32 to vector<32x64xf32>
    %237 = vector.extract_strided_slice %229 {offsets = [0, 0], sizes = [32, 16], strides = [1, 1]} : vector<32x64xbf16> to vector<32x16xbf16>
    %238 = vector.extract_strided_slice %231 {offsets = [0, 0], sizes = [32, 16], strides = [1, 1]} : vector<32x64xbf16> to vector<32x16xbf16>
    %239 = vector.extract_strided_slice %233 {offsets = [0, 0], sizes = [32, 16], strides = [1, 1]} : vector<32x64xbf16> to vector<32x16xbf16>
    %cst_99 = arith.constant dense<0.000000e+00> : vector<32x32xf32>
    %240 = tpu.matmul %237, %238, %cst_99 {dimension_numbers = #tpu.dot_dimension_numbers<[1], [1], [0], [0], [0, 0, 1, 0], [], []>} : vector<32x16xbf16>, vector<32x16xbf16>, vector<32x32xf32> -> vector<32x32xf32>
    %241 = arith.addf %240, %1 : vector<32x32xf32>
    %cst_100 = arith.constant dense<0xFF800000> : vector<32xf32>
    %242 = vector.multi_reduction <maximumf>, %241, %cst_100 [1] : vector<32x32xf32> to vector<32xf32>
    %243 = vector.shape_cast %242 : vector<32xf32> to vector<32x1xf32>
    %244 = vector.broadcast %243 : vector<32x1xf32> to vector<32x32xf32>
    %245 = arith.subf %241, %244 : vector<32x32xf32>
    %246 = math.exp %245 : vector<32x32xf32>
    %cst_101 = arith.constant dense<0.000000e+00> : vector<32xf32>
    %247 = vector.multi_reduction <add>, %246, %cst_101 [1] : vector<32x32xf32> to vector<32xf32>
    %248 = vector.shape_cast %247 : vector<32xf32> to vector<32x1xf32>
    %249 = tpu.reciprocal %248 {approx = true} : vector<32x1xf32> -> vector<32x1xf32>
    %250 = vector.broadcast %249 : vector<32x1xf32> to vector<32x32xf32>
    %251 = arith.mulf %246, %250 : vector<32x32xf32>
    %252 = arith.truncf %251 : vector<32x32xf32> to vector<32x32xbf16>
    %cst_102 = arith.constant dense<0.000000e+00> : vector<32x16xf32>
    %253 = tpu.matmul %252, %239, %cst_102 {dimension_numbers = #tpu.dot_dimension_numbers<[1], [0], [0], [1], [0, 0, 1, 1], [], []>} : vector<32x32xbf16>, vector<32x16xbf16>, vector<32x16xf32> -> vector<32x16xf32>
    %254 = arith.truncf %253 : vector<32x16xf32> to vector<32x16xbf16>
    %255 = vector.extract_strided_slice %235 {offsets = [0, 0], sizes = [16, 64], strides = [1, 1]} : vector<64x64xbf16> to vector<16x64xbf16>
    %cst_103 = arith.constant dense<0.000000e+00> : vector<32x64xf32>
    %256 = tpu.matmul %254, %255, %cst_103 {dimension_numbers = #tpu.dot_dimension_numbers<[1], [0], [0], [1], [0, 0, 1, 1], [], []>} : vector<32x16xbf16>, vector<16x64xbf16>, vector<32x64xf32> -> vector<32x64xf32>
    %257 = arith.addf %236, %256 : vector<32x64xf32>
    %258 = vector.extract_strided_slice %229 {offsets = [0, 16], sizes = [32, 16], strides = [1, 1]} : vector<32x64xbf16> to vector<32x16xbf16>
    %259 = vector.extract_strided_slice %231 {offsets = [0, 16], sizes = [32, 16], strides = [1, 1]} : vector<32x64xbf16> to vector<32x16xbf16>
    %260 = vector.extract_strided_slice %233 {offsets = [0, 16], sizes = [32, 16], strides = [1, 1]} : vector<32x64xbf16> to vector<32x16xbf16>
    %cst_104 = arith.constant dense<0.000000e+00> : vector<32x32xf32>
    %261 = tpu.matmul %258, %259, %cst_104 {dimension_numbers = #tpu.dot_dimension_numbers<[1], [1], [0], [0], [0, 0, 1, 0], [], []>} : vector<32x16xbf16>, vector<32x16xbf16>, vector<32x32xf32> -> vector<32x32xf32>
    %262 = arith.addf %261, %1 : vector<32x32xf32>
    %cst_105 = arith.constant dense<0xFF800000> : vector<32xf32>
    %263 = vector.multi_reduction <maximumf>, %262, %cst_105 [1] : vector<32x32xf32> to vector<32xf32>
    %264 = vector.shape_cast %263 : vector<32xf32> to vector<32x1xf32>
    %265 = vector.broadcast %264 : vector<32x1xf32> to vector<32x32xf32>
    %266 = arith.subf %262, %265 : vector<32x32xf32>
    %267 = math.exp %266 : vector<32x32xf32>
    %cst_106 = arith.constant dense<0.000000e+00> : vector<32xf32>
    %268 = vector.multi_reduction <add>, %267, %cst_106 [1] : vector<32x32xf32> to vector<32xf32>
    %269 = vector.shape_cast %268 : vector<32xf32> to vector<32x1xf32>
    %270 = tpu.reciprocal %269 {approx = true} : vector<32x1xf32> -> vector<32x1xf32>
    %271 = vector.broadcast %270 : vector<32x1xf32> to vector<32x32xf32>
    %272 = arith.mulf %267, %271 : vector<32x32xf32>
    %273 = arith.truncf %272 : vector<32x32xf32> to vector<32x32xbf16>
    %cst_107 = arith.constant dense<0.000000e+00> : vector<32x16xf32>
    %274 = tpu.matmul %273, %260, %cst_107 {dimension_numbers = #tpu.dot_dimension_numbers<[1], [0], [0], [1], [0, 0, 1, 1], [], []>} : vector<32x32xbf16>, vector<32x16xbf16>, vector<32x16xf32> -> vector<32x16xf32>
    %275 = arith.truncf %274 : vector<32x16xf32> to vector<32x16xbf16>
    %276 = vector.extract_strided_slice %235 {offsets = [16, 0], sizes = [16, 64], strides = [1, 1]} : vector<64x64xbf16> to vector<16x64xbf16>
    %cst_108 = arith.constant dense<0.000000e+00> : vector<32x64xf32>
    %277 = tpu.matmul %275, %276, %cst_108 {dimension_numbers = #tpu.dot_dimension_numbers<[1], [0], [0], [1], [0, 0, 1, 1], [], []>} : vector<32x16xbf16>, vector<16x64xbf16>, vector<32x64xf32> -> vector<32x64xf32>
    %278 = arith.addf %257, %277 : vector<32x64xf32>
    %279 = vector.extract_strided_slice %229 {offsets = [0, 32], sizes = [32, 16], strides = [1, 1]} : vector<32x64xbf16> to vector<32x16xbf16>
    %280 = vector.extract_strided_slice %231 {offsets = [0, 32], sizes = [32, 16], strides = [1, 1]} : vector<32x64xbf16> to vector<32x16xbf16>
    %281 = vector.extract_strided_slice %233 {offsets = [0, 32], sizes = [32, 16], strides = [1, 1]} : vector<32x64xbf16> to vector<32x16xbf16>
    %cst_109 = arith.constant dense<0.000000e+00> : vector<32x32xf32>
    %282 = tpu.matmul %279, %280, %cst_109 {dimension_numbers = #tpu.dot_dimension_numbers<[1], [1], [0], [0], [0, 0, 1, 0], [], []>} : vector<32x16xbf16>, vector<32x16xbf16>, vector<32x32xf32> -> vector<32x32xf32>
    %283 = arith.addf %282, %1 : vector<32x32xf32>
    %cst_110 = arith.constant dense<0xFF800000> : vector<32xf32>
    %284 = vector.multi_reduction <maximumf>, %283, %cst_110 [1] : vector<32x32xf32> to vector<32xf32>
    %285 = vector.shape_cast %284 : vector<32xf32> to vector<32x1xf32>
    %286 = vector.broadcast %285 : vector<32x1xf32> to vector<32x32xf32>
    %287 = arith.subf %283, %286 : vector<32x32xf32>
    %288 = math.exp %287 : vector<32x32xf32>
    %cst_111 = arith.constant dense<0.000000e+00> : vector<32xf32>
    %289 = vector.multi_reduction <add>, %288, %cst_111 [1] : vector<32x32xf32> to vector<32xf32>
    %290 = vector.shape_cast %289 : vector<32xf32> to vector<32x1xf32>
    %291 = tpu.reciprocal %290 {approx = true} : vector<32x1xf32> -> vector<32x1xf32>
    %292 = vector.broadcast %291 : vector<32x1xf32> to vector<32x32xf32>
    %293 = arith.mulf %288, %292 : vector<32x32xf32>
    %294 = arith.truncf %293 : vector<32x32xf32> to vector<32x32xbf16>
    %cst_112 = arith.constant dense<0.000000e+00> : vector<32x16xf32>
    %295 = tpu.matmul %294, %281, %cst_112 {dimension_numbers = #tpu.dot_dimension_numbers<[1], [0], [0], [1], [0, 0, 1, 1], [], []>} : vector<32x32xbf16>, vector<32x16xbf16>, vector<32x16xf32> -> vector<32x16xf32>
    %296 = arith.truncf %295 : vector<32x16xf32> to vector<32x16xbf16>
    %297 = vector.extract_strided_slice %235 {offsets = [32, 0], sizes = [16, 64], strides = [1, 1]} : vector<64x64xbf16> to vector<16x64xbf16>
    %cst_113 = arith.constant dense<0.000000e+00> : vector<32x64xf32>
    %298 = tpu.matmul %296, %297, %cst_113 {dimension_numbers = #tpu.dot_dimension_numbers<[1], [0], [0], [1], [0, 0, 1, 1], [], []>} : vector<32x16xbf16>, vector<16x64xbf16>, vector<32x64xf32> -> vector<32x64xf32>
    %299 = arith.addf %278, %298 : vector<32x64xf32>
    %300 = vector.extract_strided_slice %229 {offsets = [0, 48], sizes = [32, 16], strides = [1, 1]} : vector<32x64xbf16> to vector<32x16xbf16>
    %301 = vector.extract_strided_slice %231 {offsets = [0, 48], sizes = [32, 16], strides = [1, 1]} : vector<32x64xbf16> to vector<32x16xbf16>
    %302 = vector.extract_strided_slice %233 {offsets = [0, 48], sizes = [32, 16], strides = [1, 1]} : vector<32x64xbf16> to vector<32x16xbf16>
    %cst_114 = arith.constant dense<0.000000e+00> : vector<32x32xf32>
    %303 = tpu.matmul %300, %301, %cst_114 {dimension_numbers = #tpu.dot_dimension_numbers<[1], [1], [0], [0], [0, 0, 1, 0], [], []>} : vector<32x16xbf16>, vector<32x16xbf16>, vector<32x32xf32> -> vector<32x32xf32>
    %304 = arith.addf %303, %1 : vector<32x32xf32>
    %cst_115 = arith.constant dense<0xFF800000> : vector<32xf32>
    %305 = vector.multi_reduction <maximumf>, %304, %cst_115 [1] : vector<32x32xf32> to vector<32xf32>
    %306 = vector.shape_cast %305 : vector<32xf32> to vector<32x1xf32>
    %307 = vector.broadcast %306 : vector<32x1xf32> to vector<32x32xf32>
    %308 = arith.subf %304, %307 : vector<32x32xf32>
    %309 = math.exp %308 : vector<32x32xf32>
    %cst_116 = arith.constant dense<0.000000e+00> : vector<32xf32>
    %310 = vector.multi_reduction <add>, %309, %cst_116 [1] : vector<32x32xf32> to vector<32xf32>
    %311 = vector.shape_cast %310 : vector<32xf32> to vector<32x1xf32>
    %312 = tpu.reciprocal %311 {approx = true} : vector<32x1xf32> -> vector<32x1xf32>
    %313 = vector.broadcast %312 : vector<32x1xf32> to vector<32x32xf32>
    %314 = arith.mulf %309, %313 : vector<32x32xf32>
    %315 = arith.truncf %314 : vector<32x32xf32> to vector<32x32xbf16>
    %cst_117 = arith.constant dense<0.000000e+00> : vector<32x16xf32>
    %316 = tpu.matmul %315, %302, %cst_117 {dimension_numbers = #tpu.dot_dimension_numbers<[1], [0], [0], [1], [0, 0, 1, 1], [], []>} : vector<32x32xbf16>, vector<32x16xbf16>, vector<32x16xf32> -> vector<32x16xf32>
    %317 = arith.truncf %316 : vector<32x16xf32> to vector<32x16xbf16>
    %318 = vector.extract_strided_slice %235 {offsets = [48, 0], sizes = [16, 64], strides = [1, 1]} : vector<64x64xbf16> to vector<16x64xbf16>
    %cst_118 = arith.constant dense<0.000000e+00> : vector<32x64xf32>
    %319 = tpu.matmul %317, %318, %cst_118 {dimension_numbers = #tpu.dot_dimension_numbers<[1], [0], [0], [1], [0, 0, 1, 1], [], []>} : vector<32x16xbf16>, vector<16x64xbf16>, vector<32x64xf32> -> vector<32x64xf32>
    %320 = arith.addf %299, %319 : vector<32x64xf32>
    %321 = arith.addf %191, %320 : vector<32x64xf32>
    %c1_119 = arith.constant 1 : index
    %c0_120 = arith.constant 0 : index
    %c0_121 = arith.constant 0 : index
    %322 = vector.load %arg8[%c1_119, %c0_120, %c0_121] : memref<2x1x64xf32, #tpu.memory_space<vmem>>, vector<1x1x64xf32>
    %323 = vector.shape_cast %322 : vector<1x1x64xf32> to vector<1x64xf32>
    %324 = vector.broadcast %323 : vector<1x64xf32> to vector<32x64xf32>
    %325 = arith.addf %321, %324 : vector<32x64xf32>
    %c1_122 = arith.constant 1 : index
    %c0_123 = arith.constant 0 : index
    %c0_124 = arith.constant 0 : index
    %326 = vector.load %arg9[%c1_122, %c0_123, %c0_124] : memref<2x1x64xf32, #tpu.memory_space<vmem>>, vector<1x1x64xf32>
    %327 = vector.shape_cast %326 : vector<1x1x64xf32> to vector<1x64xf32>
    %c1_125 = arith.constant 1 : index
    %c0_126 = arith.constant 0 : index
    %c0_127 = arith.constant 0 : index
    %328 = vector.load %arg10[%c1_125, %c0_126, %c0_127] : memref<2x1x64xf32, #tpu.memory_space<vmem>>, vector<1x1x64xf32>
    %329 = vector.shape_cast %328 : vector<1x1x64xf32> to vector<1x64xf32>
    %cst_128 = arith.constant dense<0.000000e+00> : vector<32xf32>
    %330 = vector.multi_reduction <add>, %325, %cst_128 [1] : vector<32x64xf32> to vector<32xf32>
    %331 = vector.shape_cast %330 : vector<32xf32> to vector<32x1xf32>
    %cst_129 = arith.constant 6.400000e+01 : f32
    %332 = vector.broadcast %cst_129 : f32 to vector<32x1xf32>
    %333 = arith.divf %331, %332 : vector<32x1xf32>
    %334 = vector.broadcast %333 : vector<32x1xf32> to vector<32x64xf32>
    %335 = arith.subf %325, %334 : vector<32x64xf32>
    %336 = arith.mulf %335, %335 : vector<32x64xf32>
    %cst_130 = arith.constant dense<0.000000e+00> : vector<32xf32>
    %337 = vector.multi_reduction <add>, %336, %cst_130 [1] : vector<32x64xf32> to vector<32xf32>
    %338 = vector.shape_cast %337 : vector<32xf32> to vector<32x1xf32>
    %cst_131 = arith.constant 6.400000e+01 : f32
    %339 = vector.broadcast %cst_131 : f32 to vector<32x1xf32>
    %340 = arith.divf %338, %339 : vector<32x1xf32>
    %341 = vector.broadcast %333 : vector<32x1xf32> to vector<32x64xf32>
    %342 = arith.subf %325, %341 : vector<32x64xf32>
    %cst_132 = arith.constant 9.99999974E-6 : f32
    %343 = vector.broadcast %cst_132 : f32 to vector<32x1xf32>
    %344 = arith.addf %340, %343 : vector<32x1xf32>
    %345 = math.rsqrt %344 : vector<32x1xf32>
    %346 = vector.broadcast %345 : vector<32x1xf32> to vector<32x64xf32>
    %347 = arith.mulf %342, %346 : vector<32x64xf32>
    %348 = vector.broadcast %327 : vector<1x64xf32> to vector<32x64xf32>
    %349 = arith.mulf %347, %348 : vector<32x64xf32>
    %350 = vector.broadcast %329 : vector<1x64xf32> to vector<32x64xf32>
    %351 = arith.addf %349, %350 : vector<32x64xf32>
    %352 = arith.truncf %351 : vector<32x64xf32> to vector<32x64xbf16>
    %c1_133 = arith.constant 1 : index
    %c0_134 = arith.constant 0 : index
    %c0_135 = arith.constant 0 : index
    %353 = vector.load %arg11[%c1_133, %c0_134, %c0_135] : memref<2x64x256xbf16, #tpu.memory_space<vmem>>, vector<1x64x256xbf16>
    %354 = vector.shape_cast %353 : vector<1x64x256xbf16> to vector<64x256xbf16>
    %cst_136 = arith.constant dense<0.000000e+00> : vector<32x256xf32>
    %355 = tpu.matmul %352, %354, %cst_136 {dimension_numbers = #tpu.dot_dimension_numbers<[1], [0], [0], [1], [0, 0, 1, 1], [], []>} : vector<32x64xbf16>, vector<64x256xbf16>, vector<32x256xf32> -> vector<32x256xf32>
    %c1_137 = arith.constant 1 : index
    %c0_138 = arith.constant 0 : index
    %c0_139 = arith.constant 0 : index
    %356 = vector.load %arg12[%c1_137, %c0_138, %c0_139] : memref<2x1x256xf32, #tpu.memory_space<vmem>>, vector<1x1x256xf32>
    %357 = vector.shape_cast %356 : vector<1x1x256xf32> to vector<1x256xf32>
    %358 = vector.broadcast %357 : vector<1x256xf32> to vector<32x256xf32>
    %359 = arith.addf %355, %358 : vector<32x256xf32>
    %360 = arith.mulf %359, %359 : vector<32x256xf32>
    %361 = arith.mulf %359, %360 : vector<32x256xf32>
    %cst_140 = arith.constant 4.471500e-02 : f32
    %362 = vector.broadcast %cst_140 : f32 to vector<32x256xf32>
    %363 = arith.mulf %362, %361 : vector<32x256xf32>
    %364 = arith.addf %359, %363 : vector<32x256xf32>
    %cst_141 = arith.constant 0.797884583 : f32
    %365 = vector.broadcast %cst_141 : f32 to vector<32x256xf32>
    %366 = arith.mulf %365, %364 : vector<32x256xf32>
    %367 = math.tanh %366 : vector<32x256xf32>
    %cst_142 = arith.constant 1.000000e+00 : f32
    %368 = vector.broadcast %cst_142 : f32 to vector<32x256xf32>
    %369 = arith.addf %368, %367 : vector<32x256xf32>
    %cst_143 = arith.constant 5.000000e-01 : f32
    %370 = vector.broadcast %cst_143 : f32 to vector<32x256xf32>
    %371 = arith.mulf %370, %369 : vector<32x256xf32>
    %372 = arith.mulf %359, %371 : vector<32x256xf32>
    %373 = arith.truncf %372 : vector<32x256xf32> to vector<32x256xbf16>
    %c1_144 = arith.constant 1 : index
    %c0_145 = arith.constant 0 : index
    %c0_146 = arith.constant 0 : index
    %374 = vector.load %arg13[%c1_144, %c0_145, %c0_146] : memref<2x256x64xbf16, #tpu.memory_space<vmem>>, vector<1x256x64xbf16>
    %375 = vector.shape_cast %374 : vector<1x256x64xbf16> to vector<256x64xbf16>
    %cst_147 = arith.constant dense<0.000000e+00> : vector<32x64xf32>
    %376 = tpu.matmul %373, %375, %cst_147 {dimension_numbers = #tpu.dot_dimension_numbers<[1], [0], [0], [1], [0, 0, 1, 1], [], []>} : vector<32x256xbf16>, vector<256x64xbf16>, vector<32x64xf32> -> vector<32x64xf32>
    %377 = arith.addf %325, %376 : vector<32x64xf32>
    %c1_148 = arith.constant 1 : index
    %c0_149 = arith.constant 0 : index
    %c0_150 = arith.constant 0 : index
    %378 = vector.load %arg14[%c1_148, %c0_149, %c0_150] : memref<2x1x64xf32, #tpu.memory_space<vmem>>, vector<1x1x64xf32>
    %379 = vector.shape_cast %378 : vector<1x1x64xf32> to vector<1x64xf32>
    %380 = vector.broadcast %379 : vector<1x64xf32> to vector<32x64xf32>
    %381 = arith.addf %377, %380 : vector<32x64xf32>
    %c0_151 = arith.constant 0 : index
    %c0_152 = arith.constant 0 : index
    %382 = vector.load %arg15[%c0_151, %c0_152] : memref<1x64xf32, #tpu.memory_space<vmem>>, vector<1x64xf32>
    %c0_153 = arith.constant 0 : index
    %c0_154 = arith.constant 0 : index
    %383 = vector.load %arg16[%c0_153, %c0_154] : memref<1x64xf32, #tpu.memory_space<vmem>>, vector<1x64xf32>
    %cst_155 = arith.constant dense<0.000000e+00> : vector<32xf32>
    %384 = vector.multi_reduction <add>, %381, %cst_155 [1] : vector<32x64xf32> to vector<32xf32>
    %385 = vector.shape_cast %384 : vector<32xf32> to vector<32x1xf32>
    %cst_156 = arith.constant 6.400000e+01 : f32
    %386 = vector.broadcast %cst_156 : f32 to vector<32x1xf32>
    %387 = arith.divf %385, %386 : vector<32x1xf32>
    %388 = vector.broadcast %387 : vector<32x1xf32> to vector<32x64xf32>
    %389 = arith.subf %381, %388 : vector<32x64xf32>
    %390 = arith.mulf %389, %389 : vector<32x64xf32>
    %cst_157 = arith.constant dense<0.000000e+00> : vector<32xf32>
    %391 = vector.multi_reduction <add>, %390, %cst_157 [1] : vector<32x64xf32> to vector<32xf32>
    %392 = vector.shape_cast %391 : vector<32xf32> to vector<32x1xf32>
    %cst_158 = arith.constant 6.400000e+01 : f32
    %393 = vector.broadcast %cst_158 : f32 to vector<32x1xf32>
    %394 = arith.divf %392, %393 : vector<32x1xf32>
    %395 = vector.broadcast %387 : vector<32x1xf32> to vector<32x64xf32>
    %396 = arith.subf %381, %395 : vector<32x64xf32>
    %cst_159 = arith.constant 9.99999974E-6 : f32
    %397 = vector.broadcast %cst_159 : f32 to vector<32x1xf32>
    %398 = arith.addf %394, %397 : vector<32x1xf32>
    %399 = math.rsqrt %398 : vector<32x1xf32>
    %400 = vector.broadcast %399 : vector<32x1xf32> to vector<32x64xf32>
    %401 = arith.mulf %396, %400 : vector<32x64xf32>
    %402 = vector.broadcast %382 : vector<1x64xf32> to vector<32x64xf32>
    %403 = arith.mulf %401, %402 : vector<32x64xf32>
    %404 = vector.broadcast %383 : vector<1x64xf32> to vector<32x64xf32>
    %405 = arith.addf %403, %404 : vector<32x64xf32>
    %406 = arith.truncf %405 : vector<32x64xf32> to vector<32x64xbf16>
    %c0_160 = arith.constant 0 : index
    %c0_161 = arith.constant 0 : index
    %407 = vector.load %arg17[%c0_160, %c0_161] : memref<64x256xbf16, #tpu.memory_space<vmem>>, vector<64x256xbf16>
    %cst_162 = arith.constant dense<0.000000e+00> : vector<32x256xf32>
    %408 = tpu.matmul %406, %407, %cst_162 {dimension_numbers = #tpu.dot_dimension_numbers<[1], [0], [0], [1], [0, 0, 1, 1], [], []>} : vector<32x64xbf16>, vector<64x256xbf16>, vector<32x256xf32> -> vector<32x256xf32>
    %c0_163 = arith.constant 0 : index
    %c0_164 = arith.constant 0 : index
    %409 = vector.load %arg2[%c0_163, %c0_164] : memref<32x1xi32, #tpu.memory_space<vmem>>, vector<32x1xi32>
    %c-100_i32 = arith.constant -100 : i32
    %410 = vector.broadcast %c-100_i32 : i32 to vector<32x1xi32>
    %411 = arith.cmpi ne, %409, %410 : vector<32x1xi32>
    %c0_i32 = arith.constant 0 : i32
    %412 = vector.broadcast %c0_i32 : i32 to vector<32x1xi32>
    %413 = arith.select %411, %409, %412 : vector<32x1xi1>, vector<32x1xi32>
    %414 = tpu.iota {dimensions = array<i32: 1>} : vector<32x256xi32>
    %415 = vector.broadcast %413 : vector<32x1xi32> to vector<32x256xi32>
    %416 = arith.cmpi eq, %414, %415 : vector<32x256xi32>
    %cst_165 = arith.constant 0.000000e+00 : f32
    %417 = vector.broadcast %cst_165 : f32 to vector<32x256xf32>
    %418 = arith.select %416, %408, %417 : vector<32x256xi1>, vector<32x256xf32>
    %cst_166 = arith.constant dense<0.000000e+00> : vector<32xf32>
    %419 = vector.multi_reduction <add>, %418, %cst_166 [1] : vector<32x256xf32> to vector<32xf32>
    %420 = vector.shape_cast %419 : vector<32xf32> to vector<32x1xf32>
    %cst_167 = arith.constant dense<0xFF800000> : vector<32xf32>
    %421 = vector.multi_reduction <maximumf>, %408, %cst_167 [1] : vector<32x256xf32> to vector<32xf32>
    %422 = vector.shape_cast %421 : vector<32xf32> to vector<32x1xf32>
    %423 = vector.broadcast %422 : vector<32x1xf32> to vector<32x256xf32>
    %424 = arith.subf %408, %423 : vector<32x256xf32>
    %425 = math.exp %424 : vector<32x256xf32>
    %cst_168 = arith.constant dense<0.000000e+00> : vector<32xf32>
    %426 = vector.multi_reduction <add>, %425, %cst_168 [1] : vector<32x256xf32> to vector<32xf32>
    %427 = vector.shape_cast %426 : vector<32xf32> to vector<32x1xf32>
    %428 = math.log %427 : vector<32x1xf32>
    %429 = arith.addf %422, %428 : vector<32x1xf32>
    %430 = arith.extui %411 : vector<32x1xi1> to vector<32x1xi32>
    %431 = arith.sitofp %430 : vector<32x1xi32> to vector<32x1xf32>
    %432 = arith.subf %429, %420 : vector<32x1xf32>
    %433 = arith.mulf %432, %431 : vector<32x1xf32>
    %434 = vector.shape_cast %433 : vector<32x1xf32> to vector<1x32x1xf32>
    %cst_169 = arith.constant dense<0.000000e+00> : vector<1xf32>
    %435 = vector.multi_reduction <add>, %434, %cst_169 [1, 2] : vector<1x32x1xf32> to vector<1xf32>
    %436 = vector.shape_cast %435 : vector<1xf32> to vector<1x1x1xf32>
    %437 = vector.extract %436[0, 0, 0] : f32 from vector<1x1x1xf32>
    %438 = vector.broadcast %437 : f32 to vector<1x1xf32>
    %439 = vector.shape_cast %431 : vector<32x1xf32> to vector<1x32x1xf32>
    %cst_170 = arith.constant dense<0.000000e+00> : vector<1xf32>
    %440 = vector.multi_reduction <add>, %439, %cst_170 [1, 2] : vector<1x32x1xf32> to vector<1xf32>
    %441 = vector.shape_cast %440 : vector<1xf32> to vector<1x1x1xf32>
    %442 = vector.extract %441[0, 0, 0] : f32 from vector<1x1x1xf32>
    %443 = vector.broadcast %442 : f32 to vector<1x1xf32>
    %cst_171 = arith.constant 1.000000e+00 : f32
    %444 = vector.broadcast %cst_171 : f32 to vector<1x1xf32>
    %445 = arith.maximumf %443, %444 : vector<1x1xf32>
    %446 = arith.divf %438, %445 : vector<1x1xf32>
    %c0_172 = arith.constant 0 : index
    %c0_173 = arith.constant 0 : index
    %447 = vector.load %arg18[%c0_172, %c0_173] : memref<1x1xf32, #tpu.memory_space<vmem>>, vector<1x1xf32>
    tpu.vector_store %arg18[%c0_172, %c0_173], %446 {strides = array<i32>} : memref<1x1xf32, #tpu.memory_space<vmem>>, vector<1x1xf32>,
    return
  }
}

</mosaic_0001>

<llo_original>
// kernel: gpt2_loss_forward.1
$region0: #{gpt2_loss_forward.1}
  #allocation0 [shape = 'u32[]', space=smem, size = 0x4, offset = 0x4, fixed_abs, tag = 'smem constant byte address 0x4 - core index']
  #allocation1 [shape = 'u32[144,128]{1,0:T(1,128)}', space=vmem, size = 0x12000, scoped, tag = 'internal scratch']
  %s0 = inlined_call_operand.vmem [shape: f32[32,64], index: 0, kind: input, shape index: {}]
  %s1 = inlined_call_operand.vmem [shape: f32[32,32], index: 1, kind: input, shape index: {}]
  %s2 = inlined_call_operand.vmem [shape: s32[32,1], index: 2, kind: input, shape index: {}]
  %s3 = inlined_call_operand.vmem [shape: f32[2,1,64], index: 3, kind: input, shape index: {}]
  %s4 = inlined_call_operand.vmem [shape: f32[2,1,64], index: 4, kind: input, shape index: {}]
  %s5 = inlined_call_operand.vmem [shape: bf16[2,64,192], index: 5, kind: input, shape index: {}]
  %s6 = inlined_call_operand.vmem [shape: f32[2,1,192], index: 6, kind: input, shape index: {}]
  %s7 = inlined_call_operand.vmem [shape: bf16[2,64,64], index: 7, kind: input, shape index: {}]
  %s8 = inlined_call_operand.vmem [shape: f32[2,1,64], index: 8, kind: input, shape index: {}]
  %s9 = inlined_call_operand.vmem [shape: f32[2,1,64], index: 9, kind: input, shape index: {}]
  %s10 = inlined_call_operand.vmem [shape: f32[2,1,64], index: 10, kind: input, shape index: {}]
  %s11 = inlined_call_operand.vmem [shape: bf16[2,64,256], index: 11, kind: input, shape index: {}]
  %s12 = inlined_call_operand.vmem [shape: f32[2,1,256], index: 12, kind: input, shape index: {}]
  %s13 = inlined_call_operand.vmem [shape: bf16[2,256,64], index: 13, kind: input, shape index: {}]
  %s14 = inlined_call_operand.vmem [shape: f32[2,1,64], index: 14, kind: input, shape index: {}]
  %s15 = inlined_call_operand.vmem [shape: f32[1,64], index: 15, kind: input, shape index: {}]
  %s16 = inlined_call_operand.vmem [shape: f32[1,64], index: 16, kind: input, shape index: {}]
  %s17 = inlined_call_operand.vmem [shape: bf16[64,256], index: 17, kind: input, shape index: {}]
  %s18 = inlined_call_operand.hbm [shape: f32[1,1], index: 18, kind: output, shape index: {}]
  %s19 = sld [smem:[#allocation0]]
  $region82: #{gpt2_loss_forward.1} parent=0
    _
  %s21 = ssub.s32 1, %s19
  %s22 = scalar_select 0, %s21, %s19
  $region1: #{gpt2_loss_forward.1} parent=0
    #allocation2 [shape = 'u8[512]{0}', space=vmem, size = 0x400, scoped, tag = 'output window, operand 0, single buffered']
    #allocation3 [shape = 's32[1]{0}', space=sflag, size = 0x4, scoped, tag = 'scoped memory for gpt2_loss_forward.1']
    %23 = vsyncpa [#allocation3], 0
    // Predicated region
    $region2: #{gpt2_loss_forward.1} parent=1 // pred_check
      _
    $region3: #{gpt2_loss_forward.1} parent=1 // pred_check_branch
      %25 = sbr.rel (0) target = $region5
    $region4: #{gpt2_loss_forward.1} parent=1 // pred_region
      _
    $region5: #{gpt2_loss_forward.1} parent=1 // pred_fallthru
      _
    // Predicated region
    $region6: #{gpt2_loss_forward.1} parent=1 // pred_check
      _
    $region7: #{gpt2_loss_forward.1} parent=1 // pred_check_branch
      %27 = sbr.rel (0) target = $region9
    $region8: #{gpt2_loss_forward.1} parent=1 // pred_region
      _
    $region9: #{gpt2_loss_forward.1} parent=1 // pred_fallthru
      _
    // Predicated region
    $region10: #{gpt2_loss_forward.1} parent=1 // pred_check
      _
    $region11: #{gpt2_loss_forward.1} parent=1 // pred_check_branch
      %29 = sbr.rel (0) target = $region13
    $region12: #{gpt2_loss_forward.1} parent=1 // pred_region
      _
    $region13: #{gpt2_loss_forward.1} parent=1 // pred_fallthru
      _
    // Predicated region
    $region14: #{gpt2_loss_forward.1} parent=1 // pred_check
      _
    $region15: #{gpt2_loss_forward.1} parent=1 // pred_check_branch
      %31 = sbr.rel (0) target = $region17
    $region16: #{gpt2_loss_forward.1} parent=1 // pred_region
      _
    $region17: #{gpt2_loss_forward.1} parent=1 // pred_fallthru
      _
    // Predicated region
    $region18: #{gpt2_loss_forward.1} parent=1 // pred_check
      _
    $region19: #{gpt2_loss_forward.1} parent=1 // pred_check_branch
      %33 = sbr.rel (0) target = $region21
    $region20: #{gpt2_loss_forward.1} parent=1 // pred_region
      _
    $region21: #{gpt2_loss_forward.1} parent=1 // pred_fallthru
      _
    // Predicated region
    $region22: #{gpt2_loss_forward.1} parent=1 // pred_check
      _
    $region23: #{gpt2_loss_forward.1} parent=1 // pred_check_branch
      %35 = sbr.rel (0) target = $region25
    $region24: #{gpt2_loss_forward.1} parent=1 // pred_region
      _
    $region25: #{gpt2_loss_forward.1} parent=1 // pred_fallthru
      _
    // Predicated region
    $region26: #{gpt2_loss_forward.1} parent=1 // pred_check
      _
    $region27: #{gpt2_loss_forward.1} parent=1 // pred_check_branch
      %37 = sbr.rel (0) target = $region29
    $region28: #{gpt2_loss_forward.1} parent=1 // pred_region
      _
    $region29: #{gpt2_loss_forward.1} parent=1 // pred_fallthru
      _
    // Predicated region
    $region30: #{gpt2_loss_forward.1} parent=1 // pred_check
      _
    $region31: #{gpt2_loss_forward.1} parent=1 // pred_check_branch
      %39 = sbr.rel (0) target = $region33
    $region32: #{gpt2_loss_forward.1} parent=1 // pred_region
      _
    $region33: #{gpt2_loss_forward.1} parent=1 // pred_fallthru
      _
    // Predicated region
    $region34: #{gpt2_loss_forward.1} parent=1 // pred_check
      _
    $region35: #{gpt2_loss_forward.1} parent=1 // pred_check_branch
      %41 = sbr.rel (0) target = $region37
    $region36: #{gpt2_loss_forward.1} parent=1 // pred_region
      _
    $region37: #{gpt2_loss_forward.1} parent=1 // pred_fallthru
      _
    // Predicated region
    $region38: #{gpt2_loss_forward.1} parent=1 // pred_check
      _
    $region39: #{gpt2_loss_forward.1} parent=1 // pred_check_branch
      %43 = sbr.rel (0) target = $region41
    $region40: #{gpt2_loss_forward.1} parent=1 // pred_region
      _
    $region41: #{gpt2_loss_forward.1} parent=1 // pred_fallthru
      _
    // Predicated region
    $region42: #{gpt2_loss_forward.1} parent=1 // pred_check
      _
    $region43: #{gpt2_loss_forward.1} parent=1 // pred_check_branch
      %45 = sbr.rel (0) target = $region45
    $region44: #{gpt2_loss_forward.1} parent=1 // pred_region
      _
    $region45: #{gpt2_loss_forward.1} parent=1 // pred_fallthru
      _
    // Predicated region
    $region46: #{gpt2_loss_forward.1} parent=1 // pred_check
      _
    $region47: #{gpt2_loss_forward.1} parent=1 // pred_check_branch
      %47 = sbr.rel (0) target = $region49
    $region48: #{gpt2_loss_forward.1} parent=1 // pred_region
      _
    $region49: #{gpt2_loss_forward.1} parent=1 // pred_fallthru
      _
    // Predicated region
    $region50: #{gpt2_loss_forward.1} parent=1 // pred_check
      _
    $region51: #{gpt2_loss_forward.1} parent=1 // pred_check_branch
      %49 = sbr.rel (0) target = $region53
    $region52: #{gpt2_loss_forward.1} parent=1 // pred_region
      _
    $region53: #{gpt2_loss_forward.1} parent=1 // pred_fallthru
      _
    // Predicated region
    $region54: #{gpt2_loss_forward.1} parent=1 // pred_check
      _
    $region55: #{gpt2_loss_forward.1} parent=1 // pred_check_branch
      %51 = sbr.rel (0) target = $region57
    $region56: #{gpt2_loss_forward.1} parent=1 // pred_region
      _
    $region57: #{gpt2_loss_forward.1} parent=1 // pred_fallthru
      _
    // Predicated region
    $region58: #{gpt2_loss_forward.1} parent=1 // pred_check
      _
    $region59: #{gpt2_loss_forward.1} parent=1 // pred_check_branch
      %53 = sbr.rel (0) target = $region61
    $region60: #{gpt2_loss_forward.1} parent=1 // pred_region
      _
    $region61: #{gpt2_loss_forward.1} parent=1 // pred_fallthru
      _
    // Predicated region
    $region62: #{gpt2_loss_forward.1} parent=1 // pred_check
      _
    $region63: #{gpt2_loss_forward.1} parent=1 // pred_check_branch
      %55 = sbr.rel (0) target = $region65
    $region64: #{gpt2_loss_forward.1} parent=1 // pred_region
      _
    $region65: #{gpt2_loss_forward.1} parent=1 // pred_fallthru
      _
    // Predicated region
    $region66: #{gpt2_loss_forward.1} parent=1 // pred_check
      _
    $region67: #{gpt2_loss_forward.1} parent=1 // pred_check_branch
      %57 = sbr.rel (0) target = $region69
    $region68: #{gpt2_loss_forward.1} parent=1 // pred_region
      _
    $region69: #{gpt2_loss_forward.1} parent=1 // pred_fallthru
      _
    // Predicated region
    $region70: #{gpt2_loss_forward.1} parent=1 // pred_check
      _
    $region71: #{gpt2_loss_forward.1} parent=1 // pred_check_branch
      %59 = sbr.rel (0) target = $region73
    $region72: #{gpt2_loss_forward.1} parent=1 // pred_region
      _
    $region73: #{gpt2_loss_forward.1} parent=1 // pred_fallthru
      _
    %v61 = vld [vmem:[%s0] sm:$0xff]
    %v62 = vld [vmem:[%s0 + $0x8] sm:$0xff]
    %v63 = vld [vmem:[%s0 + $0x10] sm:$0xff]
    %v64 = vld [vmem:[%s0 + $0x18] sm:$0xff]
    %v65 = vld [vmem:[%s1] sm:$0xff]
    %v66 = vld [vmem:[%s1 + $0x8] sm:$0xff]
    %v67 = vld [vmem:[%s1 + $0x10] sm:$0xff]
    %v68 = vld [vmem:[%s1 + $0x18] sm:$0xff]
    %v69 = vld [vmem:[%s3] sm:$0x1]
    %v70 = vld [vmem:[%s4] sm:$0x1]
    %vm71 = vcmask 523264
    %v72 = vsel %vm71, %v61, 0.0
    %73 = vadd.xlane.f32.xlu0 %v72
    %v74 = vpop.xlane.xlu0 %73
    %v75 = vsel %vm71, %v62, 0.0
    %76 = vadd.xlane.f32.xlu0 %v75
    %v77 = vpop.xlane.xlu0 %76
    %v78 = vsel %vm71, %v63, 0.0
    %79 = vadd.xlane.f32.xlu0 %v78
    %v80 = vpop.xlane.xlu0 %79
    %v81 = vsel %vm71, %v64, 0.0
    %82 = vadd.xlane.f32.xlu0 %v81
    %v83 = vpop.xlane.xlu0 %82
    %v84 = vrcp.pop 64.0
    %v85 = vmul.f32 %v74, %v84
    %v86 = vmul.f32 %v77, %v84
    %v87 = vmul.f32 %v80, %v84
    %v88 = vmul.f32 %v83, %v84
    %v89 = vsub.f32 %v61, %v85
    %v90 = vsub.f32 %v62, %v86
    %v91 = vsub.f32 %v63, %v87
    %v92 = vsub.f32 %v64, %v88
    %v93 = vmul.f32 %v89, %v89
    %v94 = vmul.f32 %v90, %v90
    %v95 = vmul.f32 %v91, %v91
    %v96 = vmul.f32 %v92, %v92
    %v97 = vsel %vm71, %v93, 0.0
    %98 = vadd.xlane.f32.xlu0 %v97
    %v99 = vpop.xlane.xlu0 %98
    %v100 = vsel %vm71, %v94, 0.0
    %101 = vadd.xlane.f32.xlu0 %v100
    %v102 = vpop.xlane.xlu0 %101
    %v103 = vsel %vm71, %v95, 0.0
    %104 = vadd.xlane.f32.xlu0 %v103
    %v105 = vpop.xlane.xlu0 %104
    %v106 = vsel %vm71, %v96, 0.0
    %107 = vadd.xlane.f32.xlu0 %v106
    %v108 = vpop.xlane.xlu0 %107
    %v109 = vmul.f32 %v99, %v84
    %v110 = vmul.f32 %v102, %v84
    %v111 = vmul.f32 %v105, %v84
    %v112 = vmul.f32 %v108, %v84
    %v113 = vadd.f32 %v109, 1e-05
    %v114 = vadd.f32 %v110, 1e-05
    %v115 = vadd.f32 %v111, 1e-05
    %v116 = vadd.f32 %v112, 1e-05
    %v117 = vrsqrt.pop %v113
    %v118 = vrsqrt.pop %v114
    %v119 = vrsqrt.pop %v115
    %v120 = vrsqrt.pop %v116
    %v121 = vmul.f32 %v89, %v117
    %v122 = vmul.f32 %v90, %v118
    %v123 = vmul.f32 %v91, %v119
    %v124 = vmul.f32 %v92, %v120
    %v126 = vlaneseq
    %v127 = vshrl.u32 %v126, 7
    %v128 = vsub.s32 0, %v127
    %v129 = vrot.slane %v69, %v128
    %v131 = vmul.f32 %v121, %v129
    %v132 = vmul.f32 %v122, %v129
    %v133 = vmul.f32 %v123, %v129
    %v134 = vmul.f32 %v124, %v129
    %v136 = vlaneseq
    %v137 = vshrl.u32 %v136, 7
    %v138 = vsub.s32 0, %v137
    %v139 = vrot.slane %v70, %v138
    %v141 = vadd.f32 %v131, %v139
    %v142 = vadd.f32 %v132, %v139
    %v143 = vadd.f32 %v133, %v139
    %v144 = vadd.f32 %v134, %v139
    %v145 = vpack.c.bf16 %v142, %v141
    %v146 = vpack.c.bf16 %v144, %v143
    %v147 = vld [vmem:[%s5] sm:$0xff]
    %v148 = vld [vmem:[%s5 + $0x8] sm:$0xff]
    %v149 = vld [vmem:[%s5 + $0x10] sm:$0xff]
    %v150 = vld [vmem:[%s5 + $0x18] sm:$0xff]
    %v151 = vld [vmem:[%s5 + $0x20] sm:$0xff]
    %v152 = vld [vmem:[%s5 + $0x28] sm:$0xff]
    %v153 = vld [vmem:[%s5 + $0x30] sm:$0xff]
    %v154 = vld [vmem:[%s5 + $0x38] sm:$0xff]
    %v155 = vld [vmem:[%s6] sm:$0x3]
    %v157 = vlaneseq
    %v158 = vshrl.u32 %v157, 7
    %v159 = vsub.s32 0, %v158
    %v160 = vrot.slane %v155, %v159
    %v161 = vlaneseq
    %v162 = vshrl.u32 %v161, 7
    %v163 = vsub.s32 1, %v162
    %v164 = vrot.slane %v155, %v163
    %v175 = vunpack.c.l.b16 %v147
    %v176 = vunpack.c.h.b16 %v147
    %v177 = vunpack.c.l.b16 %v148
    %v178 = vunpack.c.h.b16 %v148
    %v179 = vunpack.c.l.b16 %v149
    %v180 = vunpack.c.h.b16 %v149
    %v181 = vunpack.c.l.b16 %v150
    %v182 = vunpack.c.h.b16 %v150
    %v183 = vunpack.c.l.b16 %v151
    %v184 = vunpack.c.h.b16 %v151
    %v185 = vunpack.c.l.b16 %v152
    %v186 = vunpack.c.h.b16 %v152
    %v187 = vunpack.c.l.b16 %v153
    %v188 = vunpack.c.h.b16 %v153
    %v189 = vunpack.c.l.b16 %v154
    %v190 = vunpack.c.h.b16 %v154
    %v191 = vpack.c.b16 %v177, %v175
    %v192 = vpack.c.b16 %v178, %v176
    %v193 = vpack.c.b16 %v181, %v179
    %v194 = vpack.c.b16 %v182, %v180
    %v195 = vpack.c.b16 %v185, %v183
    %v196 = vpack.c.b16 %v186, %v184
    %v197 = vpack.c.b16 %v189, %v187
    %v198 = vpack.c.b16 %v190, %v188
    %v208 = vsel %vm71, %v145, 0
    %v211 = vsel %vm71, %v146, 0
    %213 = vmatprep.subr.bf16.mxu0 0
    %214 = vmatpush1.bf16.msra.mxu0 0
    %215 = vmatprep.subr.bf16.mxu0 0
    %216 = vmatpush1.bf16.msra.mxu0 0
    %217 = vmatprep.subr.bf16.mxu0 0
    %218 = vmatpush1.bf16.msra.mxu0 0
    %219 = vmatprep.subr.bf16.mxu0 0
    %220 = vmatpush1.bf16.msra.mxu0 0
    %221 = vmatprep.subr.bf16.mxu0 %v198
    %222 = vmatpush1.bf16.msra.mxu0 %v197
    %223 = vmatprep.subr.bf16.mxu0 %v196
    %224 = vmatpush1.bf16.msra.mxu0 %v195
    %225 = vmatprep.subr.bf16.mxu0 %v194
    %226 = vmatpush1.bf16.msra.mxu0 %v193
    %227 = vmatprep.subr.bf16.mxu0 %v192
    %228 = vmatpush1.bf16.msra.mxu0 %v191
    %229 = vmatprep.subr.bf16.mxu0 0
    %230 = vmatpush2.bf16.msra.mxu0 0
    %231 = vmatprep.subr.bf16.mxu0 0
    %232 = vmatpush2.bf16.msra.mxu0 0
    %233 = vmatprep.subr.bf16.mxu0 0
    %234 = vmatpush2.bf16.msra.mxu0 0
    %235 = vmatprep.subr.bf16.mxu0 0
    %236 = vmatpush2.bf16.msra.mxu0 0
    %237 = vmatprep.subr.bf16.mxu0 0
    %238 = vmatpush2.bf16.msra.mxu0 0
    %239 = vmatprep.subr.bf16.mxu0 0
    %240 = vmatpush2.bf16.msra.mxu0 0
    %241 = vmatprep.subr.bf16.mxu0 0
    %242 = vmatpush2.bf16.msra.mxu0 0
    %243 = vmatprep.subr.bf16.mxu0 0
    %244 = vmatpush2.bf16.msra.mxu0 0
    %245 = vmatprep.mubr.bf16.mxu0 0
    %246 = vmatmul.mubr.bf16.gmra.mxu0 %v208
    %v247 = vpop.f32.mrf.mxu0
    %v248 = vadd.f32 %v160, %v247
    %v249 = vpop.f32.mrf.mxu0
    %v250 = vadd.f32 %v164, %v249
    %v251 = vpop.f32.mrf.mxu0
    %v252 = vadd.f32 %v160, %v251
    %v253 = vpop.f32.mrf.mxu0
    %v254 = vadd.f32 %v164, %v253
    %255 = vmatprep.mubr.bf16.mxu0 0
    %256 = vmatmul.mubr.bf16.gmra.mxu0 %v211
    %v257 = vpop.f32.mrf.mxu0
    %v258 = vadd.f32 %v160, %v257
    %v259 = vpop.f32.mrf.mxu0
    %v260 = vadd.f32 %v164, %v259
    %v261 = vpop.f32.mrf.mxu0
    %v262 = vadd.f32 %v160, %v261
    %v263 = vpop.f32.mrf.mxu0
    %v264 = vadd.f32 %v164, %v263
    %265 = vdwg.mxu0
    %v266 = vmul.f32 %v248, 0.25
    %v267 = vmul.f32 %v252, 0.25
    %v268 = vmul.f32 %v258, 0.25
    %v269 = vmul.f32 %v262, 0.25
    %v270 = vpack.c.bf16 %v267, %v266
    %v271 = vpack.c.bf16 %v269, %v268
    %v272 = vpack.c.bf16 %v252, %v248
    %v273 = vpack.c.bf16 %v262, %v258
    %v274 = vpack.c.bf16 %v254, %v250
    %v275 = vpack.c.bf16 %v264, %v260
    %v276 = vld [vmem:[%s7] sm:$0xf]
    %v277 = vld [vmem:[%s7 + $0x4] sm:$0xf]
    %v278 = vld [vmem:[%s7 + $0x8] sm:$0xf]
    %v279 = vld [vmem:[%s7 + $0xc] sm:$0xf]
    %v280 = vld [vmem:[%s7 + $0x10] sm:$0xf]
    %v281 = vld [vmem:[%s7 + $0x14] sm:$0xf]
    %v282 = vld [vmem:[%s7 + $0x18] sm:$0xf]
    %v283 = vld [vmem:[%s7 + $0x1c] sm:$0xf]
    %286 = vrot.lane.b32.xlu0 %v272, 64
    %v287 = vpop.permute.xlu0 %286
    %288 = vrot.lane.b32.xlu0 %v273, 64
    %v289 = vpop.permute.xlu0 %288
    %vm290 = vcmask 130048
    %v292 = vsel %vm290, %v270, 0
    %v295 = vsel %vm290, %v271, 0
    %v298 = vsel %vm290, %v287, 0
    %v301 = vsel %vm290, %v289, 0
    %303 = vmatprep.subr.bf16.mxu0 0
    %304 = vmatpush1.bf16.xpose.msra.mxu0 0
    %305 = vmatprep.subr.bf16.mxu0 0
    %306 = vmatpush1.bf16.xpose.msra.mxu0 0
    %307 = vmatprep.subr.bf16.mxu0 0
    %308 = vmatpush1.bf16.xpose.msra.mxu0 0
    %309 = vmatprep.subr.bf16.mxu0 0
    %310 = vmatpush1.bf16.xpose.msra.mxu0 0
    %311 = vmatprep.subr.bf16.mxu0 0
    %312 = vmatpush1.bf16.xpose.msra.mxu0 0
    %313 = vmatprep.subr.bf16.mxu0 0
    %314 = vmatpush1.bf16.xpose.msra.mxu0 0
    %315 = vmatprep.subr.bf16.mxu0 0
    %316 = vmatpush1.bf16.xpose.msra.mxu0 %v301
    %317 = vmatprep.subr.bf16.mxu0 0
    %318 = vmatpush1.bf16.xpose.msra.mxu0 %v298
    %319 = vmatprep.subr.bf16.mxu0 0
    %320 = vmatpush2.bf16.xpose.msra.mxu0 0
    %321 = vmatprep.subr.bf16.mxu0 0
    %322 = vmatpush2.bf16.xpose.msra.mxu0 0
    %323 = vmatprep.subr.bf16.mxu0 0
    %324 = vmatpush2.bf16.xpose.msra.mxu0 0
    %325 = vmatprep.subr.bf16.mxu0 0
    %326 = vmatpush2.bf16.xpose.msra.mxu0 0
    %327 = vmatprep.subr.bf16.mxu0 0
    %328 = vmatpush2.bf16.xpose.msra.mxu0 0
    %329 = vmatprep.subr.bf16.mxu0 0
    %330 = vmatpush2.bf16.xpose.msra.mxu0 0
    %331 = vmatprep.subr.bf16.mxu0 0
    %332 = vmatpush2.bf16.xpose.msra.mxu0 0
    %333 = vmatprep.subr.bf16.mxu0 0
    %334 = vmatpush2.bf16.xpose.msra.mxu0 0
    %335 = vmatprep.mubr.bf16.mxu0 0
    %336 = vmatmul.mubr.bf16.gmra.mxu0 %v292
    %v337 = vpop.f32.mrf.mxu0
    %v338 = vadd.f32 %v65, %v337
    %v339 = vpop.f32.mrf.mxu0
    %v340 = vpop.f32.mrf.mxu0
    %v341 = vadd.f32 %v66, %v340
    %v342 = vpop.f32.mrf.mxu0
    %343 = vmatprep.mubr.bf16.mxu0 0
    %344 = vmatmul.mubr.bf16.gmra.mxu0 %v295
    %v345 = vpop.f32.mrf.mxu0
    %v346 = vadd.f32 %v67, %v345
    %v347 = vpop.f32.mrf.mxu0
    %v348 = vpop.f32.mrf.mxu0
    %v349 = vadd.f32 %v68, %v348
    %v350 = vpop.f32.mrf.mxu0
    %351 = vdwg.mxu0
    %vm352 = vcmask 261120
    %v353 = vsel %vm352, %v338, -inf
    %354 = vmax.xlane.f32.xlu0 %v353
    %v355 = vpop.xlane.xlu0 %354
    %v356 = vsel %vm352, %v341, -inf
    %357 = vmax.xlane.f32.xlu0 %v356
    %v358 = vpop.xlane.xlu0 %357
    %v359 = vsel %vm352, %v346, -inf
    %360 = vmax.xlane.f32.xlu0 %v359
    %v361 = vpop.xlane.xlu0 %360
    %v362 = vsel %vm352, %v349, -inf
    %363 = vmax.xlane.f32.xlu0 %v362
    %v364 = vpop.xlane.xlu0 %363
    %v365 = vsub.f32 %v338, %v355
    %v366 = vsub.f32 %v341, %v358
    %v367 = vsub.f32 %v346, %v361
    %v368 = vsub.f32 %v349, %v364
    %v369 = vmul.f32 %v365, 1.442695
    %v370 = vpow.pop %v369
    %v371 = vmul.f32 %v366, 1.442695
    %v372 = vpow.pop %v371
    %v373 = vmul.f32 %v367, 1.442695
    %v374 = vpow.pop %v373
    %v375 = vmul.f32 %v368, 1.442695
    %v376 = vpow.pop %v375
    %v377 = vsel %vm352, %v370, 0.0
    %378 = vadd.xlane.f32.xlu0 %v377
    %v379 = vpop.xlane.xlu0 %378
    %v380 = vsel %vm352, %v372, 0.0
    %381 = vadd.xlane.f32.xlu0 %v380
    %v382 = vpop.xlane.xlu0 %381
    %v383 = vsel %vm352, %v374, 0.0
    %384 = vadd.xlane.f32.xlu0 %v383
    %v385 = vpop.xlane.xlu0 %384
    %v386 = vsel %vm352, %v376, 0.0
    %387 = vadd.xlane.f32.xlu0 %v386
    %v388 = vpop.xlane.xlu0 %387
    %v389 = vrcp.pop %v379
    %v390 = vrcp.pop %v382
    %v391 = vrcp.pop %v385
    %v392 = vrcp.pop %v388
    %v393 = vmul.f32 %v370, %v389
    %v394 = vmul.f32 %v372, %v390
    %v395 = vmul.f32 %v374, %v391
    %v396 = vmul.f32 %v376, %v392
    %v397 = vpack.c.bf16 %v394, %v393
    %v398 = vpack.c.bf16 %v396, %v395
    %v400 = vsel %vm352, %v397, 0
    %v403 = vsel %vm352, %v398, 0
    %405 = vmatprep.subr.bf16.mxu0 0
    %406 = vmatpush1.bf16.msra.mxu0 0
    %407 = vmatprep.subr.bf16.mxu0 0
    %408 = vmatpush1.bf16.msra.mxu0 0
    %409 = vmatprep.subr.bf16.mxu0 0
    %410 = vmatpush1.bf16.msra.mxu0 0
    %411 = vmatprep.subr.bf16.mxu0 0
    %412 = vmatpush1.bf16.msra.mxu0 0
    %413 = vmatprep.subr.bf16.mxu0 0
    %414 = vmatpush1.bf16.msra.mxu0 0
    %415 = vmatprep.subr.bf16.mxu0 0
    %416 = vmatpush1.bf16.msra.mxu0 0
    %417 = vmatprep.subr.bf16.mxu0 0
    %418 = vmatpush1.bf16.msra.mxu0 %v275
    %419 = vmatprep.subr.bf16.mxu0 0
    %420 = vmatpush1.bf16.msra.mxu0 %v274
    %421 = vmatprep.subr.bf16.mxu0 0
    %422 = vmatpush2.bf16.msra.mxu0 0
    %423 = vmatprep.subr.bf16.mxu0 0
    %424 = vmatpush2.bf16.msra.mxu0 0
    %425 = vmatprep.subr.bf16.mxu0 0
    %426 = vmatpush2.bf16.msra.mxu0 0
    %427 = vmatprep.subr.bf16.mxu0 0
    %428 = vmatpush2.bf16.msra.mxu0 0
    %429 = vmatprep.subr.bf16.mxu0 0
    %430 = vmatpush2.bf16.msra.mxu0 0
    %431 = vmatprep.subr.bf16.mxu0 0
    %432 = vmatpush2.bf16.msra.mxu0 0
    %433 = vmatprep.subr.bf16.mxu0 0
    %434 = vmatpush2.bf16.msra.mxu0 0
    %435 = vmatprep.subr.bf16.mxu0 0
    %436 = vmatpush2.bf16.msra.mxu0 0
    %437 = vmatprep.mubr.bf16.mxu0 0
    %438 = vmatmul.mubr.bf16.gmra.mxu0 %v400
    %v439 = vpop.f32.mrf.mxu0
    %v440 = vadd.f32 0.0, %v439
    %v441 = vpop.f32.mrf.mxu0
    %v442 = vpop.f32.mrf.mxu0
    %v443 = vadd.f32 0.0, %v442
    %v444 = vpop.f32.mrf.mxu0
    %445 = vmatprep.mubr.bf16.mxu0 0
    %446 = vmatmul.mubr.bf16.gmra.mxu0 %v403
    %v447 = vpop.f32.mrf.mxu0
    %v448 = vadd.f32 0.0, %v447
    %v449 = vpop.f32.mrf.mxu0
    %v450 = vpop.f32.mrf.mxu0
    %v451 = vadd.f32 0.0, %v450
    %v452 = vpop.f32.mrf.mxu0
    %453 = vdwg.mxu0
    %v454 = vpack.c.bf16 %v443, %v440
    %v455 = vpack.c.bf16 %v451, %v448
    %458 = vrot.lane.b32.xlu0 %v270, 112
    %v459 = vpop.permute.xlu0 %458
    %460 = vrot.lane.b32.xlu0 %v271, 112
    %v461 = vpop.permute.xlu0 %460
    %462 = vrot.lane.b32.xlu0 %v272, 48
    %v463 = vpop.permute.xlu0 %462
    %464 = vrot.lane.b32.xlu0 %v273, 48
    %v465 = vpop.permute.xlu0 %464
    %v467 = vsel %vm290, %v459, 0
    %v470 = vsel %vm290, %v461, 0
    %v473 = vsel %vm290, %v463, 0
    %v476 = vsel %vm290, %v465, 0
    %478 = vmatprep.subr.bf16.mxu0 0
    %479 = vmatpush1.bf16.xpose.msra.mxu0 0
    %480 = vmatprep.subr.bf16.mxu0 0
    %481 = vmatpush1.bf16.xpose.msra.mxu0 0
    %482 = vmatprep.subr.bf16.mxu0 0
    %483 = vmatpush1.bf16.xpose.msra.mxu0 0
    %484 = vmatprep.subr.bf16.mxu0 0
    %485 = vmatpush1.bf16.xpose.msra.mxu0 0
    %486 = vmatprep.subr.bf16.mxu0 0
    %487 = vmatpush1.bf16.xpose.msra.mxu0 0
    %488 = vmatprep.subr.bf16.mxu0 0
    %489 = vmatpush1.bf16.xpose.msra.mxu0 0
    %490 = vmatprep.subr.bf16.mxu0 0
    %491 = vmatpush1.bf16.xpose.msra.mxu0 %v476
    %492 = vmatprep.subr.bf16.mxu0 0
    %493 = vmatpush1.bf16.xpose.msra.mxu0 %v473
    %494 = vmatprep.subr.bf16.mxu0 0
    %495 = vmatpush2.bf16.xpose.msra.mxu0 0
    %496 = vmatprep.subr.bf16.mxu0 0
    %497 = vmatpush2.bf16.xpose.msra.mxu0 0
    %498 = vmatprep.subr.bf16.mxu0 0
    %499 = vmatpush2.bf16.xpose.msra.mxu0 0
    %500 = vmatprep.subr.bf16.mxu0 0
    %501 = vmatpush2.bf16.xpose.msra.mxu0 0
    %502 = vmatprep.subr.bf16.mxu0 0
    %503 = vmatpush2.bf16.xpose.msra.mxu0 0
    %504 = vmatprep.subr.bf16.mxu0 0
    %505 = vmatpush2.bf16.xpose.msra.mxu0 0
    %506 = vmatprep.subr.bf16.mxu0 0
    %507 = vmatpush2.bf16.xpose.msra.mxu0 0
    %508 = vmatprep.subr.bf16.mxu0 0
    %509 = vmatpush2.bf16.xpose.msra.mxu0 0
    %510 = vmatprep.mubr.bf16.mxu0 0
    %511 = vmatmul.mubr.bf16.gmra.mxu0 %v467
    %v512 = vpop.f32.mrf.mxu0
    %v513 = vadd.f32 %v65, %v512
    %v514 = vpop.f32.mrf.mxu0
    %v515 = vpop.f32.mrf.mxu0
    %v516 = vadd.f32 %v66, %v515
    %v517 = vpop.f32.mrf.mxu0
    %518 = vmatprep.mubr.bf16.mxu0 0
    %519 = vmatmul.mubr.bf16.gmra.mxu0 %v470
    %v520 = vpop.f32.mrf.mxu0
    %v521 = vadd.f32 %v67, %v520
    %v522 = vpop.f32.mrf.mxu0
    %v523 = vpop.f32.mrf.mxu0
    %v524 = vadd.f32 %v68, %v523
    %v525 = vpop.f32.mrf.mxu0
    %526 = vdwg.mxu0
    %v527 = vsel %vm352, %v513, -inf
    %528 = vmax.xlane.f32.xlu0 %v527
    %v529 = vpop.xlane.xlu0 %528
    %v530 = vsel %vm352, %v516, -inf
    %531 = vmax.xlane.f32.xlu0 %v530
    %v532 = vpop.xlane.xlu0 %531
    %v533 = vsel %vm352, %v521, -inf
    %534 = vmax.xlane.f32.xlu0 %v533
    %v535 = vpop.xlane.xlu0 %534
    %v536 = vsel %vm352, %v524, -inf
    %537 = vmax.xlane.f32.xlu0 %v536
    %v538 = vpop.xlane.xlu0 %537
    %v539 = vsub.f32 %v513, %v529
    %v540 = vsub.f32 %v516, %v532
    %v541 = vsub.f32 %v521, %v535
    %v542 = vsub.f32 %v524, %v538
    %v543 = vmul.f32 %v539, 1.442695
    %v544 = vpow.pop %v543
    %v545 = vmul.f32 %v540, 1.442695
    %v546 = vpow.pop %v545
    %v547 = vmul.f32 %v541, 1.442695
    %v548 = vpow.pop %v547
    %v549 = vmul.f32 %v542, 1.442695
    %v550 = vpow.pop %v549
    %v551 = vsel %vm352, %v544, 0.0
    %552 = vadd.xlane.f32.xlu0 %v551
    %v553 = vpop.xlane.xlu0 %552
    %v554 = vsel %vm352, %v546, 0.0
    %555 = vadd.xlane.f32.xlu0 %v554
    %v556 = vpop.xlane.xlu0 %555
    %v557 = vsel %vm352, %v548, 0.0
    %558 = vadd.xlane.f32.xlu0 %v557
    %v559 = vpop.xlane.xlu0 %558
    %v560 = vsel %vm352, %v550, 0.0
    %561 = vadd.xlane.f32.xlu0 %v560
    %v562 = vpop.xlane.xlu0 %561
    %v563 = vrcp.pop %v553
    %v564 = vrcp.pop %v556
    %v565 = vrcp.pop %v559
    %v566 = vrcp.pop %v562
    %v567 = vmul.f32 %v544, %v563
    %v568 = vmul.f32 %v546, %v564
    %v569 = vmul.f32 %v548, %v565
    %v570 = vmul.f32 %v550, %v566
    %v571 = vpack.c.bf16 %v568, %v567
    %v572 = vpack.c.bf16 %v570, %v569
    %575 = vrot.lane.b32.xlu0 %v274, 112
    %v576 = vpop.permute.xlu0 %575
    %577 = vrot.lane.b32.xlu0 %v275, 112
    %v578 = vpop.permute.xlu0 %577
    %v582 = vsel %vm352, %v571, 0
    %v585 = vsel %vm352, %v572, 0
    %587 = vmatprep.subr.bf16.mxu0 0
    %588 = vmatpush1.bf16.msra.mxu0 0
    %589 = vmatprep.subr.bf16.mxu0 0
    %590 = vmatpush1.bf16.msra.mxu0 0
    %591 = vmatprep.subr.bf16.mxu0 0
    %592 = vmatpush1.bf16.msra.mxu0 0
    %593 = vmatprep.subr.bf16.mxu0 0
    %594 = vmatpush1.bf16.msra.mxu0 0
    %595 = vmatprep.subr.bf16.mxu0 0
    %596 = vmatpush1.bf16.msra.mxu0 0
    %597 = vmatprep.subr.bf16.mxu0 0
    %598 = vmatpush1.bf16.msra.mxu0 0
    %599 = vmatprep.subr.bf16.mxu0 0
    %600 = vmatpush1.bf16.msra.mxu0 %v578
    %601 = vmatprep.subr.bf16.mxu0 0
    %602 = vmatpush1.bf16.msra.mxu0 %v576
    %603 = vmatprep.subr.bf16.mxu0 0
    %604 = vmatpush2.bf16.msra.mxu0 0
    %605 = vmatprep.subr.bf16.mxu0 0
    %606 = vmatpush2.bf16.msra.mxu0 0
    %607 = vmatprep.subr.bf16.mxu0 0
    %608 = vmatpush2.bf16.msra.mxu0 0
    %609 = vmatprep.subr.bf16.mxu0 0
    %610 = vmatpush2.bf16.msra.mxu0 0
    %611 = vmatprep.subr.bf16.mxu0 0
    %612 = vmatpush2.bf16.msra.mxu0 0
    %613 = vmatprep.subr.bf16.mxu0 0
    %614 = vmatpush2.bf16.msra.mxu0 0
    %615 = vmatprep.subr.bf16.mxu0 0
    %616 = vmatpush2.bf16.msra.mxu0 0
    %617 = vmatprep.subr.bf16.mxu0 0
    %618 = vmatpush2.bf16.msra.mxu0 0
    %619 = vmatprep.mubr.bf16.mxu0 0
    %620 = vmatmul.mubr.bf16.gmra.mxu0 %v582
    %v621 = vpop.f32.mrf.mxu0
    %v622 = vadd.f32 0.0, %v621
    %v623 = vpop.f32.mrf.mxu0
    %v624 = vpop.f32.mrf.mxu0
    %v625 = vadd.f32 0.0, %v624
    %v626 = vpop.f32.mrf.mxu0
    %627 = vmatprep.mubr.bf16.mxu0 0
    %628 = vmatmul.mubr.bf16.gmra.mxu0 %v585
    %v629 = vpop.f32.mrf.mxu0
    %v630 = vadd.f32 0.0, %v629
    %v631 = vpop.f32.mrf.mxu0
    %v632 = vpop.f32.mrf.mxu0
    %v633 = vadd.f32 0.0, %v632
    %v634 = vpop.f32.mrf.mxu0
    %635 = vdwg.mxu0
    %v636 = vpack.c.bf16 %v625, %v622
    %v637 = vpack.c.bf16 %v633, %v630
    %v640 = vunpack.c.l.b16 %v278
    %v641 = vunpack.c.l.b16 %v279
    %v642 = vpack.c.b16 %v641, %v640
    %v645 = vsel %vm290, %v636, 0
    %v648 = vsel %vm290, %v637, 0
    %650 = vmatprep.subr.bf16.mxu0 0
    %651 = vmatpush1.bf16.msra.mxu0 0
    %652 = vmatprep.subr.bf16.mxu0 0
    %653 = vmatpush1.bf16.msra.mxu0 0
    %654 = vmatprep.subr.bf16.mxu0 0
    %655 = vmatpush1.bf16.msra.mxu0 0
    %656 = vmatprep.subr.bf16.mxu0 0
    %657 = vmatpush1.bf16.msra.mxu0 0
    %658 = vmatprep.subr.bf16.mxu0 0
    %659 = vmatpush1.bf16.msra.mxu0 0
    %660 = vmatprep.subr.bf16.mxu0 0
    %661 = vmatpush1.bf16.msra.mxu0 0
    %662 = vmatprep.subr.bf16.mxu0 0
    %663 = vmatpush1.bf16.msra.mxu0 0
    %664 = vmatprep.subr.bf16.mxu0 0
    %665 = vmatpush1.bf16.msra.mxu0 %v642
    %666 = vmatprep.subr.bf16.mxu0 0
    %667 = vmatpush2.bf16.msra.mxu0 0
    %668 = vmatprep.subr.bf16.mxu0 0
    %669 = vmatpush2.bf16.msra.mxu0 0
    %670 = vmatprep.subr.bf16.mxu0 0
    %671 = vmatpush2.bf16.msra.mxu0 0
    %672 = vmatprep.subr.bf16.mxu0 0
    %673 = vmatpush2.bf16.msra.mxu0 0
    %674 = vmatprep.subr.bf16.mxu0 0
    %675 = vmatpush2.bf16.msra.mxu0 0
    %676 = vmatprep.subr.bf16.mxu0 0
    %677 = vmatpush2.bf16.msra.mxu0 0
    %678 = vmatprep.subr.bf16.mxu0 0
    %679 = vmatpush2.bf16.msra.mxu0 0
    %680 = vmatprep.subr.bf16.mxu0 0
    %681 = vmatpush2.bf16.msra.mxu0 0
    %682 = vmatprep.mubr.bf16.mxu0 0
    %683 = vmatmul.mubr.bf16.gmra.mxu0 %v645
    %v684 = vpop.f32.mrf.mxu0
    %v685 = vadd.f32 0.0, %v684
    %v686 = vpop.f32.mrf.mxu0
    %v687 = vpop.f32.mrf.mxu0
    %v688 = vadd.f32 0.0, %v687
    %v689 = vpop.f32.mrf.mxu0
    %690 = vmatprep.mubr.bf16.mxu0 0
    %691 = vmatmul.mubr.bf16.gmra.mxu0 %v648
    %v692 = vpop.f32.mrf.mxu0
    %v693 = vadd.f32 0.0, %v692
    %v694 = vpop.f32.mrf.mxu0
    %v695 = vpop.f32.mrf.mxu0
    %v696 = vadd.f32 0.0, %v695
    %v697 = vpop.f32.mrf.mxu0
    %698 = vdwg.mxu0
    %v701 = vunpack.c.l.b16 %v276
    %v702 = vunpack.c.l.b16 %v277
    %v703 = vpack.c.b16 %v702, %v701
    %v706 = vsel %vm290, %v454, 0
    %v709 = vsel %vm290, %v455, 0
    %711 = vmatprep.subr.bf16.mxu0 0
    %712 = vmatpush1.bf16.msra.mxu0 0
    %713 = vmatprep.subr.bf16.mxu0 0
    %714 = vmatpush1.bf16.msra.mxu0 0
    %715 = vmatprep.subr.bf16.mxu0 0
    %716 = vmatpush1.bf16.msra.mxu0 0
    %717 = vmatprep.subr.bf16.mxu0 0
    %718 = vmatpush1.bf16.msra.mxu0 0
    %719 = vmatprep.subr.bf16.mxu0 0
    %720 = vmatpush1.bf16.msra.mxu0 0
    %721 = vmatprep.subr.bf16.mxu0 0
    %722 = vmatpush1.bf16.msra.mxu0 0
    %723 = vmatprep.subr.bf16.mxu0 0
    %724 = vmatpush1.bf16.msra.mxu0 0
    %725 = vmatprep.subr.bf16.mxu0 0
    %726 = vmatpush1.bf16.msra.mxu0 %v703
    %727 = vmatprep.subr.bf16.mxu0 0
    %728 = vmatpush2.bf16.msra.mxu0 0
    %729 = vmatprep.subr.bf16.mxu0 0
    %730 = vmatpush2.bf16.msra.mxu0 0
    %731 = vmatprep.subr.bf16.mxu0 0
    %732 = vmatpush2.bf16.msra.mxu0 0
    %733 = vmatprep.subr.bf16.mxu0 0
    %734 = vmatpush2.bf16.msra.mxu0 0
    %735 = vmatprep.subr.bf16.mxu0 0
    %736 = vmatpush2.bf16.msra.mxu0 0
    %737 = vmatprep.subr.bf16.mxu0 0
    %738 = vmatpush2.bf16.msra.mxu0 0
    %739 = vmatprep.subr.bf16.mxu0 0
    %740 = vmatpush2.bf16.msra.mxu0 0
    %741 = vmatprep.subr.bf16.mxu0 0
    %742 = vmatpush2.bf16.msra.mxu0 0
    %743 = vmatprep.mubr.bf16.mxu0 0
    %744 = vmatmul.mubr.bf16.gmra.mxu0 %v706
    %v745 = vpop.f32.mrf.mxu0
    %v746 = vadd.f32 %v685, %v745
    %v747 = vpop.f32.mrf.mxu0
    %v748 = vpop.f32.mrf.mxu0
    %v749 = vadd.f32 %v688, %v748
    %v750 = vpop.f32.mrf.mxu0
    %751 = vmatprep.mubr.bf16.mxu0 0
    %752 = vmatmul.mubr.bf16.gmra.mxu0 %v709
    %v753 = vpop.f32.mrf.mxu0
    %v754 = vadd.f32 %v693, %v753
    %v755 = vpop.f32.mrf.mxu0
    %v756 = vpop.f32.mrf.mxu0
    %v757 = vadd.f32 %v696, %v756
    %v758 = vpop.f32.mrf.mxu0
    %759 = vdwg.mxu0
    %760 = vrot.lane.b32.xlu0 %v270, 96
    %v761 = vpop.permute.xlu0 %760
    %762 = vrot.lane.b32.xlu0 %v271, 96
    %v763 = vpop.permute.xlu0 %762
    %764 = vrot.lane.b32.xlu0 %v272, 32
    %v765 = vpop.permute.xlu0 %764
    %766 = vrot.lane.b32.xlu0 %v273, 32
    %v767 = vpop.permute.xlu0 %766
    %v769 = vsel %vm290, %v761, 0
    %v772 = vsel %vm290, %v763, 0
    %v775 = vsel %vm290, %v765, 0
    %v778 = vsel %vm290, %v767, 0
    %780 = vmatprep.subr.bf16.mxu0 0
    %781 = vmatpush1.bf16.xpose.msra.mxu0 0
    %782 = vmatprep.subr.bf16.mxu0 0
    %783 = vmatpush1.bf16.xpose.msra.mxu0 0
    %784 = vmatprep.subr.bf16.mxu0 0
    %785 = vmatpush1.bf16.xpose.msra.mxu0 0
    %786 = vmatprep.subr.bf16.mxu0 0
    %787 = vmatpush1.bf16.xpose.msra.mxu0 0
    %788 = vmatprep.subr.bf16.mxu0 0
    %789 = vmatpush1.bf16.xpose.msra.mxu0 0
    %790 = vmatprep.subr.bf16.mxu0 0
    %791 = vmatpush1.bf16.xpose.msra.mxu0 0
    %792 = vmatprep.subr.bf16.mxu0 0
    %793 = vmatpush1.bf16.xpose.msra.mxu0 %v778
    %794 = vmatprep.subr.bf16.mxu0 0
    %795 = vmatpush1.bf16.xpose.msra.mxu0 %v775
    %796 = vmatprep.subr.bf16.mxu0 0
    %797 = vmatpush2.bf16.xpose.msra.mxu0 0
    %798 = vmatprep.subr.bf16.mxu0 0
    %799 = vmatpush2.bf16.xpose.msra.mxu0 0
    %800 = vmatprep.subr.bf16.mxu0 0
    %801 = vmatpush2.bf16.xpose.msra.mxu0 0
    %802 = vmatprep.subr.bf16.mxu0 0
    %803 = vmatpush2.bf16.xpose.msra.mxu0 0
    %804 = vmatprep.subr.bf16.mxu0 0
    %805 = vmatpush2.bf16.xpose.msra.mxu0 0
    %806 = vmatprep.subr.bf16.mxu0 0
    %807 = vmatpush2.bf16.xpose.msra.mxu0 0
    %808 = vmatprep.subr.bf16.mxu0 0
    %809 = vmatpush2.bf16.xpose.msra.mxu0 0
    %810 = vmatprep.subr.bf16.mxu0 0
    %811 = vmatpush2.bf16.xpose.msra.mxu0 0
    %812 = vmatprep.mubr.bf16.mxu0 0
    %813 = vmatmul.mubr.bf16.gmra.mxu0 %v769
    %v814 = vpop.f32.mrf.mxu0
    %v815 = vadd.f32 %v65, %v814
    %v816 = vpop.f32.mrf.mxu0
    %v817 = vpop.f32.mrf.mxu0
    %v818 = vadd.f32 %v66, %v817
    %v819 = vpop.f32.mrf.mxu0
    %820 = vmatprep.mubr.bf16.mxu0 0
    %821 = vmatmul.mubr.bf16.gmra.mxu0 %v772
    %v822 = vpop.f32.mrf.mxu0
    %v823 = vadd.f32 %v67, %v822
    %v824 = vpop.f32.mrf.mxu0
    %v825 = vpop.f32.mrf.mxu0
    %v826 = vadd.f32 %v68, %v825
    %v827 = vpop.f32.mrf.mxu0
    %828 = vdwg.mxu0
    %v829 = vsel %vm352, %v815, -inf
    %830 = vmax.xlane.f32.xlu0 %v829
    %v831 = vpop.xlane.xlu0 %830
    %v832 = vsel %vm352, %v818, -inf
    %833 = vmax.xlane.f32.xlu0 %v832
    %v834 = vpop.xlane.xlu0 %833
    %v835 = vsel %vm352, %v823, -inf
    %836 = vmax.xlane.f32.xlu0 %v835
    %v837 = vpop.xlane.xlu0 %836
    %v838 = vsel %vm352, %v826, -inf
    %839 = vmax.xlane.f32.xlu0 %v838
    %v840 = vpop.xlane.xlu0 %839
    %v841 = vsub.f32 %v815, %v831
    %v842 = vsub.f32 %v818, %v834
    %v843 = vsub.f32 %v823, %v837
    %v844 = vsub.f32 %v826, %v840
    %v845 = vmul.f32 %v841, 1.442695
    %v846 = vpow.pop %v845
    %v847 = vmul.f32 %v842, 1.442695
    %v848 = vpow.pop %v847
    %v849 = vmul.f32 %v843, 1.442695
    %v850 = vpow.pop %v849
    %v851 = vmul.f32 %v844, 1.442695
    %v852 = vpow.pop %v851
    %v853 = vsel %vm352, %v846, 0.0
    %854 = vadd.xlane.f32.xlu0 %v853
    %v855 = vpop.xlane.xlu0 %854
    %v856 = vsel %vm352, %v848, 0.0
    %857 = vadd.xlane.f32.xlu0 %v856
    %v858 = vpop.xlane.xlu0 %857
    %v859 = vsel %vm352, %v850, 0.0
    %860 = vadd.xlane.f32.xlu0 %v859
    %v861 = vpop.xlane.xlu0 %860
    %v862 = vsel %vm352, %v852, 0.0
    %863 = vadd.xlane.f32.xlu0 %v862
    %v864 = vpop.xlane.xlu0 %863
    %v865 = vrcp.pop %v855
    %v866 = vrcp.pop %v858
    %v867 = vrcp.pop %v861
    %v868 = vrcp.pop %v864
    %v869 = vmul.f32 %v846, %v865
    %v870 = vmul.f32 %v848, %v866
    %v871 = vmul.f32 %v850, %v867
    %v872 = vmul.f32 %v852, %v868
    %v873 = vpack.c.bf16 %v870, %v869
    %v874 = vpack.c.bf16 %v872, %v871
    %875 = vrot.lane.b32.xlu0 %v274, 96
    %v876 = vpop.permute.xlu0 %875
    %877 = vrot.lane.b32.xlu0 %v275, 96
    %v878 = vpop.permute.xlu0 %877
    %v882 = vsel %vm352, %v873, 0
    %v885 = vsel %vm352, %v874, 0
    %887 = vmatprep.subr.bf16.mxu0 0
    %888 = vmatpush1.bf16.msra.mxu0 0
    %889 = vmatprep.subr.bf16.mxu0 0
    %890 = vmatpush1.bf16.msra.mxu0 0
    %891 = vmatprep.subr.bf16.mxu0 0
    %892 = vmatpush1.bf16.msra.mxu0 0
    %893 = vmatprep.subr.bf16.mxu0 0
    %894 = vmatpush1.bf16.msra.mxu0 0
    %895 = vmatprep.subr.bf16.mxu0 0
    %896 = vmatpush1.bf16.msra.mxu0 0
    %897 = vmatprep.subr.bf16.mxu0 0
    %898 = vmatpush1.bf16.msra.mxu0 0
    %899 = vmatprep.subr.bf16.mxu0 0
    %900 = vmatpush1.bf16.msra.mxu0 %v878
    %901 = vmatprep.subr.bf16.mxu0 0
    %902 = vmatpush1.bf16.msra.mxu0 %v876
    %903 = vmatprep.subr.bf16.mxu0 0
    %904 = vmatpush2.bf16.msra.mxu0 0
    %905 = vmatprep.subr.bf16.mxu0 0
    %906 = vmatpush2.bf16.msra.mxu0 0
    %907 = vmatprep.subr.bf16.mxu0 0
    %908 = vmatpush2.bf16.msra.mxu0 0
    %909 = vmatprep.subr.bf16.mxu0 0
    %910 = vmatpush2.bf16.msra.mxu0 0
    %911 = vmatprep.subr.bf16.mxu0 0
    %912 = vmatpush2.bf16.msra.mxu0 0
    %913 = vmatprep.subr.bf16.mxu0 0
    %914 = vmatpush2.bf16.msra.mxu0 0
    %915 = vmatprep.subr.bf16.mxu0 0
    %916 = vmatpush2.bf16.msra.mxu0 0
    %917 = vmatprep.subr.bf16.mxu0 0
    %918 = vmatpush2.bf16.msra.mxu0 0
    %919 = vmatprep.mubr.bf16.mxu0 0
    %920 = vmatmul.mubr.bf16.gmra.mxu0 %v882
    %v921 = vpop.f32.mrf.mxu0
    %v922 = vadd.f32 0.0, %v921
    %v923 = vpop.f32.mrf.mxu0
    %v924 = vpop.f32.mrf.mxu0
    %v925 = vadd.f32 0.0, %v924
    %v926 = vpop.f32.mrf.mxu0
    %927 = vmatprep.mubr.bf16.mxu0 0
    %928 = vmatmul.mubr.bf16.gmra.mxu0 %v885
    %v929 = vpop.f32.mrf.mxu0
    %v930 = vadd.f32 0.0, %v929
    %v931 = vpop.f32.mrf.mxu0
    %v932 = vpop.f32.mrf.mxu0
    %v933 = vadd.f32 0.0, %v932
    %v934 = vpop.f32.mrf.mxu0
    %935 = vdwg.mxu0
    %v936 = vpack.c.bf16 %v925, %v922
    %v937 = vpack.c.bf16 %v933, %v930
    %v940 = vunpack.c.l.b16 %v280
    %v941 = vunpack.c.l.b16 %v281
    %v942 = vpack.c.b16 %v941, %v940
    %v945 = vsel %vm290, %v936, 0
    %v948 = vsel %vm290, %v937, 0
    %950 = vmatprep.subr.bf16.mxu0 0
    %951 = vmatpush1.bf16.msra.mxu0 0
    %952 = vmatprep.subr.bf16.mxu0 0
    %953 = vmatpush1.bf16.msra.mxu0 0
    %954 = vmatprep.subr.bf16.mxu0 0
    %955 = vmatpush1.bf16.msra.mxu0 0
    %956 = vmatprep.subr.bf16.mxu0 0
    %957 = vmatpush1.bf16.msra.mxu0 0
    %958 = vmatprep.subr.bf16.mxu0 0
    %959 = vmatpush1.bf16.msra.mxu0 0
    %960 = vmatprep.subr.bf16.mxu0 0
    %961 = vmatpush1.bf16.msra.mxu0 0
    %962 = vmatprep.subr.bf16.mxu0 0
    %963 = vmatpush1.bf16.msra.mxu0 0
    %964 = vmatprep.subr.bf16.mxu0 0
    %965 = vmatpush1.bf16.msra.mxu0 %v942
    %966 = vmatprep.subr.bf16.mxu0 0
    %967 = vmatpush2.bf16.msra.mxu0 0
    %968 = vmatprep.subr.bf16.mxu0 0
    %969 = vmatpush2.bf16.msra.mxu0 0
    %970 = vmatprep.subr.bf16.mxu0 0
    %971 = vmatpush2.bf16.msra.mxu0 0
    %972 = vmatprep.subr.bf16.mxu0 0
    %973 = vmatpush2.bf16.msra.mxu0 0
    %974 = vmatprep.subr.bf16.mxu0 0
    %975 = vmatpush2.bf16.msra.mxu0 0
    %976 = vmatprep.subr.bf16.mxu0 0
    %977 = vmatpush2.bf16.msra.mxu0 0
    %978 = vmatprep.subr.bf16.mxu0 0
    %979 = vmatpush2.bf16.msra.mxu0 0
    %980 = vmatprep.subr.bf16.mxu0 0
    %981 = vmatpush2.bf16.msra.mxu0 0
    %982 = vmatprep.mubr.bf16.mxu0 0
    %983 = vmatmul.mubr.bf16.gmra.mxu0 %v945
    %v984 = vpop.f32.mrf.mxu0
    %v985 = vadd.f32 0.0, %v984
    %v986 = vpop.f32.mrf.mxu0
    %v987 = vpop.f32.mrf.mxu0
    %v988 = vadd.f32 0.0, %v987
    %v989 = vpop.f32.mrf.mxu0
    %990 = vmatprep.mubr.bf16.mxu0 0
    %991 = vmatmul.mubr.bf16.gmra.mxu0 %v948
    %v992 = vpop.f32.mrf.mxu0
    %v993 = vadd.f32 0.0, %v992
    %v994 = vpop.f32.mrf.mxu0
    %v995 = vpop.f32.mrf.mxu0
    %v996 = vadd.f32 0.0, %v995
    %v997 = vpop.f32.mrf.mxu0
    %998 = vdwg.mxu0
    %v999 = vadd.f32 %v746, %v985
    %v1000 = vadd.f32 %v749, %v988
    %v1001 = vadd.f32 %v754, %v993
    %v1002 = vadd.f32 %v757, %v996
    %1003 = vrot.lane.b32.xlu0 %v270, 80
    %v1004 = vpop.permute.xlu0 %1003
    %1005 = vrot.lane.b32.xlu0 %v271, 80
    %v1006 = vpop.permute.xlu0 %1005
    %1007 = vrot.lane.b32.xlu0 %v272, 16
    %v1008 = vpop.permute.xlu0 %1007
    %1009 = vrot.lane.b32.xlu0 %v273, 16
    %v1010 = vpop.permute.xlu0 %1009
    %v1012 = vsel %vm290, %v1004, 0
    %v1015 = vsel %vm290, %v1006, 0
    %v1018 = vsel %vm290, %v1008, 0
    %v1021 = vsel %vm290, %v1010, 0
    %1023 = vmatprep.subr.bf16.mxu0 0
    %1024 = vmatpush1.bf16.xpose.msra.mxu0 0
    %1025 = vmatprep.subr.bf16.mxu0 0
    %1026 = vmatpush1.bf16.xpose.msra.mxu0 0
    %1027 = vmatprep.subr.bf16.mxu0 0
    %1028 = vmatpush1.bf16.xpose.msra.mxu0 0
    %1029 = vmatprep.subr.bf16.mxu0 0
    %1030 = vmatpush1.bf16.xpose.msra.mxu0 0
    %1031 = vmatprep.subr.bf16.mxu0 0
    %1032 = vmatpush1.bf16.xpose.msra.mxu0 0
    %1033 = vmatprep.subr.bf16.mxu0 0
    %1034 = vmatpush1.bf16.xpose.msra.mxu0 0
    %1035 = vmatprep.subr.bf16.mxu0 0
    %1036 = vmatpush1.bf16.xpose.msra.mxu0 %v1021
    %1037 = vmatprep.subr.bf16.mxu0 0
    %1038 = vmatpush1.bf16.xpose.msra.mxu0 %v1018
    %1039 = vmatprep.subr.bf16.mxu0 0
    %1040 = vmatpush2.bf16.xpose.msra.mxu0 0
    %1041 = vmatprep.subr.bf16.mxu0 0
    %1042 = vmatpush2.bf16.xpose.msra.mxu0 0
    %1043 = vmatprep.subr.bf16.mxu0 0
    %1044 = vmatpush2.bf16.xpose.msra.mxu0 0
    %1045 = vmatprep.subr.bf16.mxu0 0
    %1046 = vmatpush2.bf16.xpose.msra.mxu0 0
    %1047 = vmatprep.subr.bf16.mxu0 0
    %1048 = vmatpush2.bf16.xpose.msra.mxu0 0
    %1049 = vmatprep.subr.bf16.mxu0 0
    %1050 = vmatpush2.bf16.xpose.msra.mxu0 0
    %1051 = vmatprep.subr.bf16.mxu0 0
    %1052 = vmatpush2.bf16.xpose.msra.mxu0 0
    %1053 = vmatprep.subr.bf16.mxu0 0
    %1054 = vmatpush2.bf16.xpose.msra.mxu0 0
    %1055 = vmatprep.mubr.bf16.mxu0 0
    %1056 = vmatmul.mubr.bf16.gmra.mxu0 %v1012
    %v1057 = vpop.f32.mrf.mxu0
    %v1058 = vadd.f32 %v65, %v1057
    %v1059 = vpop.f32.mrf.mxu0
    %v1060 = vpop.f32.mrf.mxu0
    %v1061 = vadd.f32 %v66, %v1060
    %v1062 = vpop.f32.mrf.mxu0
    %1063 = vmatprep.mubr.bf16.mxu0 0
    %1064 = vmatmul.mubr.bf16.gmra.mxu0 %v1015
    %v1065 = vpop.f32.mrf.mxu0
    %v1066 = vadd.f32 %v67, %v1065
    %v1067 = vpop.f32.mrf.mxu0
    %v1068 = vpop.f32.mrf.mxu0
    %v1069 = vadd.f32 %v68, %v1068
    %v1070 = vpop.f32.mrf.mxu0
    %1071 = vdwg.mxu0
    %v1072 = vsel %vm352, %v1058, -inf
    %1073 = vmax.xlane.f32.xlu0 %v1072
    %v1074 = vpop.xlane.xlu0 %1073
    %v1075 = vsel %vm352, %v1061, -inf
    %1076 = vmax.xlane.f32.xlu0 %v1075
    %v1077 = vpop.xlane.xlu0 %1076
    %v1078 = vsel %vm352, %v1066, -inf
    %1079 = vmax.xlane.f32.xlu0 %v1078
    %v1080 = vpop.xlane.xlu0 %1079
    %v1081 = vsel %vm352, %v1069, -inf
    %1082 = vmax.xlane.f32.xlu0 %v1081
    %v1083 = vpop.xlane.xlu0 %1082
    %v1084 = vsub.f32 %v1058, %v1074
    %v1085 = vsub.f32 %v1061, %v1077
    %v1086 = vsub.f32 %v1066, %v1080
    %v1087 = vsub.f32 %v1069, %v1083
    %v1088 = vmul.f32 %v1084, 1.442695
    %v1089 = vpow.pop %v1088
    %v1090 = vmul.f32 %v1085, 1.442695
    %v1091 = vpow.pop %v1090
    %v1092 = vmul.f32 %v1086, 1.442695
    %v1093 = vpow.pop %v1092
    %v1094 = vmul.f32 %v1087, 1.442695
    %v1095 = vpow.pop %v1094
    %v1096 = vsel %vm352, %v1089, 0.0
    %1097 = vadd.xlane.f32.xlu0 %v1096
    %v1098 = vpop.xlane.xlu0 %1097
    %v1099 = vsel %vm352, %v1091, 0.0
    %1100 = vadd.xlane.f32.xlu0 %v1099
    %v1101 = vpop.xlane.xlu0 %1100
    %v1102 = vsel %vm352, %v1093, 0.0
    %1103 = vadd.xlane.f32.xlu0 %v1102
    %v1104 = vpop.xlane.xlu0 %1103
    %v1105 = vsel %vm352, %v1095, 0.0
    %1106 = vadd.xlane.f32.xlu0 %v1105
    %v1107 = vpop.xlane.xlu0 %1106
    %v1108 = vrcp.pop %v1098
    %v1109 = vrcp.pop %v1101
    %v1110 = vrcp.pop %v1104
    %v1111 = vrcp.pop %v1107
    %v1112 = vmul.f32 %v1089, %v1108
    %v1113 = vmul.f32 %v1091, %v1109
    %v1114 = vmul.f32 %v1093, %v1110
    %v1115 = vmul.f32 %v1095, %v1111
    %v1116 = vpack.c.bf16 %v1113, %v1112
    %v1117 = vpack.c.bf16 %v1115, %v1114
    %1118 = vrot.lane.b32.xlu0 %v274, 80
    %v1119 = vpop.permute.xlu0 %1118
    %1120 = vrot.lane.b32.xlu0 %v275, 80
    %v1121 = vpop.permute.xlu0 %1120
    %v1125 = vsel %vm352, %v1116, 0
    %v1128 = vsel %vm352, %v1117, 0
    %1130 = vmatprep.subr.bf16.mxu0 0
    %1131 = vmatpush1.bf16.msra.mxu0 0
    %1132 = vmatprep.subr.bf16.mxu0 0
    %1133 = vmatpush1.bf16.msra.mxu0 0
    %1134 = vmatprep.subr.bf16.mxu0 0
    %1135 = vmatpush1.bf16.msra.mxu0 0
    %1136 = vmatprep.subr.bf16.mxu0 0
    %1137 = vmatpush1.bf16.msra.mxu0 0
    %1138 = vmatprep.subr.bf16.mxu0 0
    %1139 = vmatpush1.bf16.msra.mxu0 0
    %1140 = vmatprep.subr.bf16.mxu0 0
    %1141 = vmatpush1.bf16.msra.mxu0 0
    %1142 = vmatprep.subr.bf16.mxu0 0
    %1143 = vmatpush1.bf16.msra.mxu0 %v1121
    %1144 = vmatprep.subr.bf16.mxu0 0
    %1145 = vmatpush1.bf16.msra.mxu0 %v1119
    %1146 = vmatprep.subr.bf16.mxu0 0
    %1147 = vmatpush2.bf16.msra.mxu0 0
    %1148 = vmatprep.subr.bf16.mxu0 0
    %1149 = vmatpush2.bf16.msra.mxu0 0
    %1150 = vmatprep.subr.bf16.mxu0 0
    %1151 = vmatpush2.bf16.msra.mxu0 0
    %1152 = vmatprep.subr.bf16.mxu0 0
    %1153 = vmatpush2.bf16.msra.mxu0 0
    %1154 = vmatprep.subr.bf16.mxu0 0
    %1155 = vmatpush2.bf16.msra.mxu0 0
    %1156 = vmatprep.subr.bf16.mxu0 0
    %1157 = vmatpush2.bf16.msra.mxu0 0
    %1158 = vmatprep.subr.bf16.mxu0 0
    %1159 = vmatpush2.bf16.msra.mxu0 0
    %1160 = vmatprep.subr.bf16.mxu0 0
    %1161 = vmatpush2.bf16.msra.mxu0 0
    %1162 = vmatprep.mubr.bf16.mxu0 0
    %1163 = vmatmul.mubr.bf16.gmra.mxu0 %v1125
    %v1164 = vpop.f32.mrf.mxu0
    %v1165 = vadd.f32 0.0, %v1164
    %v1166 = vpop.f32.mrf.mxu0
    %v1167 = vpop.f32.mrf.mxu0
    %v1168 = vadd.f32 0.0, %v1167
    %v1169 = vpop.f32.mrf.mxu0
    %1170 = vmatprep.mubr.bf16.mxu0 0
    %1171 = vmatmul.mubr.bf16.gmra.mxu0 %v1128
    %v1172 = vpop.f32.mrf.mxu0
    %v1173 = vadd.f32 0.0, %v1172
    %v1174 = vpop.f32.mrf.mxu0
    %v1175 = vpop.f32.mrf.mxu0
    %v1176 = vadd.f32 0.0, %v1175
    %v1177 = vpop.f32.mrf.mxu0
    %1178 = vdwg.mxu0
    %v1179 = vpack.c.bf16 %v1168, %v1165
    %v1180 = vpack.c.bf16 %v1176, %v1173
    %v1183 = vunpack.c.l.b16 %v282
    %v1184 = vunpack.c.l.b16 %v283
    %v1185 = vpack.c.b16 %v1184, %v1183
    %v1188 = vsel %vm290, %v1179, 0
    %v1191 = vsel %vm290, %v1180, 0
    %1193 = vmatprep.subr.bf16.mxu0 0
    %1194 = vmatpush1.bf16.msra.mxu0 0
    %1195 = vmatprep.subr.bf16.mxu0 0
    %1196 = vmatpush1.bf16.msra.mxu0 0
    %1197 = vmatprep.subr.bf16.mxu0 0
    %1198 = vmatpush1.bf16.msra.mxu0 0
    %1199 = vmatprep.subr.bf16.mxu0 0
    %1200 = vmatpush1.bf16.msra.mxu0 0
    %1201 = vmatprep.subr.bf16.mxu0 0
    %1202 = vmatpush1.bf16.msra.mxu0 0
    %1203 = vmatprep.subr.bf16.mxu0 0
    %1204 = vmatpush1.bf16.msra.mxu0 0
    %1205 = vmatprep.subr.bf16.mxu0 0
    %1206 = vmatpush1.bf16.msra.mxu0 0
    %1207 = vmatprep.subr.bf16.mxu0 0
    %1208 = vmatpush1.bf16.msra.mxu0 %v1185
    %1209 = vmatprep.subr.bf16.mxu0 0
    %1210 = vmatpush2.bf16.msra.mxu0 0
    %1211 = vmatprep.subr.bf16.mxu0 0
    %1212 = vmatpush2.bf16.msra.mxu0 0
    %1213 = vmatprep.subr.bf16.mxu0 0
    %1214 = vmatpush2.bf16.msra.mxu0 0
    %1215 = vmatprep.subr.bf16.mxu0 0
    %1216 = vmatpush2.bf16.msra.mxu0 0
    %1217 = vmatprep.subr.bf16.mxu0 0
    %1218 = vmatpush2.bf16.msra.mxu0 0
    %1219 = vmatprep.subr.bf16.mxu0 0
    %1220 = vmatpush2.bf16.msra.mxu0 0
    %1221 = vmatprep.subr.bf16.mxu0 0
    %1222 = vmatpush2.bf16.msra.mxu0 0
    %1223 = vmatprep.subr.bf16.mxu0 0
    %1224 = vmatpush2.bf16.msra.mxu0 0
    %1225 = vmatprep.mubr.bf16.mxu0 0
    %1226 = vmatmul.mubr.bf16.gmra.mxu0 %v1188
    %v1227 = vpop.f32.mrf.mxu0
    %v1228 = vadd.f32 0.0, %v1227
    %v1229 = vpop.f32.mrf.mxu0
    %v1230 = vpop.f32.mrf.mxu0
    %v1231 = vadd.f32 0.0, %v1230
    %v1232 = vpop.f32.mrf.mxu0
    %1233 = vmatprep.mubr.bf16.mxu0 0
    %1234 = vmatmul.mubr.bf16.gmra.mxu0 %v1191
    %v1235 = vpop.f32.mrf.mxu0
    %v1236 = vadd.f32 0.0, %v1235
    %v1237 = vpop.f32.mrf.mxu0
    %v1238 = vpop.f32.mrf.mxu0
    %v1239 = vadd.f32 0.0, %v1238
    %v1240 = vpop.f32.mrf.mxu0
    %1241 = vdwg.mxu0
    %v1242 = vadd.f32 %v999, %v1228
    %v1243 = vadd.f32 %v1000, %v1231
    %v1244 = vadd.f32 %v1001, %v1236
    %v1245 = vadd.f32 %v1002, %v1239
    %v1246 = vadd.f32 %v61, %v1242
    %v1247 = vadd.f32 %v62, %v1243
    %v1248 = vadd.f32 %v63, %v1244
    %v1249 = vadd.f32 %v64, %v1245
    %v1250 = vld [vmem:[%s8] sm:$0x1]
    %v1252 = vlaneseq
    %v1253 = vshrl.u32 %v1252, 7
    %v1254 = vsub.s32 0, %v1253
    %v1255 = vrot.slane %v1250, %v1254
    %v1257 = vadd.f32 %v1246, %v1255
    %v1258 = vadd.f32 %v1247, %v1255
    %v1259 = vadd.f32 %v1248, %v1255
    %v1260 = vadd.f32 %v1249, %v1255
    %v1261 = vld [vmem:[%s9] sm:$0x1]
    %v1262 = vld [vmem:[%s10] sm:$0x1]
    %v1263 = vsel %vm71, %v1257, 0.0
    %1264 = vadd.xlane.f32.xlu0 %v1263
    %v1265 = vpop.xlane.xlu0 %1264
    %v1266 = vsel %vm71, %v1258, 0.0
    %1267 = vadd.xlane.f32.xlu0 %v1266
    %v1268 = vpop.xlane.xlu0 %1267
    %v1269 = vsel %vm71, %v1259, 0.0
    %1270 = vadd.xlane.f32.xlu0 %v1269
    %v1271 = vpop.xlane.xlu0 %1270
    %v1272 = vsel %vm71, %v1260, 0.0
    %1273 = vadd.xlane.f32.xlu0 %v1272
    %v1274 = vpop.xlane.xlu0 %1273
    %v1275 = vmul.f32 %v1265, %v84
    %v1276 = vmul.f32 %v1268, %v84
    %v1277 = vmul.f32 %v1271, %v84
    %v1278 = vmul.f32 %v1274, %v84
    %v1279 = vsub.f32 %v1257, %v1275
    %v1280 = vsub.f32 %v1258, %v1276
    %v1281 = vsub.f32 %v1259, %v1277
    %v1282 = vsub.f32 %v1260, %v1278
    %v1283 = vmul.f32 %v1279, %v1279
    %v1284 = vmul.f32 %v1280, %v1280
    %v1285 = vmul.f32 %v1281, %v1281
    %v1286 = vmul.f32 %v1282, %v1282
    %v1287 = vsel %vm71, %v1283, 0.0
    %1288 = vadd.xlane.f32.xlu0 %v1287
    %v1289 = vpop.xlane.xlu0 %1288
    %v1290 = vsel %vm71, %v1284, 0.0
    %1291 = vadd.xlane.f32.xlu0 %v1290
    %v1292 = vpop.xlane.xlu0 %1291
    %v1293 = vsel %vm71, %v1285, 0.0
    %1294 = vadd.xlane.f32.xlu0 %v1293
    %v1295 = vpop.xlane.xlu0 %1294
    %v1296 = vsel %vm71, %v1286, 0.0
    %1297 = vadd.xlane.f32.xlu0 %v1296
    %v1298 = vpop.xlane.xlu0 %1297
    %v1299 = vmul.f32 %v1289, %v84
    %v1300 = vmul.f32 %v1292, %v84
    %v1301 = vmul.f32 %v1295, %v84
    %v1302 = vmul.f32 %v1298, %v84
    %v1303 = vadd.f32 %v1299, 1e-05
    %v1304 = vadd.f32 %v1300, 1e-05
    %v1305 = vadd.f32 %v1301, 1e-05
    %v1306 = vadd.f32 %v1302, 1e-05
    %v1307 = vrsqrt.pop %v1303
    %v1308 = vrsqrt.pop %v1304
    %v1309 = vrsqrt.pop %v1305
    %v1310 = vrsqrt.pop %v1306
    %v1311 = vmul.f32 %v1279, %v1307
    %v1312 = vmul.f32 %v1280, %v1308
    %v1313 = vmul.f32 %v1281, %v1309
    %v1314 = vmul.f32 %v1282, %v1310
    %v1316 = vlaneseq
    %v1317 = vshrl.u32 %v1316, 7
    %v1318 = vsub.s32 0, %v1317
    %v1319 = vrot.slane %v1261, %v1318
    %v1321 = vmul.f32 %v1311, %v1319
    %v1322 = vmul.f32 %v1312, %v1319
    %v1323 = vmul.f32 %v1313, %v1319
    %v1324 = vmul.f32 %v1314, %v1319
    %v1326 = vlaneseq
    %v1327 = vshrl.u32 %v1326, 7
    %v1328 = vsub.s32 0, %v1327
    %v1329 = vrot.slane %v1262, %v1328
    %v1331 = vadd.f32 %v1321, %v1329
    %v1332 = vadd.f32 %v1322, %v1329
    %v1333 = vadd.f32 %v1323, %v1329
    %v1334 = vadd.f32 %v1324, %v1329
    %v1335 = vpack.c.bf16 %v1332, %v1331
    %v1336 = vpack.c.bf16 %v1334, %v1333
    %v1337 = vld [vmem:[%s11] sm:$0xff]
    %v1338 = vld [vmem:[%s11 + $0x8] sm:$0xff]
    %v1339 = vld [vmem:[%s11 + $0x10] sm:$0xff]
    %v1340 = vld [vmem:[%s11 + $0x18] sm:$0xff]
    %v1341 = vld [vmem:[%s11 + $0x20] sm:$0xff]
    %v1342 = vld [vmem:[%s11 + $0x28] sm:$0xff]
    %v1343 = vld [vmem:[%s11 + $0x30] sm:$0xff]
    %v1344 = vld [vmem:[%s11 + $0x38] sm:$0xff]
    %v1345 = vld [vmem:[%s12] sm:$0x3]
    %v1347 = vlaneseq
    %v1348 = vshrl.u32 %v1347, 7
    %v1349 = vsub.s32 0, %v1348
    %v1350 = vrot.slane %v1345, %v1349
    %v1351 = vlaneseq
    %v1352 = vshrl.u32 %v1351, 7
    %v1353 = vsub.s32 1, %v1352
    %v1354 = vrot.slane %v1345, %v1353
    %v1365 = vunpack.c.l.b16 %v1337
    %v1366 = vunpack.c.h.b16 %v1337
    %v1367 = vunpack.c.l.b16 %v1338
    %v1368 = vunpack.c.h.b16 %v1338
    %v1369 = vunpack.c.l.b16 %v1339
    %v1370 = vunpack.c.h.b16 %v1339
    %v1371 = vunpack.c.l.b16 %v1340
    %v1372 = vunpack.c.h.b16 %v1340
    %v1373 = vunpack.c.l.b16 %v1341
    %v1374 = vunpack.c.h.b16 %v1341
    %v1375 = vunpack.c.l.b16 %v1342
    %v1376 = vunpack.c.h.b16 %v1342
    %v1377 = vunpack.c.l.b16 %v1343
    %v1378 = vunpack.c.h.b16 %v1343
    %v1379 = vunpack.c.l.b16 %v1344
    %v1380 = vunpack.c.h.b16 %v1344
    %v1381 = vpack.c.b16 %v1367, %v1365
    %v1382 = vpack.c.b16 %v1368, %v1366
    %v1383 = vpack.c.b16 %v1371, %v1369
    %v1384 = vpack.c.b16 %v1372, %v1370
    %v1385 = vpack.c.b16 %v1375, %v1373
    %v1386 = vpack.c.b16 %v1376, %v1374
    %v1387 = vpack.c.b16 %v1379, %v1377
    %v1388 = vpack.c.b16 %v1380, %v1378
    %v1398 = vsel %vm71, %v1335, 0
    %v1401 = vsel %vm71, %v1336, 0
    %1403 = vmatprep.subr.bf16.mxu0 0
    %1404 = vmatpush1.bf16.msra.mxu0 0
    %1405 = vmatprep.subr.bf16.mxu0 0
    %1406 = vmatpush1.bf16.msra.mxu0 0
    %1407 = vmatprep.subr.bf16.mxu0 0
    %1408 = vmatpush1.bf16.msra.mxu0 0
    %1409 = vmatprep.subr.bf16.mxu0 0
    %1410 = vmatpush1.bf16.msra.mxu0 0
    %1411 = vmatprep.subr.bf16.mxu0 %v1388
    %1412 = vmatpush1.bf16.msra.mxu0 %v1387
    %1413 = vmatprep.subr.bf16.mxu0 %v1386
    %1414 = vmatpush1.bf16.msra.mxu0 %v1385
    %1415 = vmatprep.subr.bf16.mxu0 %v1384
    %1416 = vmatpush1.bf16.msra.mxu0 %v1383
    %1417 = vmatprep.subr.bf16.mxu0 %v1382
    %1418 = vmatpush1.bf16.msra.mxu0 %v1381
    %1419 = vmatprep.subr.bf16.mxu0 0
    %1420 = vmatpush2.bf16.msra.mxu0 0
    %1421 = vmatprep.subr.bf16.mxu0 0
    %1422 = vmatpush2.bf16.msra.mxu0 0
    %1423 = vmatprep.subr.bf16.mxu0 0
    %1424 = vmatpush2.bf16.msra.mxu0 0
    %1425 = vmatprep.subr.bf16.mxu0 0
    %1426 = vmatpush2.bf16.msra.mxu0 0
    %1427 = vmatprep.subr.bf16.mxu0 0
    %1428 = vmatpush2.bf16.msra.mxu0 0
    %1429 = vmatprep.subr.bf16.mxu0 0
    %1430 = vmatpush2.bf16.msra.mxu0 0
    %1431 = vmatprep.subr.bf16.mxu0 0
    %1432 = vmatpush2.bf16.msra.mxu0 0
    %1433 = vmatprep.subr.bf16.mxu0 0
    %1434 = vmatpush2.bf16.msra.mxu0 0
    %1435 = vmatprep.mubr.bf16.mxu0 0
    %1436 = vmatmul.mubr.bf16.gmra.mxu0 %v1398
    %v1437 = vpop.f32.mrf.mxu0
    %v1438 = vadd.f32 %v1350, %v1437
    %v1439 = vpop.f32.mrf.mxu0
    %v1440 = vadd.f32 %v1354, %v1439
    %v1441 = vpop.f32.mrf.mxu0
    %v1442 = vadd.f32 %v1350, %v1441
    %v1443 = vpop.f32.mrf.mxu0
    %v1444 = vadd.f32 %v1354, %v1443
    %1445 = vmatprep.mubr.bf16.mxu0 0
    %1446 = vmatmul.mubr.bf16.gmra.mxu0 %v1401
    %v1447 = vpop.f32.mrf.mxu0
    %v1448 = vadd.f32 %v1350, %v1447
    %v1449 = vpop.f32.mrf.mxu0
    %v1450 = vadd.f32 %v1354, %v1449
    %v1451 = vpop.f32.mrf.mxu0
    %v1452 = vadd.f32 %v1350, %v1451
    %v1453 = vpop.f32.mrf.mxu0
    %v1454 = vadd.f32 %v1354, %v1453
    %1455 = vdwg.mxu0
    %v1456 = vmul.f32 %v1438, %v1438
    %v1457 = vmul.f32 %v1440, %v1440
    %v1458 = vmul.f32 %v1442, %v1442
    %v1459 = vmul.f32 %v1444, %v1444
    %v1460 = vmul.f32 %v1448, %v1448
    %v1461 = vmul.f32 %v1450, %v1450
    %v1462 = vmul.f32 %v1452, %v1452
    %v1463 = vmul.f32 %v1454, %v1454
    %v1464 = vmul.f32 %v1438, %v1456
    %v1465 = vmul.f32 %v1440, %v1457
    %v1466 = vmul.f32 %v1442, %v1458
    %v1467 = vmul.f32 %v1444, %v1459
    %v1468 = vmul.f32 %v1448, %v1460
    %v1469 = vmul.f32 %v1450, %v1461
    %v1470 = vmul.f32 %v1452, %v1462
    %v1471 = vmul.f32 %v1454, %v1463
    %v1472 = vmul.f32 %v1464, 0.044715
    %v1473 = vmul.f32 %v1465, 0.044715
    %v1474 = vmul.f32 %v1466, 0.044715
    %v1475 = vmul.f32 %v1467, 0.044715
    %v1476 = vmul.f32 %v1468, 0.044715
    %v1477 = vmul.f32 %v1469, 0.044715
    %v1478 = vmul.f32 %v1470, 0.044715
    %v1479 = vmul.f32 %v1471, 0.044715
    %v1480 = vadd.f32 %v1438, %v1472
    %v1481 = vadd.f32 %v1440, %v1473
    %v1482 = vadd.f32 %v1442, %v1474
    %v1483 = vadd.f32 %v1444, %v1475
    %v1484 = vadd.f32 %v1448, %v1476
    %v1485 = vadd.f32 %v1450, %v1477
    %v1486 = vadd.f32 %v1452, %v1478
    %v1487 = vadd.f32 %v1454, %v1479
    %v1488 = vmul.f32 %v1480, 0.7978846
    %v1489 = vmul.f32 %v1481, 0.7978846
    %v1490 = vmul.f32 %v1482, 0.7978846
    %v1491 = vmul.f32 %v1483, 0.7978846
    %v1492 = vmul.f32 %v1484, 0.7978846
    %v1493 = vmul.f32 %v1485, 0.7978846
    %v1494 = vmul.f32 %v1486, 0.7978846
    %v1495 = vmul.f32 %v1487, 0.7978846
    %v1496 = vtanh.pop %v1488
    %v1497 = vtanh.pop %v1489
    %v1498 = vtanh.pop %v1490
    %v1499 = vtanh.pop %v1491
    %v1500 = vtanh.pop %v1492
    %v1501 = vtanh.pop %v1493
    %v1502 = vtanh.pop %v1494
    %v1503 = vtanh.pop %v1495
    %v1504 = vadd.f32 %v1496, 1.0
    %v1505 = vadd.f32 %v1497, 1.0
    %v1506 = vadd.f32 %v1498, 1.0
    %v1507 = vadd.f32 %v1499, 1.0
    %v1508 = vadd.f32 %v1500, 1.0
    %v1509 = vadd.f32 %v1501, 1.0
    %v1510 = vadd.f32 %v1502, 1.0
    %v1511 = vadd.f32 %v1503, 1.0
    %v1512 = vmul.f32 %v1504, 0.5
    %v1513 = vmul.f32 %v1505, 0.5
    %v1514 = vmul.f32 %v1506, 0.5
    %v1515 = vmul.f32 %v1507, 0.5
    %v1516 = vmul.f32 %v1508, 0.5
    %v1517 = vmul.f32 %v1509, 0.5
    %v1518 = vmul.f32 %v1510, 0.5
    %v1519 = vmul.f32 %v1511, 0.5
    %v1520 = vmul.f32 %v1438, %v1512
    %v1521 = vmul.f32 %v1440, %v1513
    %v1522 = vmul.f32 %v1442, %v1514
    %v1523 = vmul.f32 %v1444, %v1515
    %v1524 = vmul.f32 %v1448, %v1516
    %v1525 = vmul.f32 %v1450, %v1517
    %v1526 = vmul.f32 %v1452, %v1518
    %v1527 = vmul.f32 %v1454, %v1519
    %v1528 = vpack.c.bf16 %v1522, %v1520
    %v1529 = vpack.c.bf16 %v1523, %v1521
    %v1530 = vpack.c.bf16 %v1526, %v1524
    %v1531 = vpack.c.bf16 %v1527, %v1525
    %v1532 = vld [vmem:[%s13] sm:$0xf]
    %v1533 = vld [vmem:[%s13 + $0x4] sm:$0xf]
    %v1534 = vld [vmem:[%s13 + $0x8] sm:$0xf]
    %v1535 = vld [vmem:[%s13 + $0xc] sm:$0xf]
    %v1536 = vld [vmem:[%s13 + $0x10] sm:$0xf]
    %v1537 = vld [vmem:[%s13 + $0x14] sm:$0xf]
    %v1538 = vld [vmem:[%s13 + $0x18] sm:$0xf]
    %v1539 = vld [vmem:[%s13 + $0x1c] sm:$0xf]
    %v1540 = vld [vmem:[%s13 + $0x20] sm:$0xf]
    %v1541 = vld [vmem:[%s13 + $0x24] sm:$0xf]
    %v1542 = vld [vmem:[%s13 + $0x28] sm:$0xf]
    %v1543 = vld [vmem:[%s13 + $0x2c] sm:$0xf]
    %v1544 = vld [vmem:[%s13 + $0x30] sm:$0xf]
    %v1545 = vld [vmem:[%s13 + $0x34] sm:$0xf]
    %v1546 = vld [vmem:[%s13 + $0x38] sm:$0xf]
    %v1547 = vld [vmem:[%s13 + $0x3c] sm:$0xf]
    %v1548 = vld [vmem:[%s13 + $0x40] sm:$0xf]
    %v1549 = vld [vmem:[%s13 + $0x44] sm:$0xf]
    %v1550 = vld [vmem:[%s13 + $0x48] sm:$0xf]
    %v1551 = vld [vmem:[%s13 + $0x4c] sm:$0xf]
    %v1552 = vld [vmem:[%s13 + $0x50] sm:$0xf]
    %v1553 = vld [vmem:[%s13 + $0x54] sm:$0xf]
    %v1554 = vld [vmem:[%s13 + $0x58] sm:$0xf]
    %v1555 = vld [vmem:[%s13 + $0x5c] sm:$0xf]
    %v1556 = vld [vmem:[%s13 + $0x60] sm:$0xf]
    %v1557 = vld [vmem:[%s13 + $0x64] sm:$0xf]
    %v1558 = vld [vmem:[%s13 + $0x68] sm:$0xf]
    %v1559 = vld [vmem:[%s13 + $0x6c] sm:$0xf]
    %v1560 = vld [vmem:[%s13 + $0x70] sm:$0xf]
    %v1561 = vld [vmem:[%s13 + $0x74] sm:$0xf]
    %v1562 = vld [vmem:[%s13 + $0x78] sm:$0xf]
    %v1563 = vld [vmem:[%s13 + $0x7c] sm:$0xf]
    %v1596 = vunpack.c.l.b16 %v1532
    %v1597 = vunpack.c.l.b16 %v1533
    %v1598 = vunpack.c.l.b16 %v1534
    %v1599 = vunpack.c.l.b16 %v1535
    %v1600 = vunpack.c.l.b16 %v1536
    %v1601 = vunpack.c.l.b16 %v1537
    %v1602 = vunpack.c.l.b16 %v1538
    %v1603 = vunpack.c.l.b16 %v1539
    %v1604 = vunpack.c.l.b16 %v1540
    %v1605 = vunpack.c.l.b16 %v1541
    %v1606 = vunpack.c.l.b16 %v1542
    %v1607 = vunpack.c.l.b16 %v1543
    %v1608 = vunpack.c.l.b16 %v1544
    %v1609 = vunpack.c.l.b16 %v1545
    %v1610 = vunpack.c.l.b16 %v1546
    %v1611 = vunpack.c.l.b16 %v1547
    %v1612 = vunpack.c.l.b16 %v1548
    %v1613 = vunpack.c.l.b16 %v1549
    %v1614 = vunpack.c.l.b16 %v1550
    %v1615 = vunpack.c.l.b16 %v1551
    %v1616 = vunpack.c.l.b16 %v1552
    %v1617 = vunpack.c.l.b16 %v1553
    %v1618 = vunpack.c.l.b16 %v1554
    %v1619 = vunpack.c.l.b16 %v1555
    %v1620 = vunpack.c.l.b16 %v1556
    %v1621 = vunpack.c.l.b16 %v1557
    %v1622 = vunpack.c.l.b16 %v1558
    %v1623 = vunpack.c.l.b16 %v1559
    %v1624 = vunpack.c.l.b16 %v1560
    %v1625 = vunpack.c.l.b16 %v1561
    %v1626 = vunpack.c.l.b16 %v1562
    %v1627 = vunpack.c.l.b16 %v1563
    %v1628 = vpack.c.b16 %v1597, %v1596
    %v1629 = vpack.c.b16 %v1599, %v1598
    %v1630 = vpack.c.b16 %v1601, %v1600
    %v1631 = vpack.c.b16 %v1603, %v1602
    %v1632 = vpack.c.b16 %v1605, %v1604
    %v1633 = vpack.c.b16 %v1607, %v1606
    %v1634 = vpack.c.b16 %v1609, %v1608
    %v1635 = vpack.c.b16 %v1611, %v1610
    %v1636 = vpack.c.b16 %v1613, %v1612
    %v1637 = vpack.c.b16 %v1615, %v1614
    %v1638 = vpack.c.b16 %v1617, %v1616
    %v1639 = vpack.c.b16 %v1619, %v1618
    %v1640 = vpack.c.b16 %v1621, %v1620
    %v1641 = vpack.c.b16 %v1623, %v1622
    %v1642 = vpack.c.b16 %v1625, %v1624
    %v1643 = vpack.c.b16 %v1627, %v1626
    %1660 = vmatprep.subr.bf16.mxu0 0
    %1661 = vmatpush1.bf16.msra.mxu0 %v1635
    %1662 = vmatprep.subr.bf16.mxu0 0
    %1663 = vmatpush1.bf16.msra.mxu0 %v1634
    %1664 = vmatprep.subr.bf16.mxu0 0
    %1665 = vmatpush1.bf16.msra.mxu0 %v1633
    %1666 = vmatprep.subr.bf16.mxu0 0
    %1667 = vmatpush1.bf16.msra.mxu0 %v1632
    %1668 = vmatprep.subr.bf16.mxu0 0
    %1669 = vmatpush1.bf16.msra.mxu0 %v1631
    %1670 = vmatprep.subr.bf16.mxu0 0
    %1671 = vmatpush1.bf16.msra.mxu0 %v1630
    %1672 = vmatprep.subr.bf16.mxu0 0
    %1673 = vmatpush1.bf16.msra.mxu0 %v1629
    %1674 = vmatprep.subr.bf16.mxu0 0
    %1675 = vmatpush1.bf16.msra.mxu0 %v1628
    %1676 = vmatprep.subr.bf16.mxu0 0
    %1677 = vmatpush2.bf16.msra.mxu0 %v1643
    %1678 = vmatprep.subr.bf16.mxu0 0
    %1679 = vmatpush2.bf16.msra.mxu0 %v1642
    %1680 = vmatprep.subr.bf16.mxu0 0
    %1681 = vmatpush2.bf16.msra.mxu0 %v1641
    %1682 = vmatprep.subr.bf16.mxu0 0
    %1683 = vmatpush2.bf16.msra.mxu0 %v1640
    %1684 = vmatprep.subr.bf16.mxu0 0
    %1685 = vmatpush2.bf16.msra.mxu0 %v1639
    %1686 = vmatprep.subr.bf16.mxu0 0
    %1687 = vmatpush2.bf16.msra.mxu0 %v1638
    %1688 = vmatprep.subr.bf16.mxu0 0
    %1689 = vmatpush2.bf16.msra.mxu0 %v1637
    %1690 = vmatprep.subr.bf16.mxu0 0
    %1691 = vmatpush2.bf16.msra.mxu0 %v1636
    %1692 = vmatprep.mubr.bf16.mxu0 %v1529
    %1693 = vmatmul.mubr.bf16.gmra.mxu0 %v1528
    %v1694 = vpop.f32.mrf.mxu0
    %v1695 = vadd.f32 0.0, %v1694
    %v1696 = vpop.f32.mrf.mxu0
    %v1697 = vpop.f32.mrf.mxu0
    %v1698 = vadd.f32 0.0, %v1697
    %v1699 = vpop.f32.mrf.mxu0
    %1700 = vmatprep.mubr.bf16.mxu0 %v1531
    %1701 = vmatmul.mubr.bf16.gmra.mxu0 %v1530
    %v1702 = vpop.f32.mrf.mxu0
    %v1703 = vadd.f32 0.0, %v1702
    %v1704 = vpop.f32.mrf.mxu0
    %v1705 = vpop.f32.mrf.mxu0
    %v1706 = vadd.f32 0.0, %v1705
    %v1707 = vpop.f32.mrf.mxu0
    %1708 = vdwg.mxu0
    %v1709 = vadd.f32 %v1257, %v1695
    %v1710 = vadd.f32 %v1258, %v1698
    %v1711 = vadd.f32 %v1259, %v1703
    %v1712 = vadd.f32 %v1260, %v1706
    %v1713 = vld [vmem:[%s14] sm:$0x1]
    %v1715 = vlaneseq
    %v1716 = vshrl.u32 %v1715, 7
    %v1717 = vsub.s32 0, %v1716
    %v1718 = vrot.slane %v1713, %v1717
    %v1720 = vadd.f32 %v1709, %v1718
    %v1721 = vadd.f32 %v1710, %v1718
    %v1722 = vadd.f32 %v1711, %v1718
    %v1723 = vadd.f32 %v1712, %v1718
    %s1724 = scalar_lea.vmem %s3, 1
    %v1725 = vld [vmem:[%s1724] sm:$0x1]
    %s1726 = scalar_lea.vmem %s4, 1
    %v1727 = vld [vmem:[%s1726] sm:$0x1]
    %v1728 = vsel %vm71, %v1720, 0.0
    %1729 = vadd.xlane.f32.xlu0 %v1728
    %v1730 = vpop.xlane.xlu0 %1729
    %v1731 = vsel %vm71, %v1721, 0.0
    %1732 = vadd.xlane.f32.xlu0 %v1731
    %v1733 = vpop.xlane.xlu0 %1732
    %v1734 = vsel %vm71, %v1722, 0.0
    %1735 = vadd.xlane.f32.xlu0 %v1734
    %v1736 = vpop.xlane.xlu0 %1735
    %v1737 = vsel %vm71, %v1723, 0.0
    %1738 = vadd.xlane.f32.xlu0 %v1737
    %v1739 = vpop.xlane.xlu0 %1738
    %v1740 = vmul.f32 %v1730, %v84
    %v1741 = vmul.f32 %v1733, %v84
    %v1742 = vmul.f32 %v1736, %v84
    %v1743 = vmul.f32 %v1739, %v84
    %v1744 = vsub.f32 %v1720, %v1740
    %v1745 = vsub.f32 %v1721, %v1741
    %v1746 = vsub.f32 %v1722, %v1742
    %v1747 = vsub.f32 %v1723, %v1743
    %v1748 = vmul.f32 %v1744, %v1744
    %v1749 = vmul.f32 %v1745, %v1745
    %v1750 = vmul.f32 %v1746, %v1746
    %v1751 = vmul.f32 %v1747, %v1747
    %v1752 = vsel %vm71, %v1748, 0.0
    %1753 = vadd.xlane.f32.xlu0 %v1752
    %v1754 = vpop.xlane.xlu0 %1753
    %v1755 = vsel %vm71, %v1749, 0.0
    %1756 = vadd.xlane.f32.xlu0 %v1755
    %v1757 = vpop.xlane.xlu0 %1756
    %v1758 = vsel %vm71, %v1750, 0.0
    %1759 = vadd.xlane.f32.xlu0 %v1758
    %v1760 = vpop.xlane.xlu0 %1759
    %v1761 = vsel %vm71, %v1751, 0.0
    %1762 = vadd.xlane.f32.xlu0 %v1761
    %v1763 = vpop.xlane.xlu0 %1762
    %v1764 = vmul.f32 %v1754, %v84
    %v1765 = vmul.f32 %v1757, %v84
    %v1766 = vmul.f32 %v1760, %v84
    %v1767 = vmul.f32 %v1763, %v84
    %v1768 = vadd.f32 %v1764, 1e-05
    %v1769 = vadd.f32 %v1765, 1e-05
    %v1770 = vadd.f32 %v1766, 1e-05
    %v1771 = vadd.f32 %v1767, 1e-05
    %v1772 = vrsqrt.pop %v1768
    %v1773 = vrsqrt.pop %v1769
    %v1774 = vrsqrt.pop %v1770
    %v1775 = vrsqrt.pop %v1771
    %v1776 = vmul.f32 %v1744, %v1772
    %v1777 = vmul.f32 %v1745, %v1773
    %v1778 = vmul.f32 %v1746, %v1774
    %v1779 = vmul.f32 %v1747, %v1775
    %v1781 = vlaneseq
    %v1782 = vshrl.u32 %v1781, 7
    %v1783 = vsub.s32 0, %v1782
    %v1784 = vrot.slane %v1725, %v1783
    %v1786 = vmul.f32 %v1776, %v1784
    %v1787 = vmul.f32 %v1777, %v1784
    %v1788 = vmul.f32 %v1778, %v1784
    %v1789 = vmul.f32 %v1779, %v1784
    %v1791 = vlaneseq
    %v1792 = vshrl.u32 %v1791, 7
    %v1793 = vsub.s32 0, %v1792
    %v1794 = vrot.slane %v1727, %v1793
    %v1796 = vadd.f32 %v1786, %v1794
    %v1797 = vadd.f32 %v1787, %v1794
    %v1798 = vadd.f32 %v1788, %v1794
    %v1799 = vadd.f32 %v1789, %v1794
    %v1800 = vpack.c.bf16 %v1797, %v1796
    %v1801 = vpack.c.bf16 %v1799, %v1798
    %s1802 = scalar_lea.vmem %s5, 64
    %v1803 = vld [vmem:[%s1802] sm:$0xff]
    %v1804 = vld [vmem:[%s1802 + $0x8] sm:$0xff]
    %v1805 = vld [vmem:[%s1802 + $0x10] sm:$0xff]
    %v1806 = vld [vmem:[%s1802 + $0x18] sm:$0xff]
    %v1807 = vld [vmem:[%s1802 + $0x20] sm:$0xff]
    %v1808 = vld [vmem:[%s1802 + $0x28] sm:$0xff]
    %v1809 = vld [vmem:[%s1802 + $0x30] sm:$0xff]
    %v1810 = vld [vmem:[%s1802 + $0x38] sm:$0xff]
    %s1811 = scalar_lea.vmem %s6, 2
    %v1812 = vld [vmem:[%s1811] sm:$0x3]
    %v1814 = vlaneseq
    %v1815 = vshrl.u32 %v1814, 7
    %v1816 = vsub.s32 0, %v1815
    %v1817 = vrot.slane %v1812, %v1816
    %v1818 = vlaneseq
    %v1819 = vshrl.u32 %v1818, 7
    %v1820 = vsub.s32 1, %v1819
    %v1821 = vrot.slane %v1812, %v1820
    %v1832 = vunpack.c.l.b16 %v1803
    %v1833 = vunpack.c.h.b16 %v1803
    %v1834 = vunpack.c.l.b16 %v1804
    %v1835 = vunpack.c.h.b16 %v1804
    %v1836 = vunpack.c.l.b16 %v1805
    %v1837 = vunpack.c.h.b16 %v1805
    %v1838 = vunpack.c.l.b16 %v1806
    %v1839 = vunpack.c.h.b16 %v1806
    %v1840 = vunpack.c.l.b16 %v1807
    %v1841 = vunpack.c.h.b16 %v1807
    %v1842 = vunpack.c.l.b16 %v1808
    %v1843 = vunpack.c.h.b16 %v1808
    %v1844 = vunpack.c.l.b16 %v1809
    %v1845 = vunpack.c.h.b16 %v1809
    %v1846 = vunpack.c.l.b16 %v1810
    %v1847 = vunpack.c.h.b16 %v1810
    %v1848 = vpack.c.b16 %v1834, %v1832
    %v1849 = vpack.c.b16 %v1835, %v1833
    %v1850 = vpack.c.b16 %v1838, %v1836
    %v1851 = vpack.c.b16 %v1839, %v1837
    %v1852 = vpack.c.b16 %v1842, %v1840
    %v1853 = vpack.c.b16 %v1843, %v1841
    %v1854 = vpack.c.b16 %v1846, %v1844
    %v1855 = vpack.c.b16 %v1847, %v1845
    %v1865 = vsel %vm71, %v1800, 0
    %v1868 = vsel %vm71, %v1801, 0
    %1870 = vmatprep.subr.bf16.mxu0 0
    %1871 = vmatpush1.bf16.msra.mxu0 0
    %1872 = vmatprep.subr.bf16.mxu0 0
    %1873 = vmatpush1.bf16.msra.mxu0 0
    %1874 = vmatprep.subr.bf16.mxu0 0
    %1875 = vmatpush1.bf16.msra.mxu0 0
    %1876 = vmatprep.subr.bf16.mxu0 0
    %1877 = vmatpush1.bf16.msra.mxu0 0
    %1878 = vmatprep.subr.bf16.mxu0 %v1855
    %1879 = vmatpush1.bf16.msra.mxu0 %v1854
    %1880 = vmatprep.subr.bf16.mxu0 %v1853
    %1881 = vmatpush1.bf16.msra.mxu0 %v1852
    %1882 = vmatprep.subr.bf16.mxu0 %v1851
    %1883 = vmatpush1.bf16.msra.mxu0 %v1850
    %1884 = vmatprep.subr.bf16.mxu0 %v1849
    %1885 = vmatpush1.bf16.msra.mxu0 %v1848
    %1886 = vmatprep.subr.bf16.mxu0 0
    %1887 = vmatpush2.bf16.msra.mxu0 0
    %1888 = vmatprep.subr.bf16.mxu0 0
    %1889 = vmatpush2.bf16.msra.mxu0 0
    %1890 = vmatprep.subr.bf16.mxu0 0
    %1891 = vmatpush2.bf16.msra.mxu0 0
    %1892 = vmatprep.subr.bf16.mxu0 0
    %1893 = vmatpush2.bf16.msra.mxu0 0
    %1894 = vmatprep.subr.bf16.mxu0 0
    %1895 = vmatpush2.bf16.msra.mxu0 0
    %1896 = vmatprep.subr.bf16.mxu0 0
    %1897 = vmatpush2.bf16.msra.mxu0 0
    %1898 = vmatprep.subr.bf16.mxu0 0
    %1899 = vmatpush2.bf16.msra.mxu0 0
    %1900 = vmatprep.subr.bf16.mxu0 0
    %1901 = vmatpush2.bf16.msra.mxu0 0
    %1902 = vmatprep.mubr.bf16.mxu0 0
    %1903 = vmatmul.mubr.bf16.gmra.mxu0 %v1865
    %v1904 = vpop.f32.mrf.mxu0
    %v1905 = vadd.f32 %v1817, %v1904
    %v1906 = vpop.f32.mrf.mxu0
    %v1907 = vadd.f32 %v1821, %v1906
    %v1908 = vpop.f32.mrf.mxu0
    %v1909 = vadd.f32 %v1817, %v1908
    %v1910 = vpop.f32.mrf.mxu0
    %v1911 = vadd.f32 %v1821, %v1910
    %1912 = vmatprep.mubr.bf16.mxu0 0
    %1913 = vmatmul.mubr.bf16.gmra.mxu0 %v1868
    %v1914 = vpop.f32.mrf.mxu0
    %v1915 = vadd.f32 %v1817, %v1914
    %v1916 = vpop.f32.mrf.mxu0
    %v1917 = vadd.f32 %v1821, %v1916
    %v1918 = vpop.f32.mrf.mxu0
    %v1919 = vadd.f32 %v1817, %v1918
    %v1920 = vpop.f32.mrf.mxu0
    %v1921 = vadd.f32 %v1821, %v1920
    %1922 = vdwg.mxu0
    %v1923 = vmul.f32 %v1905, 0.25
    %v1924 = vmul.f32 %v1909, 0.25
    %v1925 = vmul.f32 %v1915, 0.25
    %v1926 = vmul.f32 %v1919, 0.25
    %v1927 = vpack.c.bf16 %v1924, %v1923
    %v1928 = vpack.c.bf16 %v1926, %v1925
    %v1929 = vpack.c.bf16 %v1909, %v1905
    %v1930 = vpack.c.bf16 %v1919, %v1915
    %v1931 = vpack.c.bf16 %v1911, %v1907
    %v1932 = vpack.c.bf16 %v1921, %v1917
    %s1933 = scalar_lea.vmem %s7, 32
    %v1934 = vld [vmem:[%s1933] sm:$0xf]
    %v1935 = vld [vmem:[%s1933 + $0x4] sm:$0xf]
    %v1936 = vld [vmem:[%s1933 + $0x8] sm:$0xf]
    %v1937 = vld [vmem:[%s1933 + $0xc] sm:$0xf]
    %v1938 = vld [vmem:[%s1933 + $0x10] sm:$0xf]
    %v1939 = vld [vmem:[%s1933 + $0x14] sm:$0xf]
    %v1940 = vld [vmem:[%s1933 + $0x18] sm:$0xf]
    %v1941 = vld [vmem:[%s1933 + $0x1c] sm:$0xf]
    %1944 = vrot.lane.b32.xlu0 %v1929, 64
    %v1945 = vpop.permute.xlu0 %1944
    %1946 = vrot.lane.b32.xlu0 %v1930, 64
    %v1947 = vpop.permute.xlu0 %1946
    %v1949 = vsel %vm290, %v1927, 0
    %v1952 = vsel %vm290, %v1928, 0
    %v1955 = vsel %vm290, %v1945, 0
    %v1958 = vsel %vm290, %v1947, 0
    %1960 = vmatprep.subr.bf16.mxu0 0
    %1961 = vmatpush1.bf16.xpose.msra.mxu0 0
    %1962 = vmatprep.subr.bf16.mxu0 0
    %1963 = vmatpush1.bf16.xpose.msra.mxu0 0
    %1964 = vmatprep.subr.bf16.mxu0 0
    %1965 = vmatpush1.bf16.xpose.msra.mxu0 0
    %1966 = vmatprep.subr.bf16.mxu0 0
    %1967 = vmatpush1.bf16.xpose.msra.mxu0 0
    %1968 = vmatprep.subr.bf16.mxu0 0
    %1969 = vmatpush1.bf16.xpose.msra.mxu0 0
    %1970 = vmatprep.subr.bf16.mxu0 0
    %1971 = vmatpush1.bf16.xpose.msra.mxu0 0
    %1972 = vmatprep.subr.bf16.mxu0 0
    %1973 = vmatpush1.bf16.xpose.msra.mxu0 %v1958
    %1974 = vmatprep.subr.bf16.mxu0 0
    %1975 = vmatpush1.bf16.xpose.msra.mxu0 %v1955
    %1976 = vmatprep.subr.bf16.mxu0 0
    %1977 = vmatpush2.bf16.xpose.msra.mxu0 0
    %1978 = vmatprep.subr.bf16.mxu0 0
    %1979 = vmatpush2.bf16.xpose.msra.mxu0 0
    %1980 = vmatprep.subr.bf16.mxu0 0
    %1981 = vmatpush2.bf16.xpose.msra.mxu0 0
    %1982 = vmatprep.subr.bf16.mxu0 0
    %1983 = vmatpush2.bf16.xpose.msra.mxu0 0
    %1984 = vmatprep.subr.bf16.mxu0 0
    %1985 = vmatpush2.bf16.xpose.msra.mxu0 0
    %1986 = vmatprep.subr.bf16.mxu0 0
    %1987 = vmatpush2.bf16.xpose.msra.mxu0 0
    %1988 = vmatprep.subr.bf16.mxu0 0
    %1989 = vmatpush2.bf16.xpose.msra.mxu0 0
    %1990 = vmatprep.subr.bf16.mxu0 0
    %1991 = vmatpush2.bf16.xpose.msra.mxu0 0
    %1992 = vmatprep.mubr.bf16.mxu0 0
    %1993 = vmatmul.mubr.bf16.gmra.mxu0 %v1949
    %v1994 = vpop.f32.mrf.mxu0
    %v1995 = vadd.f32 %v65, %v1994
    %v1996 = vpop.f32.mrf.mxu0
    %v1997 = vpop.f32.mrf.mxu0
    %v1998 = vadd.f32 %v66, %v1997
    %v1999 = vpop.f32.mrf.mxu0
    %2000 = vmatprep.mubr.bf16.mxu0 0
    %2001 = vmatmul.mubr.bf16.gmra.mxu0 %v1952
    %v2002 = vpop.f32.mrf.mxu0
    %v2003 = vadd.f32 %v67, %v2002
    %v2004 = vpop.f32.mrf.mxu0
    %v2005 = vpop.f32.mrf.mxu0
    %v2006 = vadd.f32 %v68, %v2005
    %v2007 = vpop.f32.mrf.mxu0
    %2008 = vdwg.mxu0
    %v2009 = vsel %vm352, %v1995, -inf
    %2010 = vmax.xlane.f32.xlu0 %v2009
    %v2011 = vpop.xlane.xlu0 %2010
    %v2012 = vsel %vm352, %v1998, -inf
    %2013 = vmax.xlane.f32.xlu0 %v2012
    %v2014 = vpop.xlane.xlu0 %2013
    %v2015 = vsel %vm352, %v2003, -inf
    %2016 = vmax.xlane.f32.xlu0 %v2015
    %v2017 = vpop.xlane.xlu0 %2016
    %v2018 = vsel %vm352, %v2006, -inf
    %2019 = vmax.xlane.f32.xlu0 %v2018
    %v2020 = vpop.xlane.xlu0 %2019
    %v2021 = vsub.f32 %v1995, %v2011
    %v2022 = vsub.f32 %v1998, %v2014
    %v2023 = vsub.f32 %v2003, %v2017
    %v2024 = vsub.f32 %v2006, %v2020
    %v2025 = vmul.f32 %v2021, 1.442695
    %v2026 = vpow.pop %v2025
    %v2027 = vmul.f32 %v2022, 1.442695
    %v2028 = vpow.pop %v2027
    %v2029 = vmul.f32 %v2023, 1.442695
    %v2030 = vpow.pop %v2029
    %v2031 = vmul.f32 %v2024, 1.442695
    %v2032 = vpow.pop %v2031
    %v2033 = vsel %vm352, %v2026, 0.0
    %2034 = vadd.xlane.f32.xlu0 %v2033
    %v2035 = vpop.xlane.xlu0 %2034
    %v2036 = vsel %vm352, %v2028, 0.0
    %2037 = vadd.xlane.f32.xlu0 %v2036
    %v2038 = vpop.xlane.xlu0 %2037
    %v2039 = vsel %vm352, %v2030, 0.0
    %2040 = vadd.xlane.f32.xlu0 %v2039
    %v2041 = vpop.xlane.xlu0 %2040
    %v2042 = vsel %vm352, %v2032, 0.0
    %2043 = vadd.xlane.f32.xlu0 %v2042
    %v2044 = vpop.xlane.xlu0 %2043
    %v2045 = vrcp.pop %v2035
    %v2046 = vrcp.pop %v2038
    %v2047 = vrcp.pop %v2041
    %v2048 = vrcp.pop %v2044
    %v2049 = vmul.f32 %v2026, %v2045
    %v2050 = vmul.f32 %v2028, %v2046
    %v2051 = vmul.f32 %v2030, %v2047
    %v2052 = vmul.f32 %v2032, %v2048
    %v2053 = vpack.c.bf16 %v2050, %v2049
    %v2054 = vpack.c.bf16 %v2052, %v2051
    %v2056 = vsel %vm352, %v2053, 0
    %v2059 = vsel %vm352, %v2054, 0
    %2061 = vmatprep.subr.bf16.mxu0 0
    %2062 = vmatpush1.bf16.msra.mxu0 0
    %2063 = vmatprep.subr.bf16.mxu0 0
    %2064 = vmatpush1.bf16.msra.mxu0 0
    %2065 = vmatprep.subr.bf16.mxu0 0
    %2066 = vmatpush1.bf16.msra.mxu0 0
    %2067 = vmatprep.subr.bf16.mxu0 0
    %2068 = vmatpush1.bf16.msra.mxu0 0
    %2069 = vmatprep.subr.bf16.mxu0 0
    %2070 = vmatpush1.bf16.msra.mxu0 0
    %2071 = vmatprep.subr.bf16.mxu0 0
    %2072 = vmatpush1.bf16.msra.mxu0 0
    %2073 = vmatprep.subr.bf16.mxu0 0
    %2074 = vmatpush1.bf16.msra.mxu0 %v1932
    %2075 = vmatprep.subr.bf16.mxu0 0
    %2076 = vmatpush1.bf16.msra.mxu0 %v1931
    %2077 = vmatprep.subr.bf16.mxu0 0
    %2078 = vmatpush2.bf16.msra.mxu0 0
    %2079 = vmatprep.subr.bf16.mxu0 0
    %2080 = vmatpush2.bf16.msra.mxu0 0
    %2081 = vmatprep.subr.bf16.mxu0 0
    %2082 = vmatpush2.bf16.msra.mxu0 0
    %2083 = vmatprep.subr.bf16.mxu0 0
    %2084 = vmatpush2.bf16.msra.mxu0 0
    %2085 = vmatprep.subr.bf16.mxu0 0
    %2086 = vmatpush2.bf16.msra.mxu0 0
    %2087 = vmatprep.subr.bf16.mxu0 0
    %2088 = vmatpush2.bf16.msra.mxu0 0
    %2089 = vmatprep.subr.bf16.mxu0 0
    %2090 = vmatpush2.bf16.msra.mxu0 0
    %2091 = vmatprep.subr.bf16.mxu0 0
    %2092 = vmatpush2.bf16.msra.mxu0 0
    %2093 = vmatprep.mubr.bf16.mxu0 0
    %2094 = vmatmul.mubr.bf16.gmra.mxu0 %v2056
    %v2095 = vpop.f32.mrf.mxu0
    %v2096 = vadd.f32 0.0, %v2095
    %v2097 = vpop.f32.mrf.mxu0
    %v2098 = vpop.f32.mrf.mxu0
    %v2099 = vadd.f32 0.0, %v2098
    %v2100 = vpop.f32.mrf.mxu0
    %2101 = vmatprep.mubr.bf16.mxu0 0
    %2102 = vmatmul.mubr.bf16.gmra.mxu0 %v2059
    %v2103 = vpop.f32.mrf.mxu0
    %v2104 = vadd.f32 0.0, %v2103
    %v2105 = vpop.f32.mrf.mxu0
    %v2106 = vpop.f32.mrf.mxu0
    %v2107 = vadd.f32 0.0, %v2106
    %v2108 = vpop.f32.mrf.mxu0
    %2109 = vdwg.mxu0
    %v2110 = vpack.c.bf16 %v2099, %v2096
    %v2111 = vpack.c.bf16 %v2107, %v2104
    %2114 = vrot.lane.b32.xlu0 %v1927, 112
    %v2115 = vpop.permute.xlu0 %2114
    %2116 = vrot.lane.b32.xlu0 %v1928, 112
    %v2117 = vpop.permute.xlu0 %2116
    %2118 = vrot.lane.b32.xlu0 %v1929, 48
    %v2119 = vpop.permute.xlu0 %2118
    %2120 = vrot.lane.b32.xlu0 %v1930, 48
    %v2121 = vpop.permute.xlu0 %2120
    %v2123 = vsel %vm290, %v2115, 0
    %v2126 = vsel %vm290, %v2117, 0
    %v2129 = vsel %vm290, %v2119, 0
    %v2132 = vsel %vm290, %v2121, 0
    %2134 = vmatprep.subr.bf16.mxu0 0
    %2135 = vmatpush1.bf16.xpose.msra.mxu0 0
    %2136 = vmatprep.subr.bf16.mxu0 0
    %2137 = vmatpush1.bf16.xpose.msra.mxu0 0
    %2138 = vmatprep.subr.bf16.mxu0 0
    %2139 = vmatpush1.bf16.xpose.msra.mxu0 0
    %2140 = vmatprep.subr.bf16.mxu0 0
    %2141 = vmatpush1.bf16.xpose.msra.mxu0 0
    %2142 = vmatprep.subr.bf16.mxu0 0
    %2143 = vmatpush1.bf16.xpose.msra.mxu0 0
    %2144 = vmatprep.subr.bf16.mxu0 0
    %2145 = vmatpush1.bf16.xpose.msra.mxu0 0
    %2146 = vmatprep.subr.bf16.mxu0 0
    %2147 = vmatpush1.bf16.xpose.msra.mxu0 %v2132
    %2148 = vmatprep.subr.bf16.mxu0 0
    %2149 = vmatpush1.bf16.xpose.msra.mxu0 %v2129
    %2150 = vmatprep.subr.bf16.mxu0 0
    %2151 = vmatpush2.bf16.xpose.msra.mxu0 0
    %2152 = vmatprep.subr.bf16.mxu0 0
    %2153 = vmatpush2.bf16.xpose.msra.mxu0 0
    %2154 = vmatprep.subr.bf16.mxu0 0
    %2155 = vmatpush2.bf16.xpose.msra.mxu0 0
    %2156 = vmatprep.subr.bf16.mxu0 0
    %2157 = vmatpush2.bf16.xpose.msra.mxu0 0
    %2158 = vmatprep.subr.bf16.mxu0 0
    %2159 = vmatpush2.bf16.xpose.msra.mxu0 0
    %2160 = vmatprep.subr.bf16.mxu0 0
    %2161 = vmatpush2.bf16.xpose.msra.mxu0 0
    %2162 = vmatprep.subr.bf16.mxu0 0
    %2163 = vmatpush2.bf16.xpose.msra.mxu0 0
    %2164 = vmatprep.subr.bf16.mxu0 0
    %2165 = vmatpush2.bf16.xpose.msra.mxu0 0
    %2166 = vmatprep.mubr.bf16.mxu0 0
    %2167 = vmatmul.mubr.bf16.gmra.mxu0 %v2123
    %v2168 = vpop.f32.mrf.mxu0
    %v2169 = vadd.f32 %v65, %v2168
    %v2170 = vpop.f32.mrf.mxu0
    %v2171 = vpop.f32.mrf.mxu0
    %v2172 = vadd.f32 %v66, %v2171
    %v2173 = vpop.f32.mrf.mxu0
    %2174 = vmatprep.mubr.bf16.mxu0 0
    %2175 = vmatmul.mubr.bf16.gmra.mxu0 %v2126
    %v2176 = vpop.f32.mrf.mxu0
    %v2177 = vadd.f32 %v67, %v2176
    %v2178 = vpop.f32.mrf.mxu0
    %v2179 = vpop.f32.mrf.mxu0
    %v2180 = vadd.f32 %v68, %v2179
    %v2181 = vpop.f32.mrf.mxu0
    %2182 = vdwg.mxu0
    %v2183 = vsel %vm352, %v2169, -inf
    %2184 = vmax.xlane.f32.xlu0 %v2183
    %v2185 = vpop.xlane.xlu0 %2184
    %v2186 = vsel %vm352, %v2172, -inf
    %2187 = vmax.xlane.f32.xlu0 %v2186
    %v2188 = vpop.xlane.xlu0 %2187
    %v2189 = vsel %vm352, %v2177, -inf
    %2190 = vmax.xlane.f32.xlu0 %v2189
    %v2191 = vpop.xlane.xlu0 %2190
    %v2192 = vsel %vm352, %v2180, -inf
    %2193 = vmax.xlane.f32.xlu0 %v2192
    %v2194 = vpop.xlane.xlu0 %2193
    %v2195 = vsub.f32 %v2169, %v2185
    %v2196 = vsub.f32 %v2172, %v2188
    %v2197 = vsub.f32 %v2177, %v2191
    %v2198 = vsub.f32 %v2180, %v2194
    %v2199 = vmul.f32 %v2195, 1.442695
    %v2200 = vpow.pop %v2199
    %v2201 = vmul.f32 %v2196, 1.442695
    %v2202 = vpow.pop %v2201
    %v2203 = vmul.f32 %v2197, 1.442695
    %v2204 = vpow.pop %v2203
    %v2205 = vmul.f32 %v2198, 1.442695
    %v2206 = vpow.pop %v2205
    %v2207 = vsel %vm352, %v2200, 0.0
    %2208 = vadd.xlane.f32.xlu0 %v2207
    %v2209 = vpop.xlane.xlu0 %2208
    %v2210 = vsel %vm352, %v2202, 0.0
    %2211 = vadd.xlane.f32.xlu0 %v2210
    %v2212 = vpop.xlane.xlu0 %2211
    %v2213 = vsel %vm352, %v2204, 0.0
    %2214 = vadd.xlane.f32.xlu0 %v2213
    %v2215 = vpop.xlane.xlu0 %2214
    %v2216 = vsel %vm352, %v2206, 0.0
    %2217 = vadd.xlane.f32.xlu0 %v2216
    %v2218 = vpop.xlane.xlu0 %2217
    %v2219 = vrcp.pop %v2209
    %v2220 = vrcp.pop %v2212
    %v2221 = vrcp.pop %v2215
    %v2222 = vrcp.pop %v2218
    %v2223 = vmul.f32 %v2200, %v2219
    %v2224 = vmul.f32 %v2202, %v2220
    %v2225 = vmul.f32 %v2204, %v2221
    %v2226 = vmul.f32 %v2206, %v2222
    %v2227 = vpack.c.bf16 %v2224, %v2223
    %v2228 = vpack.c.bf16 %v2226, %v2225
    %2231 = vrot.lane.b32.xlu0 %v1931, 112
    %v2232 = vpop.permute.xlu0 %2231
    %2233 = vrot.lane.b32.xlu0 %v1932, 112
    %v2234 = vpop.permute.xlu0 %2233
    %v2238 = vsel %vm352, %v2227, 0
    %v2241 = vsel %vm352, %v2228, 0
    %2243 = vmatprep.subr.bf16.mxu0 0
    %2244 = vmatpush1.bf16.msra.mxu0 0
    %2245 = vmatprep.subr.bf16.mxu0 0
    %2246 = vmatpush1.bf16.msra.mxu0 0
    %2247 = vmatprep.subr.bf16.mxu0 0
    %2248 = vmatpush1.bf16.msra.mxu0 0
    %2249 = vmatprep.subr.bf16.mxu0 0
    %2250 = vmatpush1.bf16.msra.mxu0 0
    %2251 = vmatprep.subr.bf16.mxu0 0
    %2252 = vmatpush1.bf16.msra.mxu0 0
    %2253 = vmatprep.subr.bf16.mxu0 0
    %2254 = vmatpush1.bf16.msra.mxu0 0
    %2255 = vmatprep.subr.bf16.mxu0 0
    %2256 = vmatpush1.bf16.msra.mxu0 %v2234
    %2257 = vmatprep.subr.bf16.mxu0 0
    %2258 = vmatpush1.bf16.msra.mxu0 %v2232
    %2259 = vmatprep.subr.bf16.mxu0 0
    %2260 = vmatpush2.bf16.msra.mxu0 0
    %2261 = vmatprep.subr.bf16.mxu0 0
    %2262 = vmatpush2.bf16.msra.mxu0 0
    %2263 = vmatprep.subr.bf16.mxu0 0
    %2264 = vmatpush2.bf16.msra.mxu0 0
    %2265 = vmatprep.subr.bf16.mxu0 0
    %2266 = vmatpush2.bf16.msra.mxu0 0
    %2267 = vmatprep.subr.bf16.mxu0 0
    %2268 = vmatpush2.bf16.msra.mxu0 0
    %2269 = vmatprep.subr.bf16.mxu0 0
    %2270 = vmatpush2.bf16.msra.mxu0 0
    %2271 = vmatprep.subr.bf16.mxu0 0
    %2272 = vmatpush2.bf16.msra.mxu0 0
    %2273 = vmatprep.subr.bf16.mxu0 0
    %2274 = vmatpush2.bf16.msra.mxu0 0
    %2275 = vmatprep.mubr.bf16.mxu0 0
    %2276 = vmatmul.mubr.bf16.gmra.mxu0 %v2238
    %v2277 = vpop.f32.mrf.mxu0
    %v2278 = vadd.f32 0.0, %v2277
    %v2279 = vpop.f32.mrf.mxu0
    %v2280 = vpop.f32.mrf.mxu0
    %v2281 = vadd.f32 0.0, %v2280
    %v2282 = vpop.f32.mrf.mxu0
    %2283 = vmatprep.mubr.bf16.mxu0 0
    %2284 = vmatmul.mubr.bf16.gmra.mxu0 %v2241
    %v2285 = vpop.f32.mrf.mxu0
    %v2286 = vadd.f32 0.0, %v2285
    %v2287 = vpop.f32.mrf.mxu0
    %v2288 = vpop.f32.mrf.mxu0
    %v2289 = vadd.f32 0.0, %v2288
    %v2290 = vpop.f32.mrf.mxu0
    %2291 = vdwg.mxu0
    %v2292 = vpack.c.bf16 %v2281, %v2278
    %v2293 = vpack.c.bf16 %v2289, %v2286
    %v2296 = vunpack.c.l.b16 %v1936
    %v2297 = vunpack.c.l.b16 %v1937
    %v2298 = vpack.c.b16 %v2297, %v2296
    %v2301 = vsel %vm290, %v2292, 0
    %v2304 = vsel %vm290, %v2293, 0
    %2306 = vmatprep.subr.bf16.mxu0 0
    %2307 = vmatpush1.bf16.msra.mxu0 0
    %2308 = vmatprep.subr.bf16.mxu0 0
    %2309 = vmatpush1.bf16.msra.mxu0 0
    %2310 = vmatprep.subr.bf16.mxu0 0
    %2311 = vmatpush1.bf16.msra.mxu0 0
    %2312 = vmatprep.subr.bf16.mxu0 0
    %2313 = vmatpush1.bf16.msra.mxu0 0
    %2314 = vmatprep.subr.bf16.mxu0 0
    %2315 = vmatpush1.bf16.msra.mxu0 0
    %2316 = vmatprep.subr.bf16.mxu0 0
    %2317 = vmatpush1.bf16.msra.mxu0 0
    %2318 = vmatprep.subr.bf16.mxu0 0
    %2319 = vmatpush1.bf16.msra.mxu0 0
    %2320 = vmatprep.subr.bf16.mxu0 0
    %2321 = vmatpush1.bf16.msra.mxu0 %v2298
    %2322 = vmatprep.subr.bf16.mxu0 0
    %2323 = vmatpush2.bf16.msra.mxu0 0
    %2324 = vmatprep.subr.bf16.mxu0 0
    %2325 = vmatpush2.bf16.msra.mxu0 0
    %2326 = vmatprep.subr.bf16.mxu0 0
    %2327 = vmatpush2.bf16.msra.mxu0 0
    %2328 = vmatprep.subr.bf16.mxu0 0
    %2329 = vmatpush2.bf16.msra.mxu0 0
    %2330 = vmatprep.subr.bf16.mxu0 0
    %2331 = vmatpush2.bf16.msra.mxu0 0
    %2332 = vmatprep.subr.bf16.mxu0 0
    %2333 = vmatpush2.bf16.msra.mxu0 0
    %2334 = vmatprep.subr.bf16.mxu0 0
    %2335 = vmatpush2.bf16.msra.mxu0 0
    %2336 = vmatprep.subr.bf16.mxu0 0
    %2337 = vmatpush2.bf16.msra.mxu0 0
    %2338 = vmatprep.mubr.bf16.mxu0 0
    %2339 = vmatmul.mubr.bf16.gmra.mxu0 %v2301
    %v2340 = vpop.f32.mrf.mxu0
    %v2341 = vadd.f32 0.0, %v2340
    %v2342 = vpop.f32.mrf.mxu0
    %v2343 = vpop.f32.mrf.mxu0
    %v2344 = vadd.f32 0.0, %v2343
    %v2345 = vpop.f32.mrf.mxu0
    %2346 = vmatprep.mubr.bf16.mxu0 0
    %2347 = vmatmul.mubr.bf16.gmra.mxu0 %v2304
    %v2348 = vpop.f32.mrf.mxu0
    %v2349 = vadd.f32 0.0, %v2348
    %v2350 = vpop.f32.mrf.mxu0
    %v2351 = vpop.f32.mrf.mxu0
    %v2352 = vadd.f32 0.0, %v2351
    %v2353 = vpop.f32.mrf.mxu0
    %2354 = vdwg.mxu0
    %v2357 = vunpack.c.l.b16 %v1934
    %v2358 = vunpack.c.l.b16 %v1935
    %v2359 = vpack.c.b16 %v2358, %v2357
    %v2362 = vsel %vm290, %v2110, 0
    %v2365 = vsel %vm290, %v2111, 0
    %2367 = vmatprep.subr.bf16.mxu0 0
    %2368 = vmatpush1.bf16.msra.mxu0 0
    %2369 = vmatprep.subr.bf16.mxu0 0
    %2370 = vmatpush1.bf16.msra.mxu0 0
    %2371 = vmatprep.subr.bf16.mxu0 0
    %2372 = vmatpush1.bf16.msra.mxu0 0
    %2373 = vmatprep.subr.bf16.mxu0 0
    %2374 = vmatpush1.bf16.msra.mxu0 0
    %2375 = vmatprep.subr.bf16.mxu0 0
    %2376 = vmatpush1.bf16.msra.mxu0 0
    %2377 = vmatprep.subr.bf16.mxu0 0
    %2378 = vmatpush1.bf16.msra.mxu0 0
    %2379 = vmatprep.subr.bf16.mxu0 0
    %2380 = vmatpush1.bf16.msra.mxu0 0
    %2381 = vmatprep.subr.bf16.mxu0 0
    %2382 = vmatpush1.bf16.msra.mxu0 %v2359
    %2383 = vmatprep.subr.bf16.mxu0 0
    %2384 = vmatpush2.bf16.msra.mxu0 0
    %2385 = vmatprep.subr.bf16.mxu0 0
    %2386 = vmatpush2.bf16.msra.mxu0 0
    %2387 = vmatprep.subr.bf16.mxu0 0
    %2388 = vmatpush2.bf16.msra.mxu0 0
    %2389 = vmatprep.subr.bf16.mxu0 0
    %2390 = vmatpush2.bf16.msra.mxu0 0
    %2391 = vmatprep.subr.bf16.mxu0 0
    %2392 = vmatpush2.bf16.msra.mxu0 0
    %2393 = vmatprep.subr.bf16.mxu0 0
    %2394 = vmatpush2.bf16.msra.mxu0 0
    %2395 = vmatprep.subr.bf16.mxu0 0
    %2396 = vmatpush2.bf16.msra.mxu0 0
    %2397 = vmatprep.subr.bf16.mxu0 0
    %2398 = vmatpush2.bf16.msra.mxu0 0
    %2399 = vmatprep.mubr.bf16.mxu0 0
    %2400 = vmatmul.mubr.bf16.gmra.mxu0 %v2362
    %v2401 = vpop.f32.mrf.mxu0
    %v2402 = vadd.f32 %v2341, %v2401
    %v2403 = vpop.f32.mrf.mxu0
    %v2404 = vpop.f32.mrf.mxu0
    %v2405 = vadd.f32 %v2344, %v2404
    %v2406 = vpop.f32.mrf.mxu0
    %2407 = vmatprep.mubr.bf16.mxu0 0
    %2408 = vmatmul.mubr.bf16.gmra.mxu0 %v2365
    %v2409 = vpop.f32.mrf.mxu0
    %v2410 = vadd.f32 %v2349, %v2409
    %v2411 = vpop.f32.mrf.mxu0
    %v2412 = vpop.f32.mrf.mxu0
    %v2413 = vadd.f32 %v2352, %v2412
    %v2414 = vpop.f32.mrf.mxu0
    %2415 = vdwg.mxu0
    %2416 = vrot.lane.b32.xlu0 %v1927, 96
    %v2417 = vpop.permute.xlu0 %2416
    %2418 = vrot.lane.b32.xlu0 %v1928, 96
    %v2419 = vpop.permute.xlu0 %2418
    %2420 = vrot.lane.b32.xlu0 %v1929, 32
    %v2421 = vpop.permute.xlu0 %2420
    %2422 = vrot.lane.b32.xlu0 %v1930, 32
    %v2423 = vpop.permute.xlu0 %2422
    %v2425 = vsel %vm290, %v2417, 0
    %v2428 = vsel %vm290, %v2419, 0
    %v2431 = vsel %vm290, %v2421, 0
    %v2434 = vsel %vm290, %v2423, 0
    %2436 = vmatprep.subr.bf16.mxu0 0
    %2437 = vmatpush1.bf16.xpose.msra.mxu0 0
    %2438 = vmatprep.subr.bf16.mxu0 0
    %2439 = vmatpush1.bf16.xpose.msra.mxu0 0
    %2440 = vmatprep.subr.bf16.mxu0 0
    %2441 = vmatpush1.bf16.xpose.msra.mxu0 0
    %2442 = vmatprep.subr.bf16.mxu0 0
    %2443 = vmatpush1.bf16.xpose.msra.mxu0 0
    %2444 = vmatprep.subr.bf16.mxu0 0
    %2445 = vmatpush1.bf16.xpose.msra.mxu0 0
    %2446 = vmatprep.subr.bf16.mxu0 0
    %2447 = vmatpush1.bf16.xpose.msra.mxu0 0
    %2448 = vmatprep.subr.bf16.mxu0 0
    %2449 = vmatpush1.bf16.xpose.msra.mxu0 %v2434
    %2450 = vmatprep.subr.bf16.mxu0 0
    %2451 = vmatpush1.bf16.xpose.msra.mxu0 %v2431
    %2452 = vmatprep.subr.bf16.mxu0 0
    %2453 = vmatpush2.bf16.xpose.msra.mxu0 0
    %2454 = vmatprep.subr.bf16.mxu0 0
    %2455 = vmatpush2.bf16.xpose.msra.mxu0 0
    %2456 = vmatprep.subr.bf16.mxu0 0
    %2457 = vmatpush2.bf16.xpose.msra.mxu0 0
    %2458 = vmatprep.subr.bf16.mxu0 0
    %2459 = vmatpush2.bf16.xpose.msra.mxu0 0
    %2460 = vmatprep.subr.bf16.mxu0 0
    %2461 = vmatpush2.bf16.xpose.msra.mxu0 0
    %2462 = vmatprep.subr.bf16.mxu0 0
    %2463 = vmatpush2.bf16.xpose.msra.mxu0 0
    %2464 = vmatprep.subr.bf16.mxu0 0
    %2465 = vmatpush2.bf16.xpose.msra.mxu0 0
    %2466 = vmatprep.subr.bf16.mxu0 0
    %2467 = vmatpush2.bf16.xpose.msra.mxu0 0
    %2468 = vmatprep.mubr.bf16.mxu0 0
    %2469 = vmatmul.mubr.bf16.gmra.mxu0 %v2425
    %v2470 = vpop.f32.mrf.mxu0
    %v2471 = vadd.f32 %v65, %v2470
    %v2472 = vpop.f32.mrf.mxu0
    %v2473 = vpop.f32.mrf.mxu0
    %v2474 = vadd.f32 %v66, %v2473
    %v2475 = vpop.f32.mrf.mxu0
    %2476 = vmatprep.mubr.bf16.mxu0 0
    %2477 = vmatmul.mubr.bf16.gmra.mxu0 %v2428
    %v2478 = vpop.f32.mrf.mxu0
    %v2479 = vadd.f32 %v67, %v2478
    %v2480 = vpop.f32.mrf.mxu0
    %v2481 = vpop.f32.mrf.mxu0
    %v2482 = vadd.f32 %v68, %v2481
    %v2483 = vpop.f32.mrf.mxu0
    %2484 = vdwg.mxu0
    %v2485 = vsel %vm352, %v2471, -inf
    %2486 = vmax.xlane.f32.xlu0 %v2485
    %v2487 = vpop.xlane.xlu0 %2486
    %v2488 = vsel %vm352, %v2474, -inf
    %2489 = vmax.xlane.f32.xlu0 %v2488
    %v2490 = vpop.xlane.xlu0 %2489
    %v2491 = vsel %vm352, %v2479, -inf
    %2492 = vmax.xlane.f32.xlu0 %v2491
    %v2493 = vpop.xlane.xlu0 %2492
    %v2494 = vsel %vm352, %v2482, -inf
    %2495 = vmax.xlane.f32.xlu0 %v2494
    %v2496 = vpop.xlane.xlu0 %2495
    %v2497 = vsub.f32 %v2471, %v2487
    %v2498 = vsub.f32 %v2474, %v2490
    %v2499 = vsub.f32 %v2479, %v2493
    %v2500 = vsub.f32 %v2482, %v2496
    %v2501 = vmul.f32 %v2497, 1.442695
    %v2502 = vpow.pop %v2501
    %v2503 = vmul.f32 %v2498, 1.442695
    %v2504 = vpow.pop %v2503
    %v2505 = vmul.f32 %v2499, 1.442695
    %v2506 = vpow.pop %v2505
    %v2507 = vmul.f32 %v2500, 1.442695
    %v2508 = vpow.pop %v2507
    %v2509 = vsel %vm352, %v2502, 0.0
    %2510 = vadd.xlane.f32.xlu0 %v2509
    %v2511 = vpop.xlane.xlu0 %2510
    %v2512 = vsel %vm352, %v2504, 0.0
    %2513 = vadd.xlane.f32.xlu0 %v2512
    %v2514 = vpop.xlane.xlu0 %2513
    %v2515 = vsel %vm352, %v2506, 0.0
    %2516 = vadd.xlane.f32.xlu0 %v2515
    %v2517 = vpop.xlane.xlu0 %2516
    %v2518 = vsel %vm352, %v2508, 0.0
    %2519 = vadd.xlane.f32.xlu0 %v2518
    %v2520 = vpop.xlane.xlu0 %2519
    %v2521 = vrcp.pop %v2511
    %v2522 = vrcp.pop %v2514
    %v2523 = vrcp.pop %v2517
    %v2524 = vrcp.pop %v2520
    %v2525 = vmul.f32 %v2502, %v2521
    %v2526 = vmul.f32 %v2504, %v2522
    %v2527 = vmul.f32 %v2506, %v2523
    %v2528 = vmul.f32 %v2508, %v2524
    %v2529 = vpack.c.bf16 %v2526, %v2525
    %v2530 = vpack.c.bf16 %v2528, %v2527
    %2531 = vrot.lane.b32.xlu0 %v1931, 96
    %v2532 = vpop.permute.xlu0 %2531
    %2533 = vrot.lane.b32.xlu0 %v1932, 96
    %v2534 = vpop.permute.xlu0 %2533
    %v2538 = vsel %vm352, %v2529, 0
    %v2541 = vsel %vm352, %v2530, 0
    %2543 = vmatprep.subr.bf16.mxu0 0
    %2544 = vmatpush1.bf16.msra.mxu0 0
    %2545 = vmatprep.subr.bf16.mxu0 0
    %2546 = vmatpush1.bf16.msra.mxu0 0
    %2547 = vmatprep.subr.bf16.mxu0 0
    %2548 = vmatpush1.bf16.msra.mxu0 0
    %2549 = vmatprep.subr.bf16.mxu0 0
    %2550 = vmatpush1.bf16.msra.mxu0 0
    %2551 = vmatprep.subr.bf16.mxu0 0
    %2552 = vmatpush1.bf16.msra.mxu0 0
    %2553 = vmatprep.subr.bf16.mxu0 0
    %2554 = vmatpush1.bf16.msra.mxu0 0
    %2555 = vmatprep.subr.bf16.mxu0 0
    %2556 = vmatpush1.bf16.msra.mxu0 %v2534
    %2557 = vmatprep.subr.bf16.mxu0 0
    %2558 = vmatpush1.bf16.msra.mxu0 %v2532
    %2559 = vmatprep.subr.bf16.mxu0 0
    %2560 = vmatpush2.bf16.msra.mxu0 0
    %2561 = vmatprep.subr.bf16.mxu0 0
    %2562 = vmatpush2.bf16.msra.mxu0 0
    %2563 = vmatprep.subr.bf16.mxu0 0
    %2564 = vmatpush2.bf16.msra.mxu0 0
    %2565 = vmatprep.subr.bf16.mxu0 0
    %2566 = vmatpush2.bf16.msra.mxu0 0
    %2567 = vmatprep.subr.bf16.mxu0 0
    %2568 = vmatpush2.bf16.msra.mxu0 0
    %2569 = vmatprep.subr.bf16.mxu0 0
    %2570 = vmatpush2.bf16.msra.mxu0 0
    %2571 = vmatprep.subr.bf16.mxu0 0
    %2572 = vmatpush2.bf16.msra.mxu0 0
    %2573 = vmatprep.subr.bf16.mxu0 0
    %2574 = vmatpush2.bf16.msra.mxu0 0
    %2575 = vmatprep.mubr.bf16.mxu0 0
    %2576 = vmatmul.mubr.bf16.gmra.mxu0 %v2538
    %v2577 = vpop.f32.mrf.mxu0
    %v2578 = vadd.f32 0.0, %v2577
    %v2579 = vpop.f32.mrf.mxu0
    %v2580 = vpop.f32.mrf.mxu0
    %v2581 = vadd.f32 0.0, %v2580
    %v2582 = vpop.f32.mrf.mxu0
    %2583 = vmatprep.mubr.bf16.mxu0 0
    %2584 = vmatmul.mubr.bf16.gmra.mxu0 %v2541
    %v2585 = vpop.f32.mrf.mxu0
    %v2586 = vadd.f32 0.0, %v2585
    %v2587 = vpop.f32.mrf.mxu0
    %v2588 = vpop.f32.mrf.mxu0
    %v2589 = vadd.f32 0.0, %v2588
    %v2590 = vpop.f32.mrf.mxu0
    %2591 = vdwg.mxu0
    %v2592 = vpack.c.bf16 %v2581, %v2578
    %v2593 = vpack.c.bf16 %v2589, %v2586
    %v2596 = vunpack.c.l.b16 %v1938
    %v2597 = vunpack.c.l.b16 %v1939
    %v2598 = vpack.c.b16 %v2597, %v2596
    %v2601 = vsel %vm290, %v2592, 0
    %v2604 = vsel %vm290, %v2593, 0
    %2606 = vmatprep.subr.bf16.mxu0 0
    %2607 = vmatpush1.bf16.msra.mxu0 0
    %2608 = vmatprep.subr.bf16.mxu0 0
    %2609 = vmatpush1.bf16.msra.mxu0 0
    %2610 = vmatprep.subr.bf16.mxu0 0
    %2611 = vmatpush1.bf16.msra.mxu0 0
    %2612 = vmatprep.subr.bf16.mxu0 0
    %2613 = vmatpush1.bf16.msra.mxu0 0
    %2614 = vmatprep.subr.bf16.mxu0 0
    %2615 = vmatpush1.bf16.msra.mxu0 0
    %2616 = vmatprep.subr.bf16.mxu0 0
    %2617 = vmatpush1.bf16.msra.mxu0 0
    %2618 = vmatprep.subr.bf16.mxu0 0
    %2619 = vmatpush1.bf16.msra.mxu0 0
    %2620 = vmatprep.subr.bf16.mxu0 0
    %2621 = vmatpush1.bf16.msra.mxu0 %v2598
    %2622 = vmatprep.subr.bf16.mxu0 0
    %2623 = vmatpush2.bf16.msra.mxu0 0
    %2624 = vmatprep.subr.bf16.mxu0 0
    %2625 = vmatpush2.bf16.msra.mxu0 0
    %2626 = vmatprep.subr.bf16.mxu0 0
    %2627 = vmatpush2.bf16.msra.mxu0 0
    %2628 = vmatprep.subr.bf16.mxu0 0
    %2629 = vmatpush2.bf16.msra.mxu0 0
    %2630 = vmatprep.subr.bf16.mxu0 0
    %2631 = vmatpush2.bf16.msra.mxu0 0
    %2632 = vmatprep.subr.bf16.mxu0 0
    %2633 = vmatpush2.bf16.msra.mxu0 0
    %2634 = vmatprep.subr.bf16.mxu0 0
    %2635 = vmatpush2.bf16.msra.mxu0 0
    %2636 = vmatprep.subr.bf16.mxu0 0
    %2637 = vmatpush2.bf16.msra.mxu0 0
    %2638 = vmatprep.mubr.bf16.mxu0 0
    %2639 = vmatmul.mubr.bf16.gmra.mxu0 %v2601
    %v2640 = vpop.f32.mrf.mxu0
    %v2641 = vadd.f32 0.0, %v2640
    %v2642 = vpop.f32.mrf.mxu0
    %v2643 = vpop.f32.mrf.mxu0
    %v2644 = vadd.f32 0.0, %v2643
    %v2645 = vpop.f32.mrf.mxu0
    %2646 = vmatprep.mubr.bf16.mxu0 0
    %2647 = vmatmul.mubr.bf16.gmra.mxu0 %v2604
    %v2648 = vpop.f32.mrf.mxu0
    %v2649 = vadd.f32 0.0, %v2648
    %v2650 = vpop.f32.mrf.mxu0
    %v2651 = vpop.f32.mrf.mxu0
    %v2652 = vadd.f32 0.0, %v2651
    %v2653 = vpop.f32.mrf.mxu0
    %2654 = vdwg.mxu0
    %v2655 = vadd.f32 %v2402, %v2641
    %v2656 = vadd.f32 %v2405, %v2644
    %v2657 = vadd.f32 %v2410, %v2649
    %v2658 = vadd.f32 %v2413, %v2652
    %2659 = vrot.lane.b32.xlu0 %v1927, 80
    %v2660 = vpop.permute.xlu0 %2659
    %2661 = vrot.lane.b32.xlu0 %v1928, 80
    %v2662 = vpop.permute.xlu0 %2661
    %2663 = vrot.lane.b32.xlu0 %v1929, 16
    %v2664 = vpop.permute.xlu0 %2663
    %2665 = vrot.lane.b32.xlu0 %v1930, 16
    %v2666 = vpop.permute.xlu0 %2665
    %v2668 = vsel %vm290, %v2660, 0
    %v2671 = vsel %vm290, %v2662, 0
    %v2674 = vsel %vm290, %v2664, 0
    %v2677 = vsel %vm290, %v2666, 0
    %2679 = vmatprep.subr.bf16.mxu0 0
    %2680 = vmatpush1.bf16.xpose.msra.mxu0 0
    %2681 = vmatprep.subr.bf16.mxu0 0
    %2682 = vmatpush1.bf16.xpose.msra.mxu0 0
    %2683 = vmatprep.subr.bf16.mxu0 0
    %2684 = vmatpush1.bf16.xpose.msra.mxu0 0
    %2685 = vmatprep.subr.bf16.mxu0 0
    %2686 = vmatpush1.bf16.xpose.msra.mxu0 0
    %2687 = vmatprep.subr.bf16.mxu0 0
    %2688 = vmatpush1.bf16.xpose.msra.mxu0 0
    %2689 = vmatprep.subr.bf16.mxu0 0
    %2690 = vmatpush1.bf16.xpose.msra.mxu0 0
    %2691 = vmatprep.subr.bf16.mxu0 0
    %2692 = vmatpush1.bf16.xpose.msra.mxu0 %v2677
    %2693 = vmatprep.subr.bf16.mxu0 0
    %2694 = vmatpush1.bf16.xpose.msra.mxu0 %v2674
    %2695 = vmatprep.subr.bf16.mxu0 0
    %2696 = vmatpush2.bf16.xpose.msra.mxu0 0
    %2697 = vmatprep.subr.bf16.mxu0 0
    %2698 = vmatpush2.bf16.xpose.msra.mxu0 0
    %2699 = vmatprep.subr.bf16.mxu0 0
    %2700 = vmatpush2.bf16.xpose.msra.mxu0 0
    %2701 = vmatprep.subr.bf16.mxu0 0
    %2702 = vmatpush2.bf16.xpose.msra.mxu0 0
    %2703 = vmatprep.subr.bf16.mxu0 0
    %2704 = vmatpush2.bf16.xpose.msra.mxu0 0
    %2705 = vmatprep.subr.bf16.mxu0 0
    %2706 = vmatpush2.bf16.xpose.msra.mxu0 0
    %2707 = vmatprep.subr.bf16.mxu0 0
    %2708 = vmatpush2.bf16.xpose.msra.mxu0 0
    %2709 = vmatprep.subr.bf16.mxu0 0
    %2710 = vmatpush2.bf16.xpose.msra.mxu0 0
    %2711 = vmatprep.mubr.bf16.mxu0 0
    %2712 = vmatmul.mubr.bf16.gmra.mxu0 %v2668
    %v2713 = vpop.f32.mrf.mxu0
    %v2714 = vadd.f32 %v65, %v2713
    %v2715 = vpop.f32.mrf.mxu0
    %v2716 = vpop.f32.mrf.mxu0
    %v2717 = vadd.f32 %v66, %v2716
    %v2718 = vpop.f32.mrf.mxu0
    %2719 = vmatprep.mubr.bf16.mxu0 0
    %2720 = vmatmul.mubr.bf16.gmra.mxu0 %v2671
    %v2721 = vpop.f32.mrf.mxu0
    %v2722 = vadd.f32 %v67, %v2721
    %v2723 = vpop.f32.mrf.mxu0
    %v2724 = vpop.f32.mrf.mxu0
    %v2725 = vadd.f32 %v68, %v2724
    %v2726 = vpop.f32.mrf.mxu0
    %2727 = vdwg.mxu0
    %v2728 = vsel %vm352, %v2714, -inf
    %2729 = vmax.xlane.f32.xlu0 %v2728
    %v2730 = vpop.xlane.xlu0 %2729
    %v2731 = vsel %vm352, %v2717, -inf
    %2732 = vmax.xlane.f32.xlu0 %v2731
    %v2733 = vpop.xlane.xlu0 %2732
    %v2734 = vsel %vm352, %v2722, -inf
    %2735 = vmax.xlane.f32.xlu0 %v2734
    %v2736 = vpop.xlane.xlu0 %2735
    %v2737 = vsel %vm352, %v2725, -inf
    %2738 = vmax.xlane.f32.xlu0 %v2737
    %v2739 = vpop.xlane.xlu0 %2738
    %v2740 = vsub.f32 %v2714, %v2730
    %v2741 = vsub.f32 %v2717, %v2733
    %v2742 = vsub.f32 %v2722, %v2736
    %v2743 = vsub.f32 %v2725, %v2739
    %v2744 = vmul.f32 %v2740, 1.442695
    %v2745 = vpow.pop %v2744
    %v2746 = vmul.f32 %v2741, 1.442695
    %v2747 = vpow.pop %v2746
    %v2748 = vmul.f32 %v2742, 1.442695
    %v2749 = vpow.pop %v2748
    %v2750 = vmul.f32 %v2743, 1.442695
    %v2751 = vpow.pop %v2750
    %v2752 = vsel %vm352, %v2745, 0.0
    %2753 = vadd.xlane.f32.xlu0 %v2752
    %v2754 = vpop.xlane.xlu0 %2753
    %v2755 = vsel %vm352, %v2747, 0.0
    %2756 = vadd.xlane.f32.xlu0 %v2755
    %v2757 = vpop.xlane.xlu0 %2756
    %v2758 = vsel %vm352, %v2749, 0.0
    %2759 = vadd.xlane.f32.xlu0 %v2758
    %v2760 = vpop.xlane.xlu0 %2759
    %v2761 = vsel %vm352, %v2751, 0.0
    %2762 = vadd.xlane.f32.xlu0 %v2761
    %v2763 = vpop.xlane.xlu0 %2762
    %v2764 = vrcp.pop %v2754
    %v2765 = vrcp.pop %v2757
    %v2766 = vrcp.pop %v2760
    %v2767 = vrcp.pop %v2763
    %v2768 = vmul.f32 %v2745, %v2764
    %v2769 = vmul.f32 %v2747, %v2765
    %v2770 = vmul.f32 %v2749, %v2766
    %v2771 = vmul.f32 %v2751, %v2767
    %v2772 = vpack.c.bf16 %v2769, %v2768
    %v2773 = vpack.c.bf16 %v2771, %v2770
    %2774 = vrot.lane.b32.xlu0 %v1931, 80
    %v2775 = vpop.permute.xlu0 %2774
    %2776 = vrot.lane.b32.xlu0 %v1932, 80
    %v2777 = vpop.permute.xlu0 %2776
    %v2781 = vsel %vm352, %v2772, 0
    %v2784 = vsel %vm352, %v2773, 0
    %2786 = vmatprep.subr.bf16.mxu0 0
    %2787 = vmatpush1.bf16.msra.mxu0 0
    %2788 = vmatprep.subr.bf16.mxu0 0
    %2789 = vmatpush1.bf16.msra.mxu0 0
    %2790 = vmatprep.subr.bf16.mxu0 0
    %2791 = vmatpush1.bf16.msra.mxu0 0
    %2792 = vmatprep.subr.bf16.mxu0 0
    %2793 = vmatpush1.bf16.msra.mxu0 0
    %2794 = vmatprep.subr.bf16.mxu0 0
    %2795 = vmatpush1.bf16.msra.mxu0 0
    %2796 = vmatprep.subr.bf16.mxu0 0
    %2797 = vmatpush1.bf16.msra.mxu0 0
    %2798 = vmatprep.subr.bf16.mxu0 0
    %2799 = vmatpush1.bf16.msra.mxu0 %v2777
    %2800 = vmatprep.subr.bf16.mxu0 0
    %2801 = vmatpush1.bf16.msra.mxu0 %v2775
    %2802 = vmatprep.subr.bf16.mxu0 0
    %2803 = vmatpush2.bf16.msra.mxu0 0
    %2804 = vmatprep.subr.bf16.mxu0 0
    %2805 = vmatpush2.bf16.msra.mxu0 0
    %2806 = vmatprep.subr.bf16.mxu0 0
    %2807 = vmatpush2.bf16.msra.mxu0 0
    %2808 = vmatprep.subr.bf16.mxu0 0
    %2809 = vmatpush2.bf16.msra.mxu0 0
    %2810 = vmatprep.subr.bf16.mxu0 0
    %2811 = vmatpush2.bf16.msra.mxu0 0
    %2812 = vmatprep.subr.bf16.mxu0 0
    %2813 = vmatpush2.bf16.msra.mxu0 0
    %2814 = vmatprep.subr.bf16.mxu0 0
    %2815 = vmatpush2.bf16.msra.mxu0 0
    %2816 = vmatprep.subr.bf16.mxu0 0
    %2817 = vmatpush2.bf16.msra.mxu0 0
    %2818 = vmatprep.mubr.bf16.mxu0 0
    %2819 = vmatmul.mubr.bf16.gmra.mxu0 %v2781
    %v2820 = vpop.f32.mrf.mxu0
    %v2821 = vadd.f32 0.0, %v2820
    %v2822 = vpop.f32.mrf.mxu0
    %v2823 = vpop.f32.mrf.mxu0
    %v2824 = vadd.f32 0.0, %v2823
    %v2825 = vpop.f32.mrf.mxu0
    %2826 = vmatprep.mubr.bf16.mxu0 0
    %2827 = vmatmul.mubr.bf16.gmra.mxu0 %v2784
    %v2828 = vpop.f32.mrf.mxu0
    %v2829 = vadd.f32 0.0, %v2828
    %v2830 = vpop.f32.mrf.mxu0
    %v2831 = vpop.f32.mrf.mxu0
    %v2832 = vadd.f32 0.0, %v2831
    %v2833 = vpop.f32.mrf.mxu0
    %2834 = vdwg.mxu0
    %v2835 = vpack.c.bf16 %v2824, %v2821
    %v2836 = vpack.c.bf16 %v2832, %v2829
    %v2839 = vunpack.c.l.b16 %v1940
    %v2840 = vunpack.c.l.b16 %v1941
    %v2841 = vpack.c.b16 %v2840, %v2839
    %v2844 = vsel %vm290, %v2835, 0
    %v2847 = vsel %vm290, %v2836, 0
    %2849 = vmatprep.subr.bf16.mxu0 0
    %2850 = vmatpush1.bf16.msra.mxu0 0
    %2851 = vmatprep.subr.bf16.mxu0 0
    %2852 = vmatpush1.bf16.msra.mxu0 0
    %2853 = vmatprep.subr.bf16.mxu0 0
    %2854 = vmatpush1.bf16.msra.mxu0 0
    %2855 = vmatprep.subr.bf16.mxu0 0
    %2856 = vmatpush1.bf16.msra.mxu0 0
    %2857 = vmatprep.subr.bf16.mxu0 0
    %2858 = vmatpush1.bf16.msra.mxu0 0
    %2859 = vmatprep.subr.bf16.mxu0 0
    %2860 = vmatpush1.bf16.msra.mxu0 0
    %2861 = vmatprep.subr.bf16.mxu0 0
    %2862 = vmatpush1.bf16.msra.mxu0 0
    %2863 = vmatprep.subr.bf16.mxu0 0
    %2864 = vmatpush1.bf16.msra.mxu0 %v2841
    %2865 = vmatprep.subr.bf16.mxu0 0
    %2866 = vmatpush2.bf16.msra.mxu0 0
    %2867 = vmatprep.subr.bf16.mxu0 0
    %2868 = vmatpush2.bf16.msra.mxu0 0
    %2869 = vmatprep.subr.bf16.mxu0 0
    %2870 = vmatpush2.bf16.msra.mxu0 0
    %2871 = vmatprep.subr.bf16.mxu0 0
    %2872 = vmatpush2.bf16.msra.mxu0 0
    %2873 = vmatprep.subr.bf16.mxu0 0
    %2874 = vmatpush2.bf16.msra.mxu0 0
    %2875 = vmatprep.subr.bf16.mxu0 0
    %2876 = vmatpush2.bf16.msra.mxu0 0
    %2877 = vmatprep.subr.bf16.mxu0 0
    %2878 = vmatpush2.bf16.msra.mxu0 0
    %2879 = vmatprep.subr.bf16.mxu0 0
    %2880 = vmatpush2.bf16.msra.mxu0 0
    %2881 = vmatprep.mubr.bf16.mxu0 0
    %2882 = vmatmul.mubr.bf16.gmra.mxu0 %v2844
    %v2883 = vpop.f32.mrf.mxu0
    %v2884 = vadd.f32 0.0, %v2883
    %v2885 = vpop.f32.mrf.mxu0
    %v2886 = vpop.f32.mrf.mxu0
    %v2887 = vadd.f32 0.0, %v2886
    %v2888 = vpop.f32.mrf.mxu0
    %2889 = vmatprep.mubr.bf16.mxu0 0
    %2890 = vmatmul.mubr.bf16.gmra.mxu0 %v2847
    %v2891 = vpop.f32.mrf.mxu0
    %v2892 = vadd.f32 0.0, %v2891
    %v2893 = vpop.f32.mrf.mxu0
    %v2894 = vpop.f32.mrf.mxu0
    %v2895 = vadd.f32 0.0, %v2894
    %v2896 = vpop.f32.mrf.mxu0
    %2897 = vdwg.mxu0
    %v2898 = vadd.f32 %v2655, %v2884
    %v2899 = vadd.f32 %v2656, %v2887
    %v2900 = vadd.f32 %v2657, %v2892
    %v2901 = vadd.f32 %v2658, %v2895
    %v2902 = vadd.f32 %v1720, %v2898
    %v2903 = vadd.f32 %v1721, %v2899
    %v2904 = vadd.f32 %v1722, %v2900
    %v2905 = vadd.f32 %v1723, %v2901
    %s2906 = scalar_lea.vmem %s8, 1
    %v2907 = vld [vmem:[%s2906] sm:$0x1]
    %v2909 = vlaneseq
    %v2910 = vshrl.u32 %v2909, 7
    %v2911 = vsub.s32 0, %v2910
    %v2912 = vrot.slane %v2907, %v2911
    %v2914 = vadd.f32 %v2902, %v2912
    %v2915 = vadd.f32 %v2903, %v2912
    %v2916 = vadd.f32 %v2904, %v2912
    %v2917 = vadd.f32 %v2905, %v2912
    %s2918 = scalar_lea.vmem %s9, 1
    %v2919 = vld [vmem:[%s2918] sm:$0x1]
    %s2920 = scalar_lea.vmem %s10, 1
    %v2921 = vld [vmem:[%s2920] sm:$0x1]
    %v2922 = vsel %vm71, %v2914, 0.0
    %2923 = vadd.xlane.f32.xlu0 %v2922
    %v2924 = vpop.xlane.xlu0 %2923
    %v2925 = vsel %vm71, %v2915, 0.0
    %2926 = vadd.xlane.f32.xlu0 %v2925
    %v2927 = vpop.xlane.xlu0 %2926
    %v2928 = vsel %vm71, %v2916, 0.0
    %2929 = vadd.xlane.f32.xlu0 %v2928
    %v2930 = vpop.xlane.xlu0 %2929
    %v2931 = vsel %vm71, %v2917, 0.0
    %2932 = vadd.xlane.f32.xlu0 %v2931
    %v2933 = vpop.xlane.xlu0 %2932
    %v2934 = vmul.f32 %v2924, %v84
    %v2935 = vmul.f32 %v2927, %v84
    %v2936 = vmul.f32 %v2930, %v84
    %v2937 = vmul.f32 %v2933, %v84
    %v2938 = vsub.f32 %v2914, %v2934
    %v2939 = vsub.f32 %v2915, %v2935
    %v2940 = vsub.f32 %v2916, %v2936
    %v2941 = vsub.f32 %v2917, %v2937
    %v2942 = vmul.f32 %v2938, %v2938
    %v2943 = vmul.f32 %v2939, %v2939
    %v2944 = vmul.f32 %v2940, %v2940
    %v2945 = vmul.f32 %v2941, %v2941
    %v2946 = vsel %vm71, %v2942, 0.0
    %2947 = vadd.xlane.f32.xlu0 %v2946
    %v2948 = vpop.xlane.xlu0 %2947
    %v2949 = vsel %vm71, %v2943, 0.0
    %2950 = vadd.xlane.f32.xlu0 %v2949
    %v2951 = vpop.xlane.xlu0 %2950
    %v2952 = vsel %vm71, %v2944, 0.0
    %2953 = vadd.xlane.f32.xlu0 %v2952
    %v2954 = vpop.xlane.xlu0 %2953
    %v2955 = vsel %vm71, %v2945, 0.0
    %2956 = vadd.xlane.f32.xlu0 %v2955
    %v2957 = vpop.xlane.xlu0 %2956
    %v2958 = vmul.f32 %v2948, %v84
    %v2959 = vmul.f32 %v2951, %v84
    %v2960 = vmul.f32 %v2954, %v84
    %v2961 = vmul.f32 %v2957, %v84
    %v2962 = vadd.f32 %v2958, 1e-05
    %v2963 = vadd.f32 %v2959, 1e-05
    %v2964 = vadd.f32 %v2960, 1e-05
    %v2965 = vadd.f32 %v2961, 1e-05
    %v2966 = vrsqrt.pop %v2962
    %v2967 = vrsqrt.pop %v2963
    %v2968 = vrsqrt.pop %v2964
    %v2969 = vrsqrt.pop %v2965
    %v2970 = vmul.f32 %v2938, %v2966
    %v2971 = vmul.f32 %v2939, %v2967
    %v2972 = vmul.f32 %v2940, %v2968
    %v2973 = vmul.f32 %v2941, %v2969
    %v2975 = vlaneseq
    %v2976 = vshrl.u32 %v2975, 7
    %v2977 = vsub.s32 0, %v2976
    %v2978 = vrot.slane %v2919, %v2977
    %v2980 = vmul.f32 %v2970, %v2978
    %v2981 = vmul.f32 %v2971, %v2978
    %v2982 = vmul.f32 %v2972, %v2978
    %v2983 = vmul.f32 %v2973, %v2978
    %v2985 = vlaneseq
    %v2986 = vshrl.u32 %v2985, 7
    %v2987 = vsub.s32 0, %v2986
    %v2988 = vrot.slane %v2921, %v2987
    %v2990 = vadd.f32 %v2980, %v2988
    %v2991 = vadd.f32 %v2981, %v2988
    %v2992 = vadd.f32 %v2982, %v2988
    %v2993 = vadd.f32 %v2983, %v2988
    %v2994 = vpack.c.bf16 %v2991, %v2990
    %v2995 = vpack.c.bf16 %v2993, %v2992
    %s2996 = scalar_lea.vmem %s11, 64
    %v2997 = vld [vmem:[%s2996] sm:$0xff]
    %v2998 = vld [vmem:[%s2996 + $0x8] sm:$0xff]
    %v2999 = vld [vmem:[%s2996 + $0x10] sm:$0xff]
    %v3000 = vld [vmem:[%s2996 + $0x18] sm:$0xff]
    %v3001 = vld [vmem:[%s2996 + $0x20] sm:$0xff]
    %v3002 = vld [vmem:[%s2996 + $0x28] sm:$0xff]
    %v3003 = vld [vmem:[%s2996 + $0x30] sm:$0xff]
    %v3004 = vld [vmem:[%s2996 + $0x38] sm:$0xff]
    %s3005 = scalar_lea.vmem %s12, 2
    %v3006 = vld [vmem:[%s3005] sm:$0x3]
    %v3008 = vlaneseq
    %v3009 = vshrl.u32 %v3008, 7
    %v3010 = vsub.s32 0, %v3009
    %v3011 = vrot.slane %v3006, %v3010
    %v3012 = vlaneseq
    %v3013 = vshrl.u32 %v3012, 7
    %v3014 = vsub.s32 1, %v3013
    %v3015 = vrot.slane %v3006, %v3014
    %v3026 = vunpack.c.l.b16 %v2997
    %v3027 = vunpack.c.h.b16 %v2997
    %v3028 = vunpack.c.l.b16 %v2998
    %v3029 = vunpack.c.h.b16 %v2998
    %v3030 = vunpack.c.l.b16 %v2999
    %v3031 = vunpack.c.h.b16 %v2999
    %v3032 = vunpack.c.l.b16 %v3000
    %v3033 = vunpack.c.h.b16 %v3000
    %v3034 = vunpack.c.l.b16 %v3001
    %v3035 = vunpack.c.h.b16 %v3001
    %v3036 = vunpack.c.l.b16 %v3002
    %v3037 = vunpack.c.h.b16 %v3002
    %v3038 = vunpack.c.l.b16 %v3003
    %v3039 = vunpack.c.h.b16 %v3003
    %v3040 = vunpack.c.l.b16 %v3004
    %v3041 = vunpack.c.h.b16 %v3004
    %v3042 = vpack.c.b16 %v3028, %v3026
    %v3043 = vpack.c.b16 %v3029, %v3027
    %v3044 = vpack.c.b16 %v3032, %v3030
    %v3045 = vpack.c.b16 %v3033, %v3031
    %v3046 = vpack.c.b16 %v3036, %v3034
    %v3047 = vpack.c.b16 %v3037, %v3035
    %v3048 = vpack.c.b16 %v3040, %v3038
    %v3049 = vpack.c.b16 %v3041, %v3039
    %v3059 = vsel %vm71, %v2994, 0
    %v3062 = vsel %vm71, %v2995, 0
    %3064 = vmatprep.subr.bf16.mxu0 0
    %3065 = vmatpush1.bf16.msra.mxu0 0
    %3066 = vmatprep.subr.bf16.mxu0 0
    %3067 = vmatpush1.bf16.msra.mxu0 0
    %3068 = vmatprep.subr.bf16.mxu0 0
    %3069 = vmatpush1.bf16.msra.mxu0 0
    %3070 = vmatprep.subr.bf16.mxu0 0
    %3071 = vmatpush1.bf16.msra.mxu0 0
    %3072 = vmatprep.subr.bf16.mxu0 %v3049
    %3073 = vmatpush1.bf16.msra.mxu0 %v3048
    %3074 = vmatprep.subr.bf16.mxu0 %v3047
    %3075 = vmatpush1.bf16.msra.mxu0 %v3046
    %3076 = vmatprep.subr.bf16.mxu0 %v3045
    %3077 = vmatpush1.bf16.msra.mxu0 %v3044
    %3078 = vmatprep.subr.bf16.mxu0 %v3043
    %3079 = vmatpush1.bf16.msra.mxu0 %v3042
    %3080 = vmatprep.subr.bf16.mxu0 0
    %3081 = vmatpush2.bf16.msra.mxu0 0
    %3082 = vmatprep.subr.bf16.mxu0 0
    %3083 = vmatpush2.bf16.msra.mxu0 0
    %3084 = vmatprep.subr.bf16.mxu0 0
    %3085 = vmatpush2.bf16.msra.mxu0 0
    %3086 = vmatprep.subr.bf16.mxu0 0
    %3087 = vmatpush2.bf16.msra.mxu0 0
    %3088 = vmatprep.subr.bf16.mxu0 0
    %3089 = vmatpush2.bf16.msra.mxu0 0
    %3090 = vmatprep.subr.bf16.mxu0 0
    %3091 = vmatpush2.bf16.msra.mxu0 0
    %3092 = vmatprep.subr.bf16.mxu0 0
    %3093 = vmatpush2.bf16.msra.mxu0 0
    %3094 = vmatprep.subr.bf16.mxu0 0
    %3095 = vmatpush2.bf16.msra.mxu0 0
    %3096 = vmatprep.mubr.bf16.mxu0 0
    %3097 = vmatmul.mubr.bf16.gmra.mxu0 %v3059
    %v3098 = vpop.f32.mrf.mxu0
    %v3099 = vadd.f32 %v3011, %v3098
    %v3100 = vpop.f32.mrf.mxu0
    %v3101 = vadd.f32 %v3015, %v3100
    %v3102 = vpop.f32.mrf.mxu0
    %v3103 = vadd.f32 %v3011, %v3102
    %v3104 = vpop.f32.mrf.mxu0
    %v3105 = vadd.f32 %v3015, %v3104
    %3106 = vmatprep.mubr.bf16.mxu0 0
    %3107 = vmatmul.mubr.bf16.gmra.mxu0 %v3062
    %v3108 = vpop.f32.mrf.mxu0
    %v3109 = vadd.f32 %v3011, %v3108
    %v3110 = vpop.f32.mrf.mxu0
    %v3111 = vadd.f32 %v3015, %v3110
    %v3112 = vpop.f32.mrf.mxu0
    %v3113 = vadd.f32 %v3011, %v3112
    %v3114 = vpop.f32.mrf.mxu0
    %v3115 = vadd.f32 %v3015, %v3114
    %3116 = vdwg.mxu0
    %v3117 = vmul.f32 %v3099, %v3099
    %v3118 = vmul.f32 %v3101, %v3101
    %v3119 = vmul.f32 %v3103, %v3103
    %v3120 = vmul.f32 %v3105, %v3105
    %v3121 = vmul.f32 %v3109, %v3109
    %v3122 = vmul.f32 %v3111, %v3111
    %v3123 = vmul.f32 %v3113, %v3113
    %v3124 = vmul.f32 %v3115, %v3115
    %v3125 = vmul.f32 %v3099, %v3117
    %v3126 = vmul.f32 %v3101, %v3118
    %v3127 = vmul.f32 %v3103, %v3119
    %v3128 = vmul.f32 %v3105, %v3120
    %v3129 = vmul.f32 %v3109, %v3121
    %v3130 = vmul.f32 %v3111, %v3122
    %v3131 = vmul.f32 %v3113, %v3123
    %v3132 = vmul.f32 %v3115, %v3124
    %v3133 = vmul.f32 %v3125, 0.044715
    %v3134 = vmul.f32 %v3126, 0.044715
    %v3135 = vmul.f32 %v3127, 0.044715
    %v3136 = vmul.f32 %v3128, 0.044715
    %v3137 = vmul.f32 %v3129, 0.044715
    %v3138 = vmul.f32 %v3130, 0.044715
    %v3139 = vmul.f32 %v3131, 0.044715
    %v3140 = vmul.f32 %v3132, 0.044715
    %v3141 = vadd.f32 %v3099, %v3133
    %v3142 = vadd.f32 %v3101, %v3134
    %v3143 = vadd.f32 %v3103, %v3135
    %v3144 = vadd.f32 %v3105, %v3136
    %v3145 = vadd.f32 %v3109, %v3137
    %v3146 = vadd.f32 %v3111, %v3138
    %v3147 = vadd.f32 %v3113, %v3139
    %v3148 = vadd.f32 %v3115, %v3140
    %v3149 = vmul.f32 %v3141, 0.7978846
    %v3150 = vmul.f32 %v3142, 0.7978846
    %v3151 = vmul.f32 %v3143, 0.7978846
    %v3152 = vmul.f32 %v3144, 0.7978846
    %v3153 = vmul.f32 %v3145, 0.7978846
    %v3154 = vmul.f32 %v3146, 0.7978846
    %v3155 = vmul.f32 %v3147, 0.7978846
    %v3156 = vmul.f32 %v3148, 0.7978846
    %v3157 = vtanh.pop %v3149
    %v3158 = vtanh.pop %v3150
    %v3159 = vtanh.pop %v3151
    %v3160 = vtanh.pop %v3152
    %v3161 = vtanh.pop %v3153
    %v3162 = vtanh.pop %v3154
    %v3163 = vtanh.pop %v3155
    %v3164 = vtanh.pop %v3156
    %v3165 = vadd.f32 %v3157, 1.0
    %v3166 = vadd.f32 %v3158, 1.0
    %v3167 = vadd.f32 %v3159, 1.0
    %v3168 = vadd.f32 %v3160, 1.0
    %v3169 = vadd.f32 %v3161, 1.0
    %v3170 = vadd.f32 %v3162, 1.0
    %v3171 = vadd.f32 %v3163, 1.0
    %v3172 = vadd.f32 %v3164, 1.0
    %v3173 = vmul.f32 %v3165, 0.5
    %v3174 = vmul.f32 %v3166, 0.5
    %v3175 = vmul.f32 %v3167, 0.5
    %v3176 = vmul.f32 %v3168, 0.5
    %v3177 = vmul.f32 %v3169, 0.5
    %v3178 = vmul.f32 %v3170, 0.5
    %v3179 = vmul.f32 %v3171, 0.5
    %v3180 = vmul.f32 %v3172, 0.5
    %v3181 = vmul.f32 %v3099, %v3173
    %v3182 = vmul.f32 %v3101, %v3174
    %v3183 = vmul.f32 %v3103, %v3175
    %v3184 = vmul.f32 %v3105, %v3176
    %v3185 = vmul.f32 %v3109, %v3177
    %v3186 = vmul.f32 %v3111, %v3178
    %v3187 = vmul.f32 %v3113, %v3179
    %v3188 = vmul.f32 %v3115, %v3180
    %v3189 = vpack.c.bf16 %v3183, %v3181
    %v3190 = vpack.c.bf16 %v3184, %v3182
    %v3191 = vpack.c.bf16 %v3187, %v3185
    %v3192 = vpack.c.bf16 %v3188, %v3186
    %s3193 = scalar_lea.vmem %s13, 128
    %v3194 = vld [vmem:[%s3193] sm:$0xf]
    %v3195 = vld [vmem:[%s3193 + $0x4] sm:$0xf]
    %v3196 = vld [vmem:[%s3193 + $0x8] sm:$0xf]
    %v3197 = vld [vmem:[%s3193 + $0xc] sm:$0xf]
    %v3198 = vld [vmem:[%s3193 + $0x10] sm:$0xf]
    %v3199 = vld [vmem:[%s3193 + $0x14] sm:$0xf]
    %v3200 = vld [vmem:[%s3193 + $0x18] sm:$0xf]
    %v3201 = vld [vmem:[%s3193 + $0x1c] sm:$0xf]
    %v3202 = vld [vmem:[%s3193 + $0x20] sm:$0xf]
    %v3203 = vld [vmem:[%s3193 + $0x24] sm:$0xf]
    %v3204 = vld [vmem:[%s3193 + $0x28] sm:$0xf]
    %v3205 = vld [vmem:[%s3193 + $0x2c] sm:$0xf]
    %v3206 = vld [vmem:[%s3193 + $0x30] sm:$0xf]
    %v3207 = vld [vmem:[%s3193 + $0x34] sm:$0xf]
    %v3208 = vld [vmem:[%s3193 + $0x38] sm:$0xf]
    %v3209 = vld [vmem:[%s3193 + $0x3c] sm:$0xf]
    %v3210 = vld [vmem:[%s3193 + $0x40] sm:$0xf]
    %v3211 = vld [vmem:[%s3193 + $0x44] sm:$0xf]
    %v3212 = vld [vmem:[%s3193 + $0x48] sm:$0xf]
    %v3213 = vld [vmem:[%s3193 + $0x4c] sm:$0xf]
    %v3214 = vld [vmem:[%s3193 + $0x50] sm:$0xf]
    %v3215 = vld [vmem:[%s3193 + $0x54] sm:$0xf]
    %v3216 = vld [vmem:[%s3193 + $0x58] sm:$0xf]
    %v3217 = vld [vmem:[%s3193 + $0x5c] sm:$0xf]
    %v3218 = vld [vmem:[%s3193 + $0x60] sm:$0xf]
    %v3219 = vld [vmem:[%s3193 + $0x64] sm:$0xf]
    %v3220 = vld [vmem:[%s3193 + $0x68] sm:$0xf]
    %v3221 = vld [vmem:[%s3193 + $0x6c] sm:$0xf]
    %v3222 = vld [vmem:[%s3193 + $0x70] sm:$0xf]
    %v3223 = vld [vmem:[%s3193 + $0x74] sm:$0xf]
    %v3224 = vld [vmem:[%s3193 + $0x78] sm:$0xf]
    %v3225 = vld [vmem:[%s3193 + $0x7c] sm:$0xf]
    %v3258 = vunpack.c.l.b16 %v3194
    %v3259 = vunpack.c.l.b16 %v3195
    %v3260 = vunpack.c.l.b16 %v3196
    %v3261 = vunpack.c.l.b16 %v3197
    %v3262 = vunpack.c.l.b16 %v3198
    %v3263 = vunpack.c.l.b16 %v3199
    %v3264 = vunpack.c.l.b16 %v3200
    %v3265 = vunpack.c.l.b16 %v3201
    %v3266 = vunpack.c.l.b16 %v3202
    %v3267 = vunpack.c.l.b16 %v3203
    %v3268 = vunpack.c.l.b16 %v3204
    %v3269 = vunpack.c.l.b16 %v3205
    %v3270 = vunpack.c.l.b16 %v3206
    %v3271 = vunpack.c.l.b16 %v3207
    %v3272 = vunpack.c.l.b16 %v3208
    %v3273 = vunpack.c.l.b16 %v3209
    %v3274 = vunpack.c.l.b16 %v3210
    %v3275 = vunpack.c.l.b16 %v3211
    %v3276 = vunpack.c.l.b16 %v3212
    %v3277 = vunpack.c.l.b16 %v3213
    %v3278 = vunpack.c.l.b16 %v3214
    %v3279 = vunpack.c.l.b16 %v3215
    %v3280 = vunpack.c.l.b16 %v3216
    %v3281 = vunpack.c.l.b16 %v3217
    %v3282 = vunpack.c.l.b16 %v3218
    %v3283 = vunpack.c.l.b16 %v3219
    %v3284 = vunpack.c.l.b16 %v3220
    %v3285 = vunpack.c.l.b16 %v3221
    %v3286 = vunpack.c.l.b16 %v3222
    %v3287 = vunpack.c.l.b16 %v3223
    %v3288 = vunpack.c.l.b16 %v3224
    %v3289 = vunpack.c.l.b16 %v3225
    %v3290 = vpack.c.b16 %v3259, %v3258
    %v3291 = vpack.c.b16 %v3261, %v3260
    %v3292 = vpack.c.b16 %v3263, %v3262
    %v3293 = vpack.c.b16 %v3265, %v3264
    %v3294 = vpack.c.b16 %v3267, %v3266
    %v3295 = vpack.c.b16 %v3269, %v3268
    %v3296 = vpack.c.b16 %v3271, %v3270
    %v3297 = vpack.c.b16 %v3273, %v3272
    %v3298 = vpack.c.b16 %v3275, %v3274
    %v3299 = vpack.c.b16 %v3277, %v3276
    %v3300 = vpack.c.b16 %v3279, %v3278
    %v3301 = vpack.c.b16 %v3281, %v3280
    %v3302 = vpack.c.b16 %v3283, %v3282
    %v3303 = vpack.c.b16 %v3285, %v3284
    %v3304 = vpack.c.b16 %v3287, %v3286
    %v3305 = vpack.c.b16 %v3289, %v3288
    %3322 = vmatprep.subr.bf16.mxu0 0
    %3323 = vmatpush1.bf16.msra.mxu0 %v3297
    %3324 = vmatprep.subr.bf16.mxu0 0
    %3325 = vmatpush1.bf16.msra.mxu0 %v3296
    %3326 = vmatprep.subr.bf16.mxu0 0
    %3327 = vmatpush1.bf16.msra.mxu0 %v3295
    %3328 = vmatprep.subr.bf16.mxu0 0
    %3329 = vmatpush1.bf16.msra.mxu0 %v3294
    %3330 = vmatprep.subr.bf16.mxu0 0
    %3331 = vmatpush1.bf16.msra.mxu0 %v3293
    %3332 = vmatprep.subr.bf16.mxu0 0
    %3333 = vmatpush1.bf16.msra.mxu0 %v3292
    %3334 = vmatprep.subr.bf16.mxu0 0
    %3335 = vmatpush1.bf16.msra.mxu0 %v3291
    %3336 = vmatprep.subr.bf16.mxu0 0
    %3337 = vmatpush1.bf16.msra.mxu0 %v3290
    %3338 = vmatprep.subr.bf16.mxu0 0
    %3339 = vmatpush2.bf16.msra.mxu0 %v3305
    %3340 = vmatprep.subr.bf16.mxu0 0
    %3341 = vmatpush2.bf16.msra.mxu0 %v3304
    %3342 = vmatprep.subr.bf16.mxu0 0
    %3343 = vmatpush2.bf16.msra.mxu0 %v3303
    %3344 = vmatprep.subr.bf16.mxu0 0
    %3345 = vmatpush2.bf16.msra.mxu0 %v3302
    %3346 = vmatprep.subr.bf16.mxu0 0
    %3347 = vmatpush2.bf16.msra.mxu0 %v3301
    %3348 = vmatprep.subr.bf16.mxu0 0
    %3349 = vmatpush2.bf16.msra.mxu0 %v3300
    %3350 = vmatprep.subr.bf16.mxu0 0
    %3351 = vmatpush2.bf16.msra.mxu0 %v3299
    %3352 = vmatprep.subr.bf16.mxu0 0
    %3353 = vmatpush2.bf16.msra.mxu0 %v3298
    %3354 = vmatprep.mubr.bf16.mxu0 %v3190
    %3355 = vmatmul.mubr.bf16.gmra.mxu0 %v3189
    %v3356 = vpop.f32.mrf.mxu0
    %v3357 = vadd.f32 0.0, %v3356
    %v3358 = vpop.f32.mrf.mxu0
    %v3359 = vpop.f32.mrf.mxu0
    %v3360 = vadd.f32 0.0, %v3359
    %v3361 = vpop.f32.mrf.mxu0
    %3362 = vmatprep.mubr.bf16.mxu0 %v3192
    %3363 = vmatmul.mubr.bf16.gmra.mxu0 %v3191
    %v3364 = vpop.f32.mrf.mxu0
    %v3365 = vadd.f32 0.0, %v3364
    %v3366 = vpop.f32.mrf.mxu0
    %v3367 = vpop.f32.mrf.mxu0
    %v3368 = vadd.f32 0.0, %v3367
    %v3369 = vpop.f32.mrf.mxu0
    %3370 = vdwg.mxu0
    %v3371 = vadd.f32 %v2914, %v3357
    %v3372 = vadd.f32 %v2915, %v3360
    %v3373 = vadd.f32 %v2916, %v3365
    %v3374 = vadd.f32 %v2917, %v3368
    %s3375 = scalar_lea.vmem %s14, 1
    %v3376 = vld [vmem:[%s3375] sm:$0x1]
    %v3378 = vlaneseq
    %v3379 = vshrl.u32 %v3378, 7
    %v3380 = vsub.s32 0, %v3379
    %v3381 = vrot.slane %v3376, %v3380
    %v3383 = vadd.f32 %v3371, %v3381
    %v3384 = vadd.f32 %v3372, %v3381
    %v3385 = vadd.f32 %v3373, %v3381
    %v3386 = vadd.f32 %v3374, %v3381
    %v3387 = vld [vmem:[%s15] sm:$0x1]
    %v3388 = vld [vmem:[%s16] sm:$0x1]
    %v3389 = vsel %vm71, %v3383, 0.0
    %3390 = vadd.xlane.f32.xlu0 %v3389
    %v3391 = vpop.xlane.xlu0 %3390
    %v3392 = vsel %vm71, %v3384, 0.0
    %3393 = vadd.xlane.f32.xlu0 %v3392
    %v3394 = vpop.xlane.xlu0 %3393
    %v3395 = vsel %vm71, %v3385, 0.0
    %3396 = vadd.xlane.f32.xlu0 %v3395
    %v3397 = vpop.xlane.xlu0 %3396
    %v3398 = vsel %vm71, %v3386, 0.0
    %3399 = vadd.xlane.f32.xlu0 %v3398
    %v3400 = vpop.xlane.xlu0 %3399
    %v3401 = vmul.f32 %v3391, %v84
    %v3402 = vmul.f32 %v3394, %v84
    %v3403 = vmul.f32 %v3397, %v84
    %v3404 = vmul.f32 %v3400, %v84
    %v3405 = vsub.f32 %v3383, %v3401
    %v3406 = vsub.f32 %v3384, %v3402
    %v3407 = vsub.f32 %v3385, %v3403
    %v3408 = vsub.f32 %v3386, %v3404
    %v3409 = vmul.f32 %v3405, %v3405
    %v3410 = vmul.f32 %v3406, %v3406
    %v3411 = vmul.f32 %v3407, %v3407
    %v3412 = vmul.f32 %v3408, %v3408
    %v3413 = vsel %vm71, %v3409, 0.0
    %3414 = vadd.xlane.f32.xlu0 %v3413
    %v3415 = vpop.xlane.xlu0 %3414
    %v3416 = vsel %vm71, %v3410, 0.0
    %3417 = vadd.xlane.f32.xlu0 %v3416
    %v3418 = vpop.xlane.xlu0 %3417
    %v3419 = vsel %vm71, %v3411, 0.0
    %3420 = vadd.xlane.f32.xlu0 %v3419
    %v3421 = vpop.xlane.xlu0 %3420
    %v3422 = vsel %vm71, %v3412, 0.0
    %3423 = vadd.xlane.f32.xlu0 %v3422
    %v3424 = vpop.xlane.xlu0 %3423
    %v3425 = vmul.f32 %v3415, %v84
    %v3426 = vmul.f32 %v3418, %v84
    %v3427 = vmul.f32 %v3421, %v84
    %v3428 = vmul.f32 %v3424, %v84
    %v3429 = vadd.f32 %v3425, 1e-05
    %v3430 = vadd.f32 %v3426, 1e-05
    %v3431 = vadd.f32 %v3427, 1e-05
    %v3432 = vadd.f32 %v3428, 1e-05
    %v3433 = vrsqrt.pop %v3429
    %v3434 = vrsqrt.pop %v3430
    %v3435 = vrsqrt.pop %v3431
    %v3436 = vrsqrt.pop %v3432
    %v3437 = vmul.f32 %v3405, %v3433
    %v3438 = vmul.f32 %v3406, %v3434
    %v3439 = vmul.f32 %v3407, %v3435
    %v3440 = vmul.f32 %v3408, %v3436
    %v3442 = vlaneseq
    %v3443 = vshrl.u32 %v3442, 7
    %v3444 = vsub.s32 0, %v3443
    %v3445 = vrot.slane %v3387, %v3444
    %v3447 = vmul.f32 %v3437, %v3445
    %v3448 = vmul.f32 %v3438, %v3445
    %v3449 = vmul.f32 %v3439, %v3445
    %v3450 = vmul.f32 %v3440, %v3445
    %v3452 = vlaneseq
    %v3453 = vshrl.u32 %v3452, 7
    %v3454 = vsub.s32 0, %v3453
    %v3455 = vrot.slane %v3388, %v3454
    %v3457 = vadd.f32 %v3447, %v3455
    %v3458 = vadd.f32 %v3448, %v3455
    %v3459 = vadd.f32 %v3449, %v3455
    %v3460 = vadd.f32 %v3450, %v3455
    %v3461 = vpack.c.bf16 %v3458, %v3457
    %v3462 = vpack.c.bf16 %v3460, %v3459
    %v3463 = vld [vmem:[%s17] sm:$0xff]
    %v3464 = vld [vmem:[%s17 + $0x8] sm:$0xff]
    %v3465 = vld [vmem:[%s17 + $0x10] sm:$0xff]
    %v3466 = vld [vmem:[%s17 + $0x18] sm:$0xff]
    %v3467 = vld [vmem:[%s17 + $0x20] sm:$0xff]
    %v3468 = vld [vmem:[%s17 + $0x28] sm:$0xff]
    %v3469 = vld [vmem:[%s17 + $0x30] sm:$0xff]
    %v3470 = vld [vmem:[%s17 + $0x38] sm:$0xff]
    %v3479 = vunpack.c.l.b16 %v3463
    %v3480 = vunpack.c.h.b16 %v3463
    %v3481 = vunpack.c.l.b16 %v3464
    %v3482 = vunpack.c.h.b16 %v3464
    %v3483 = vunpack.c.l.b16 %v3465
    %v3484 = vunpack.c.h.b16 %v3465
    %v3485 = vunpack.c.l.b16 %v3466
    %v3486 = vunpack.c.h.b16 %v3466
    %v3487 = vunpack.c.l.b16 %v3467
    %v3488 = vunpack.c.h.b16 %v3467
    %v3489 = vunpack.c.l.b16 %v3468
    %v3490 = vunpack.c.h.b16 %v3468
    %v3491 = vunpack.c.l.b16 %v3469
    %v3492 = vunpack.c.h.b16 %v3469
    %v3493 = vunpack.c.l.b16 %v3470
    %v3494 = vunpack.c.h.b16 %v3470
    %v3495 = vpack.c.b16 %v3481, %v3479
    %v3496 = vpack.c.b16 %v3482, %v3480
    %v3497 = vpack.c.b16 %v3485, %v3483
    %v3498 = vpack.c.b16 %v3486, %v3484
    %v3499 = vpack.c.b16 %v3489, %v3487
    %v3500 = vpack.c.b16 %v3490, %v3488
    %v3501 = vpack.c.b16 %v3493, %v3491
    %v3502 = vpack.c.b16 %v3494, %v3492
    %v3512 = vsel %vm71, %v3461, 0
    %v3515 = vsel %vm71, %v3462, 0
    %3517 = vmatprep.subr.bf16.mxu0 0
    %3518 = vmatpush1.bf16.msra.mxu0 0
    %3519 = vmatprep.subr.bf16.mxu0 0
    %3520 = vmatpush1.bf16.msra.mxu0 0
    %3521 = vmatprep.subr.bf16.mxu0 0
    %3522 = vmatpush1.bf16.msra.mxu0 0
    %3523 = vmatprep.subr.bf16.mxu0 0
    %3524 = vmatpush1.bf16.msra.mxu0 0
    %3525 = vmatprep.subr.bf16.mxu0 %v3502
    %3526 = vmatpush1.bf16.msra.mxu0 %v3501
    %3527 = vmatprep.subr.bf16.mxu0 %v3500
    %3528 = vmatpush1.bf16.msra.mxu0 %v3499
    %3529 = vmatprep.subr.bf16.mxu0 %v3498
    %3530 = vmatpush1.bf16.msra.mxu0 %v3497
    %3531 = vmatprep.subr.bf16.mxu0 %v3496
    %3532 = vmatpush1.bf16.msra.mxu0 %v3495
    %3533 = vmatprep.subr.bf16.mxu0 0
    %3534 = vmatpush2.bf16.msra.mxu0 0
    %3535 = vmatprep.subr.bf16.mxu0 0
    %3536 = vmatpush2.bf16.msra.mxu0 0
    %3537 = vmatprep.subr.bf16.mxu0 0
    %3538 = vmatpush2.bf16.msra.mxu0 0
    %3539 = vmatprep.subr.bf16.mxu0 0
    %3540 = vmatpush2.bf16.msra.mxu0 0
    %3541 = vmatprep.subr.bf16.mxu0 0
    %3542 = vmatpush2.bf16.msra.mxu0 0
    %3543 = vmatprep.subr.bf16.mxu0 0
    %3544 = vmatpush2.bf16.msra.mxu0 0
    %3545 = vmatprep.subr.bf16.mxu0 0
    %3546 = vmatpush2.bf16.msra.mxu0 0
    %3547 = vmatprep.subr.bf16.mxu0 0
    %3548 = vmatpush2.bf16.msra.mxu0 0
    %3549 = vmatprep.mubr.bf16.mxu0 0
    %3550 = vmatmul.mubr.bf16.gmra.mxu0 %v3512
    %v3551 = vpop.f32.mrf.mxu0
    %v3552 = vadd.f32 0.0, %v3551
    %v3553 = vpop.f32.mrf.mxu0
    %v3554 = vadd.f32 0.0, %v3553
    %v3555 = vpop.f32.mrf.mxu0
    %v3556 = vadd.f32 0.0, %v3555
    %v3557 = vpop.f32.mrf.mxu0
    %v3558 = vadd.f32 0.0, %v3557
    %3559 = vmatprep.mubr.bf16.mxu0 0
    %3560 = vmatmul.mubr.bf16.gmra.mxu0 %v3515
    %v3561 = vpop.f32.mrf.mxu0
    %v3562 = vadd.f32 0.0, %v3561
    %v3563 = vpop.f32.mrf.mxu0
    %v3564 = vadd.f32 0.0, %v3563
    %v3565 = vpop.f32.mrf.mxu0
    %v3566 = vadd.f32 0.0, %v3565
    %v3567 = vpop.f32.mrf.mxu0
    %v3568 = vadd.f32 0.0, %v3567
    %3569 = vdwg.mxu0
    %v3570 = vld [vmem:[%s2] sm:$0xff]
    %v3571 = vld [vmem:[%s2 + $0x8] sm:$0xff]
    %v3572 = vld [vmem:[%s2 + $0x10] sm:$0xff]
    %v3573 = vld [vmem:[%s2 + $0x18] sm:$0xff]
    %vm3574 = vcmp.ne.s32.totalorder %v3570, 4294967196
    %vm3575 = vcmp.ne.s32.totalorder %v3571, 4294967196
    %vm3576 = vcmp.ne.s32.totalorder %v3572, 4294967196
    %vm3577 = vcmp.ne.s32.totalorder %v3573, 4294967196
    %v3578 = vsel %vm3574, %v3570, 0
    %v3579 = vsel %vm3575, %v3571, 0
    %v3580 = vsel %vm3576, %v3572, 0
    %v3581 = vsel %vm3577, %v3573, 0
    %v3582 = vlaneseq
    %v3583 = vand.u32 %v3582, 127
    %v3584 = vadd.s32 %v3583, 128
    %3585 = vset.pattern.permute.xlu0 0
    %3586 = vperm.xlu0 %3585, %v3578
    %v3587 = vpop.permute.xlu0 %3586
    %3588 = vset.pattern.permute.xlu0 0
    %3589 = vperm.xlu0 %3588, %v3579
    %v3590 = vpop.permute.xlu0 %3589
    %3591 = vset.pattern.permute.xlu0 0
    %3592 = vperm.xlu0 %3591, %v3580
    %v3593 = vpop.permute.xlu0 %3592
    %3594 = vset.pattern.permute.xlu0 0
    %3595 = vperm.xlu0 %3594, %v3581
    %v3596 = vpop.permute.xlu0 %3595
    %vm3597 = vcmp.eq.s32.totalorder %v3583, %v3587
    %vm3598 = vcmp.eq.s32.totalorder %v3584, %v3587
    %vm3599 = vcmp.eq.s32.totalorder %v3583, %v3590
    %vm3600 = vcmp.eq.s32.totalorder %v3584, %v3590
    %vm3601 = vcmp.eq.s32.totalorder %v3583, %v3593
    %vm3602 = vcmp.eq.s32.totalorder %v3584, %v3593
    %vm3603 = vcmp.eq.s32.totalorder %v3583, %v3596
    %vm3604 = vcmp.eq.s32.totalorder %v3584, %v3596
    %v3605 = vsel %vm3597, %v3552, 0.0
    %v3606 = vsel %vm3598, %v3554, 0.0
    %v3607 = vsel %vm3599, %v3556, 0.0
    %v3608 = vsel %vm3600, %v3558, 0.0
    %v3609 = vsel %vm3601, %v3562, 0.0
    %v3610 = vsel %vm3602, %v3564, 0.0
    %v3611 = vsel %vm3603, %v3566, 0.0
    %v3612 = vsel %vm3604, %v3568, 0.0
    %v3613 = vadd.f32 %v3605, %v3606
    %3614 = vadd.xlane.f32.xlu0 %v3613
    %v3615 = vpop.xlane.xlu0 %3614
    %v3616 = vadd.f32 %v3607, %v3608
    %3617 = vadd.xlane.f32.xlu0 %v3616
    %v3618 = vpop.xlane.xlu0 %3617
    %v3619 = vadd.f32 %v3609, %v3610
    %3620 = vadd.xlane.f32.xlu0 %v3619
    %v3621 = vpop.xlane.xlu0 %3620
    %v3622 = vadd.f32 %v3611, %v3612
    %3623 = vadd.xlane.f32.xlu0 %v3622
    %v3624 = vpop.xlane.xlu0 %3623
    %v3625 = vmax.f32 %v3552, %v3554
    %3626 = vmax.xlane.f32.xlu0 %v3625
    %v3627 = vpop.xlane.xlu0 %3626
    %v3628 = vmax.f32 %v3556, %v3558
    %3629 = vmax.xlane.f32.xlu0 %v3628
    %v3630 = vpop.xlane.xlu0 %3629
    %v3631 = vmax.f32 %v3562, %v3564
    %3632 = vmax.xlane.f32.xlu0 %v3631
    %v3633 = vpop.xlane.xlu0 %3632
    %v3634 = vmax.f32 %v3566, %v3568
    %3635 = vmax.xlane.f32.xlu0 %v3634
    %v3636 = vpop.xlane.xlu0 %3635
    %v3637 = vsub.f32 %v3552, %v3627
    %v3638 = vsub.f32 %v3554, %v3627
    %v3639 = vsub.f32 %v3556, %v3630
    %v3640 = vsub.f32 %v3558, %v3630
    %v3641 = vsub.f32 %v3562, %v3633
    %v3642 = vsub.f32 %v3564, %v3633
    %v3643 = vsub.f32 %v3566, %v3636
    %v3644 = vsub.f32 %v3568, %v3636
    %v3645 = vmul.f32 %v3637, 1.442695
    %v3646 = vpow.pop %v3645
    %v3647 = vmul.f32 %v3638, 1.442695
    %v3648 = vpow.pop %v3647
    %v3649 = vmul.f32 %v3639, 1.442695
    %v3650 = vpow.pop %v3649
    %v3651 = vmul.f32 %v3640, 1.442695
    %v3652 = vpow.pop %v3651
    %v3653 = vmul.f32 %v3641, 1.442695
    %v3654 = vpow.pop %v3653
    %v3655 = vmul.f32 %v3642, 1.442695
    %v3656 = vpow.pop %v3655
    %v3657 = vmul.f32 %v3643, 1.442695
    %v3658 = vpow.pop %v3657
    %v3659 = vmul.f32 %v3644, 1.442695
    %v3660 = vpow.pop %v3659
    %v3661 = vadd.f32 %v3646, %v3648
    %3662 = vadd.xlane.f32.xlu0 %v3661
    %v3663 = vpop.xlane.xlu0 %3662
    %v3664 = vadd.f32 %v3650, %v3652
    %3665 = vadd.xlane.f32.xlu0 %v3664
    %v3666 = vpop.xlane.xlu0 %3665
    %v3667 = vadd.f32 %v3654, %v3656
    %3668 = vadd.xlane.f32.xlu0 %v3667
    %v3669 = vpop.xlane.xlu0 %3668
    %v3670 = vadd.f32 %v3658, %v3660
    %3671 = vadd.xlane.f32.xlu0 %v3670
    %v3672 = vpop.xlane.xlu0 %3671
    %v3673 = vlog2.pop %v3663
    %v3674 = vmul.f32 %v3673, 0.6931472
    %v3675 = vlog2.pop %v3666
    %v3676 = vmul.f32 %v3675, 0.6931472
    %v3677 = vlog2.pop %v3669
    %v3678 = vmul.f32 %v3677, 0.6931472
    %v3679 = vlog2.pop %v3672
    %v3680 = vmul.f32 %v3679, 0.6931472
    %v3681 = vadd.f32 %v3627, %v3674
    %v3682 = vadd.f32 %v3630, %v3676
    %v3683 = vadd.f32 %v3633, %v3678
    %v3684 = vadd.f32 %v3636, %v3680
    %v3685 = vsel %vm3574, 1, 0
    %v3686 = vsel %vm3575, 1, 0
    %v3687 = vsel %vm3576, 1, 0
    %v3688 = vsel %vm3577, 1, 0
    %v3689 = vcvt.s32.f32 %v3685
    %v3690 = vcvt.s32.f32 %v3686
    %v3691 = vcvt.s32.f32 %v3687
    %v3692 = vcvt.s32.f32 %v3688
    %v3693 = vsub.f32 %v3681, %v3615
    %v3694 = vsub.f32 %v3682, %v3618
    %v3695 = vsub.f32 %v3683, %v3621
    %v3696 = vsub.f32 %v3684, %v3624
    %v3697 = vmul.f32 %v3693, %v3689
    %v3698 = vmul.f32 %v3694, %v3690
    %v3699 = vmul.f32 %v3695, %v3691
    %v3700 = vmul.f32 %v3696, %v3692
    %vm3701 = vcmask 7168
    %v3702 = vsel %vm3701, %v3697, 0.0
    %v3703 = vsel %vm3701, %v3698, 0.0
    %v3704 = vadd.f32 %v3702, %v3703
    %v3705 = vsel %vm3701, %v3699, 0.0
    %v3706 = vadd.f32 %v3704, %v3705
    %v3707 = vsel %vm3701, %v3700, 0.0
    %v3708 = vadd.f32 %v3706, %v3707
    %3709 = vadd.xlane.f32.xlu0 %v3708
    %v3710 = vpop.xlane.xlu0 %3709
    %v3711 = vrot.slane %v3710, 4
    %v3712 = vadd.f32 %v3710, %v3711
    %v3713 = vrot.slane %v3712, 2
    %v3714 = vadd.f32 %v3712, %v3713
    %v3715 = vrot.slane %v3714, 1
    %v3716 = vadd.f32 %v3714, %v3715
    %s3717 = vtos %v3716
    %v3718 = vstv %s3717
    %v3719 = vsel %vm3701, %v3689, 0.0
    %v3720 = vsel %vm3701, %v3690, 0.0
    %v3721 = vadd.f32 %v3719, %v3720
    %v3722 = vsel %vm3701, %v3691, 0.0
    %v3723 = vadd.f32 %v3721, %v3722
    %v3724 = vsel %vm3701, %v3692, 0.0
    %v3725 = vadd.f32 %v3723, %v3724
    %3726 = vadd.xlane.f32.xlu0 %v3725
    %v3727 = vpop.xlane.xlu0 %3726
    %v3728 = vrot.slane %v3727, 4
    %v3729 = vadd.f32 %v3727, %v3728
    %v3730 = vrot.slane %v3729, 2
    %v3731 = vadd.f32 %v3729, %v3730
    %v3732 = vrot.slane %v3731, 1
    %v3733 = vadd.f32 %v3731, %v3732
    %s3734 = vtos %v3733
    %v3735 = vstv %s3734
    %v3736 = vmax.f32 %v3735, 1.0
    %v3737 = vrcp.pop %v3736
    %v3738 = vmul.f32 %v3718, %v3737
    %vm3739 = vcmask 0
    %3740 = vst.msk [vmem:[#allocation2] sm:$0x1] %vm3739, %v3738
    // Predicated region
    $region74: #{gpt2_loss_forward.1} parent=1 // pred_check
      _
    $region75: #{gpt2_loss_forward.1} parent=1 // pred_check_branch
      %3742 = sbr.rel (0) target = $region77
    $region76: #{gpt2_loss_forward.1} parent=1 // pred_region
      %s3744 = ssub.s32 16, 16
      %3745 = vsyncadd [#allocation3], %s3744
      %s3747 = sshll.u32 [#allocation2], 4
      %s3748 = int_to_ptr.vmem [resolvable:$true] %s3747
      %3750 = dma.vmem_to_hbm [thread:$0]  %s3748, 16, %s18, [#allocation3]
    $region77: #{gpt2_loss_forward.1} parent=1 // pred_fallthru
      _
    // Predicated region
    $region78: #{gpt2_loss_forward.1} parent=1 // pred_check
      _
    $region79: #{gpt2_loss_forward.1} parent=1 // pred_check_branch
      %3752 = sbr.rel (0) target = $region81
    $region80: #{gpt2_loss_forward.1} parent=1 // pred_region
      %3753 = dma.done [#allocation3], 16
    $region81: #{gpt2_loss_forward.1} parent=1 // pred_fallthru
      _
    %3754 = vsyncpa [#allocation3], 1

</llo_original>
